<compile_context>
chip_gen: v6e
topology: v6e:2x2x1
jax: 0.10.0
libtpu: 0.0.40
codegen_flags: <defaults>
</compile_context>

<pallas_src>
import functools
import math

import jax
import jax.numpy as jnp
import numpy as np
from jax.experimental import pallas as pl
from jax.experimental.pallas import tpu as pltpu


# ----------------------------------------------------------------------------
# Fused Pallas kernel
# ----------------------------------------------------------------------------
def joint_kernel(vid_ref, txt_ref, extra_ref, pA_ref, pB_ref, pC_ref, out_ref,
                 *, offs):
    """Whole JointNet forward; both LSTMs fused block-diagonally + wavefront."""
    B, T, Dv = vid_ref.shape
    _, Tt, Dt = txt_ref.shape
    E = extra_ref.shape[1]
    H8 = pA_ref.shape[1]
    H = H8 // 8
    H2 = 2 * H
    LH = pB_ref.shape[1]

    # ---- static-offset slab slices (zero-cost refs -> VMEM loads) ----------
    Av0 = pA_ref[offs["Av0"]:offs["Av0"] + Dv, :]        # (Dv, 8H)
    At0 = pA_ref[offs["At0"]:offs["At0"] + Dt, :]        # (Dt, 8H)
    Whh0 = pA_ref[offs["Whh0"]:offs["Whh0"] + H2, :]     # (2H, 8H) block-diag
    Wih1 = pA_ref[offs["Wih1"]:offs["Wih1"] + H2, :]     # (2H, 8H) block-diag
    Whh1 = pA_ref[offs["Whh1"]:offs["Whh1"] + H2, :]     # (2H, 8H) block-diag
    b0 = pA_ref[offs["b0"]:offs["b0"] + 1, :]            # (1, 8H)
    b1l = pA_ref[offs["b1"]:offs["b1"] + 1, :]           # (1, 8H)

    W1a = pB_ref[offs["W1a"]:offs["W1a"] + H2, :]        # matches h_cat layer0
    W1b = pB_ref[offs["W1b"]:offs["W1b"] + H2, :]        # matches h_cat layer1
    W1e = pB_ref[offs["W1e"]:offs["W1e"] + E, :]
    b1fc = pB_ref[offs["b1fc"]:offs["b1fc"] + 1, :]

    W2 = pC_ref[offs["W2"]:offs["W2"] + LH, :]
    b2 = pC_ref[offs["b2"]:offs["b2"] + 1, :]

    # Fused gate layout along lanes: [i_v,i_t | f_v,f_t | g_v,g_t | o_v,o_t],
    # each fused gate is 2H wide and lines up with the [h_vid | h_txt] state.
    def gates(g):
        sig = jax.nn.sigmoid(g)                 # one full-vreg EUP pass
        th = jnp.tanh(g)                        # one full-vreg EUP pass
        return (sig[:, 0:H2], sig[:, H2:2 * H2],
                th[:, 2 * H2:3 * H2], sig[:, 3 * H2:4 * H2])

    def cell(gin, h, c, whh):
        g = gin + jnp.dot(h, whh, preferred_element_type=jnp.float32)
        i, f, gg, o = gates(g)
        c_new = f * c + i * gg
        return o * jnp.tanh(c_new), c_new

    def cell_first(gin):
        # step 0: h = c = 0 -> no recurrent matmul, no f*c term
        i, _, gg, o = gates(gin)
        c_new = i * gg
        return o * jnp.tanh(c_new), c_new

    # ---- hoisted layer-0 input projection for BOTH LSTMs (off critical path)
    xv = vid_ref[...].reshape(B * T, Dv)
    xt = txt_ref[...].reshape(B * T, Dt)
    xp0 = (jnp.dot(xv, Av0, preferred_element_type=jnp.float32)
           + jnp.dot(xt, At0, preferred_element_type=jnp.float32)
           + b0).reshape(B, T, H8)
    # NOTE: per-step xp0[:, t, :] slices depend only on the hoisted xp0 (not on
    # the recurrence), so they schedule ahead of the serial chain.

    # ---- layer-0 / layer-1 wavefront (fully unrolled; T is tiny & static) ---
    h0, c0 = cell_first(xp0[:, 0, :])
    h1 = c1 = None
    for t in range(1, T):
        h0_prev = h0
        # layer-0 step t and layer-1 step t-1 are independent -> can overlap
        h0, c0 = cell(xp0[:, t, :], h0, c0, Whh0)
        gin1 = jnp.dot(h0_prev, Wih1, preferred_element_type=jnp.float32) + b1l
        if t == 1:
            h1, c1 = cell_first(gin1)
        else:
            h1, c1 = cell(gin1, h1, c1, Whh1)
    gin1 = jnp.dot(h0, Wih1, preferred_element_type=jnp.float32) + b1l
    if T == 1:
        h1, c1 = cell_first(gin1)
    else:
        h1, c1 = cell(gin1, h1, c1, Whh1)

    # ---- MLP head: split-K instead of a 136-lane concat ---------------------
    # Linear -> ReLU -> (Dropout = identity) -> Linear -> softmax(dim=1)
    fc_h = (jnp.dot(h0, W1a, preferred_element_type=jnp.float32)
            + jnp.dot(h1, W1b, preferred_element_type=jnp.float32)
            + jnp.dot(extra_ref[...], W1e, preferred_element_type=jnp.float32)
            + b1fc)
    fc_h = jnp.maximum(fc_h, 0.0)
    logits = jnp.dot(fc_h, W2, preferred_element_type=jnp.float32) + b2
    m = jnp.max(logits, axis=-1, keepdims=True)
    e = jnp.exp(logits - m)
    out_ref[...] = e / jnp.sum(e, axis=-1, keepdims=True)


# ----------------------------------------------------------------------------
# Host-side parameter packing (runs once; numpy, off the XLA graph)
# ----------------------------------------------------------------------------
def _align8(n):
    return ((n + 7) // 8) * 8


def _scatter_gate_cols(w, H, slot):
    """(R, 4H) in PyTorch [i|f|g|o] order -> (R, 8H) with columns interleaved
    as [i_v,i_t,f_v,f_t,g_v,g_t,o_v,o_t]; slot 0 = video, 1 = text."""
    R = w.shape[0]
    out = np.zeros((R, 8 * H), np.float32)
    for g in range(4):
        out[:, (2 * g + slot) * H:(2 * g + slot + 1) * H] = w[:, g * H:(g + 1) * H]
    return out


def pack_joint_params(params):
    vl = [[np.asarray(a, np.float32) for a in layer] for layer in params["video_lstm"]]
    tl = [[np.asarray(a, np.float32) for a in layer] for layer in params["text_lstm"]]
    assert len(vl) == 2 and len(tl) == 2, "packing assumes 2-layer LSTMs"
    w1_t, b1, w2_t, b2 = [np.asarray(a, np.float32) for a in params["fcs"]]

    H = vl[0][1].shape[0]           # whh_T is (H, 4H)
    Dv = vl[0][0].shape[0]          # wih_T layer-0 is (Dv, 4H)
    Dt = tl[0][0].shape[0]
    LH = w1_t.shape[1]
    C = w2_t.shape[1]
    E = w1_t.shape[0] - 4 * H
    H8 = 8 * H

    # ---- slab A: everything 8H-wide (fused-gate, block-diagonal layout) ----
    Av0 = _scatter_gate_cols(vl[0][0], H, 0)
    At0 = _scatter_gate_cols(tl[0][0], H, 1)
    Whh0 = np.concatenate([_scatter_gate_cols(vl[0][1], H, 0),
                           _scatter_gate_cols(tl[0][1], H, 1)], axis=0)
    Wih1 = np.concatenate([_scatter_gate_cols(vl[1][0], H, 0),
                           _scatter_gate_cols(tl[1][0], H, 1)], axis=0)
    Whh1 = np.concatenate([_scatter_gate_cols(vl[1][1], H, 0),
                           _scatter_gate_cols(tl[1][1], H, 1)], axis=0)
    b0 = _scatter_gate_cols(vl[0][2], H, 0) + _scatter_gate_cols(tl[0][2], H, 1)
    b1l = _scatter_gate_cols(vl[1][2], H, 0) + _scatter_gate_cols(tl[1][2], H, 1)

    offs = {}

    def _pack(pieces, width):
        off = 0
        for name, arr in pieces:
            offs[name] = off
            off += _align8(arr.shape[0])
        slab = np.zeros((off, width), np.float32)
        for name, arr in pieces:
            slab[offs[name]:offs[name] + arr.shape[0], :] = arr
        return slab

    slab_a = _pack([("Av0", Av0), ("At0", At0), ("Whh0", Whh0),
                    ("Wih1", Wih1), ("Whh1", Whh1), ("b0", b0), ("b1", b1l)], H8)

    # ---- slab B: FC1 rows regrouped to match [h_l0 | h_l1] / extra ----------
    # original fc_input row order: [vid_l0, vid_l1, txt_l0, txt_l1, extra]
    W1a = np.concatenate([w1_t[0:H, :], w1_t[2 * H:3 * H, :]], axis=0)
    W1b = np.concatenate([w1_t[H:2 * H, :], w1_t[3 * H:4 * H, :]], axis=0)
    W1e = w1_t[4 * H:4 * H + E, :]
    slab_b = _pack([("W1a", W1a), ("W1b", W1b), ("W1e", W1e), ("b1fc", b1)], LH)

    # ---- slab C: FC2 ---------------------------------------------------------
    slab_c = _pack([("W2", w2_t), ("b2", b2)], C)

    return jnp.asarray(slab_a), jnp.asarray(slab_b), jnp.asarray(slab_c), offs


# ----------------------------------------------------------------------------
# Wrapper
# ----------------------------------------------------------------------------
def joint_net_forward(text_input, video_input, extra_feats, packed):
    """Mirrors JointNet.forward (tag=None path): returns (out_probs, loss)."""
    slab_a, slab_b, slab_c, offs = packed
    B, Tv, Dv = video_input.shape
    Bt, Tt, Dt = text_input.shape
    assert B == Bt
    assert Tv == Tt, "fused lockstep kernel needs equal sequence lengths"
    H = slab_a.shape[1] // 8
    LH = slab_b.shape[1]
    C = slab_c.shape[1]
    E = extra_feats.shape[1]

    # rough advisory cost hint for the XLA scheduler
    flops = int(2 * B * Tv * (Dv + Dt) * 8 * H           # hoisted layer-0 proj
                + 2 * B * Tv * (2 * H) * (8 * H) * 3     # rec l0 + (in + rec) l1
                + 2 * B * (4 * H * LH + E * LH + LH * C))
    transcendentals = int(2 * Tv * B * (2 * 8 * H + 2 * H) + B * C)
    bytes_accessed = int(4 * (video_input.size + text_input.size + extra_feats.size
                              + slab_a.size + slab_b.size + slab_c.size + B * C))

    vmem_spec = pl.BlockSpec(memory_space=pltpu.MemorySpace.VMEM)
    out_probs = pl.pallas_call(
        functools.partial(joint_kernel, offs=offs),
        out_shape=jax.ShapeDtypeStruct((B, C), jnp.float32),
        in_specs=[vmem_spec] * 6,
        out_specs=vmem_spec,
        cost_estimate=pl.CostEstimate(flops=flops,
                                      transcendentals=transcendentals,
                                      bytes_accessed=bytes_accessed),
    )(video_input, text_input, extra_feats, slab_a, slab_b, slab_c)

    loss = 0.0
    return out_probs, loss


# ----------------------------------------------------------------------------
# Deterministic parameter init (PyTorch-style uniform(-1/sqrt(H), 1/sqrt(H)))
# ----------------------------------------------------------------------------
def init_lstm_params(key, input_size, hidden, layers=2):
    bound = 1.0 / math.sqrt(hidden)
    params = []
    keys = jax.random.split(key, layers)
    for l in range(layers):
        in_sz = input_size if l == 0 else hidden
        k1, k2, k3, k4 = jax.random.split(keys[l], 4)
        wih = jax.random.uniform(k1, (4 * hidden, in_sz), jnp.float32, -bound, bound)
        whh = jax.random.uniform(k2, (4 * hidden, hidden), jnp.float32, -bound, bound)
        bih = jax.random.uniform(k3, (4 * hidden,), jnp.float32, -bound, bound)
        bhh = jax.random.uniform(k4, (4 * hidden,), jnp.float32, -bound, bound)
        # pre-transpose to (D_in, 4H)/(H, 4H); fold the two biases together
        params.append((wih.T, whh.T, (bih + bhh)[None, :]))
    return tuple(params)


def init_linear(key, in_f, out_f):
    bound = 1.0 / math.sqrt(in_f)
    k1, k2 = jax.random.split(key)
    w = jax.random.uniform(k1, (out_f, in_f), jnp.float32, -bound, bound)
    b = jax.random.uniform(k2, (out_f,), jnp.float32, -bound, bound)
    return w.T, b[None, :]


# ----------------------------------------------------------------------------
if __name__ == "__main__":
    # hyperparameters (small, consistent with the module's __init__)
    B = 2
    TEXT_LEN, TEXT_DIM = 8, 16        # input_length arg to JointNet
    VID_LEN, VID_DIM = 8, 32          # hyperparams['video']['input_length']
    HIDDEN = 32                       # hidden_length (both nets)
    LAYERS = 2                        # layer_number (both nets)
    LIN_HIDDEN = 32                   # hyperparams['text']['linear_hidden_length']
    EXTRA = 8                         # extra_length
    BIN_NUMBER = 4                    # config.bin_number

    root = jax.random.PRNGKey(0)
    k_vid, k_txt, k_fc1, k_fc2, k_x1, k_x2, k_x3 = jax.random.split(root, 7)

    fc_in = HIDDEN * LAYERS + HIDDEN * LAYERS + EXTRA
    params = {
        "video_lstm": init_lstm_params(k_vid, VID_DIM, HIDDEN, LAYERS),
        "text_lstm": init_lstm_params(k_txt, TEXT_DIM, HIDDEN, LAYERS),
        "fcs": (*init_linear(k_fc1, fc_in, LIN_HIDDEN),
                *init_linear(k_fc2, LIN_HIDDEN, BIN_NUMBER)),
    }
    packed = pack_joint_params(params)   # 3 slabs + static offsets (host, once)

    text_input = jax.random.normal(k_x1, (B, TEXT_LEN, TEXT_DIM), jnp.float32)
    video_input = jax.random.normal(k_x2, (B, VID_LEN, VID_DIM), jnp.float32)
    extra_feats = jax.random.normal(k_x3, (B, EXTRA), jnp.float32)

    out_probs, loss = joint_net_forward(text_input, video_input, extra_feats, packed)
    out_probs = jax.block_until_ready(out_probs)

    assert out_probs.shape == (B, BIN_NUMBER)
    assert bool(jnp.all(jnp.isfinite(out_probs)))
    assert bool(jnp.allclose(jnp.sum(out_probs, axis=1), 1.0, atol=1e-5))
    print("KERNEL_OK")
</pallas_src>

<mosaic_0001>
module attributes {stable_mosaic.version = 11 : i64} {
  func.func @joint_kernel(%arg0: memref<2x8x32xf32, #tpu.memory_space<vmem>>, %arg1: memref<2x8x16xf32, #tpu.memory_space<vmem>>, %arg2: memref<2x8xf32, #tpu.memory_space<vmem>>, %arg3: memref<256x256xf32, #tpu.memory_space<vmem>>, %arg4: memref<144x32xf32, #tpu.memory_space<vmem>>, %arg5: memref<40x4xf32, #tpu.memory_space<vmem>>, %arg6: memref<2x4xf32, #tpu.memory_space<vmem>>) attributes {dimension_semantics = [], scalar_prefetch = 0 : i64, scratch_operands = 0 : i64, tpu.core_type = #tpu.core_type<tc>} {
    %c0 = arith.constant 0 : index
    %c0_0 = arith.constant 0 : index
    %0 = vector.load %arg3[%c0, %c0_0] : memref<256x256xf32, #tpu.memory_space<vmem>>, vector<32x256xf32>
    %c32 = arith.constant 32 : index
    %c0_1 = arith.constant 0 : index
    %1 = vector.load %arg3[%c32, %c0_1] : memref<256x256xf32, #tpu.memory_space<vmem>>, vector<16x256xf32>
    %c48 = arith.constant 48 : index
    %c0_2 = arith.constant 0 : index
    %2 = vector.load %arg3[%c48, %c0_2] : memref<256x256xf32, #tpu.memory_space<vmem>>, vector<64x256xf32>
    %c112 = arith.constant 112 : index
    %c0_3 = arith.constant 0 : index
    %3 = vector.load %arg3[%c112, %c0_3] : memref<256x256xf32, #tpu.memory_space<vmem>>, vector<64x256xf32>
    %c176 = arith.constant 176 : index
    %c0_4 = arith.constant 0 : index
    %4 = vector.load %arg3[%c176, %c0_4] : memref<256x256xf32, #tpu.memory_space<vmem>>, vector<64x256xf32>
    %c240 = arith.constant 240 : index
    %c0_5 = arith.constant 0 : index
    %5 = vector.load %arg3[%c240, %c0_5] : memref<256x256xf32, #tpu.memory_space<vmem>>, vector<1x256xf32>
    %c248 = arith.constant 248 : index
    %c0_6 = arith.constant 0 : index
    %6 = vector.load %arg3[%c248, %c0_6] : memref<256x256xf32, #tpu.memory_space<vmem>>, vector<1x256xf32>
    %c0_7 = arith.constant 0 : index
    %c0_8 = arith.constant 0 : index
    %7 = vector.load %arg4[%c0_7, %c0_8] : memref<144x32xf32, #tpu.memory_space<vmem>>, vector<64x32xf32>
    %c64 = arith.constant 64 : index
    %c0_9 = arith.constant 0 : index
    %8 = vector.load %arg4[%c64, %c0_9] : memref<144x32xf32, #tpu.memory_space<vmem>>, vector<64x32xf32>
    %c128 = arith.constant 128 : index
    %c0_10 = arith.constant 0 : index
    %9 = vector.load %arg4[%c128, %c0_10] : memref<144x32xf32, #tpu.memory_space<vmem>>, vector<8x32xf32>
    %c136 = arith.constant 136 : index
    %c0_11 = arith.constant 0 : index
    %10 = vector.load %arg4[%c136, %c0_11] : memref<144x32xf32, #tpu.memory_space<vmem>>, vector<1x32xf32>
    %c0_12 = arith.constant 0 : index
    %c0_13 = arith.constant 0 : index
    %11 = vector.load %arg5[%c0_12, %c0_13] : memref<40x4xf32, #tpu.memory_space<vmem>>, vector<32x4xf32>
    %c32_14 = arith.constant 32 : index
    %c0_15 = arith.constant 0 : index
    %12 = vector.load %arg5[%c32_14, %c0_15] : memref<40x4xf32, #tpu.memory_space<vmem>>, vector<1x4xf32>
    %c0_16 = arith.constant 0 : index
    %c0_17 = arith.constant 0 : index
    %c0_18 = arith.constant 0 : index
    %13 = vector.load %arg0[%c0_16, %c0_17, %c0_18] : memref<2x8x32xf32, #tpu.memory_space<vmem>>, vector<2x8x32xf32>
    %14 = vector.shape_cast %13 : vector<2x8x32xf32> to vector<16x32xf32>
    %c0_19 = arith.constant 0 : index
    %c0_20 = arith.constant 0 : index
    %c0_21 = arith.constant 0 : index
    %15 = vector.load %arg1[%c0_19, %c0_20, %c0_21] : memref<2x8x16xf32, #tpu.memory_space<vmem>>, vector<2x8x16xf32>
    %16 = vector.shape_cast %15 : vector<2x8x16xf32> to vector<16x16xf32>
    %cst = arith.constant dense<0.000000e+00> : vector<16x256xf32>
    %17 = tpu.matmul %14, %0, %cst {dimension_numbers = #tpu.dot_dimension_numbers<[1], [0], [0], [1], [0, 0, 1, 1], [], []>} : vector<16x32xf32>, vector<32x256xf32>, vector<16x256xf32> -> vector<16x256xf32>
    %cst_22 = arith.constant dense<0.000000e+00> : vector<16x256xf32>
    %18 = tpu.matmul %16, %1, %cst_22 {dimension_numbers = #tpu.dot_dimension_numbers<[1], [0], [0], [1], [0, 0, 1, 1], [], []>} : vector<16x16xf32>, vector<16x256xf32>, vector<16x256xf32> -> vector<16x256xf32>
    %19 = arith.addf %17, %18 : vector<16x256xf32>
    %20 = vector.broadcast %5 : vector<1x256xf32> to vector<16x256xf32>
    %21 = arith.addf %19, %20 : vector<16x256xf32>
    %22 = vector.shape_cast %21 : vector<16x256xf32> to vector<2x8x256xf32>
    %23 = vector.extract_strided_slice %22 {offsets = [0, 0, 0], sizes = [2, 1, 256], strides = [1, 1, 1]} : vector<2x8x256xf32> to vector<2x1x256xf32>
    %24 = vector.shape_cast %23 : vector<2x1x256xf32> to vector<2x256xf32>
    %25 = arith.negf %24 : vector<2x256xf32>
    %26 = math.exp %25 : vector<2x256xf32>
    %cst_23 = arith.constant 1.000000e+00 : f32
    %27 = vector.broadcast %cst_23 : f32 to vector<2x256xf32>
    %28 = arith.addf %27, %26 : vector<2x256xf32>
    %29 = arith.divf %27, %28 : vector<2x256xf32>
    %30 = math.tanh %24 : vector<2x256xf32>
    %31 = vector.extract_strided_slice %29 {offsets = [0, 0], sizes = [2, 64], strides = [1, 1]} : vector<2x256xf32> to vector<2x64xf32>
    %32 = vector.extract_strided_slice %30 {offsets = [0, 128], sizes = [2, 64], strides = [1, 1]} : vector<2x256xf32> to vector<2x64xf32>
    %33 = vector.extract_strided_slice %29 {offsets = [0, 192], sizes = [2, 64], strides = [1, 1]} : vector<2x256xf32> to vector<2x64xf32>
    %34 = arith.mulf %31, %32 : vector<2x64xf32>
    %35 = math.tanh %34 : vector<2x64xf32>
    %36 = arith.mulf %33, %35 : vector<2x64xf32>
    %37 = vector.extract_strided_slice %22 {offsets = [0, 1, 0], sizes = [2, 1, 256], strides = [1, 1, 1]} : vector<2x8x256xf32> to vector<2x1x256xf32>
    %38 = vector.shape_cast %37 : vector<2x1x256xf32> to vector<2x256xf32>
    %cst_24 = arith.constant dense<0.000000e+00> : vector<2x256xf32>
    %39 = tpu.matmul %36, %2, %cst_24 {dimension_numbers = #tpu.dot_dimension_numbers<[1], [0], [0], [1], [0, 0, 1, 1], [], []>} : vector<2x64xf32>, vector<64x256xf32>, vector<2x256xf32> -> vector<2x256xf32>
    %40 = arith.addf %38, %39 : vector<2x256xf32>
    %41 = arith.negf %40 : vector<2x256xf32>
    %42 = math.exp %41 : vector<2x256xf32>
    %cst_25 = arith.constant 1.000000e+00 : f32
    %43 = vector.broadcast %cst_25 : f32 to vector<2x256xf32>
    %44 = arith.addf %43, %42 : vector<2x256xf32>
    %45 = arith.divf %43, %44 : vector<2x256xf32>
    %46 = math.tanh %40 : vector<2x256xf32>
    %47 = vector.extract_strided_slice %45 {offsets = [0, 0], sizes = [2, 64], strides = [1, 1]} : vector<2x256xf32> to vector<2x64xf32>
    %48 = vector.extract_strided_slice %45 {offsets = [0, 64], sizes = [2, 64], strides = [1, 1]} : vector<2x256xf32> to vector<2x64xf32>
    %49 = vector.extract_strided_slice %46 {offsets = [0, 128], sizes = [2, 64], strides = [1, 1]} : vector<2x256xf32> to vector<2x64xf32>
    %50 = vector.extract_strided_slice %45 {offsets = [0, 192], sizes = [2, 64], strides = [1, 1]} : vector<2x256xf32> to vector<2x64xf32>
    %51 = arith.mulf %48, %34 : vector<2x64xf32>
    %52 = arith.mulf %47, %49 : vector<2x64xf32>
    %53 = arith.addf %51, %52 : vector<2x64xf32>
    %54 = math.tanh %53 : vector<2x64xf32>
    %55 = arith.mulf %50, %54 : vector<2x64xf32>
    %cst_26 = arith.constant dense<0.000000e+00> : vector<2x256xf32>
    %56 = tpu.matmul %36, %3, %cst_26 {dimension_numbers = #tpu.dot_dimension_numbers<[1], [0], [0], [1], [0, 0, 1, 1], [], []>} : vector<2x64xf32>, vector<64x256xf32>, vector<2x256xf32> -> vector<2x256xf32>
    %57 = vector.broadcast %6 : vector<1x256xf32> to vector<2x256xf32>
    %58 = arith.addf %56, %57 : vector<2x256xf32>
    %59 = arith.negf %58 : vector<2x256xf32>
    %60 = math.exp %59 : vector<2x256xf32>
    %cst_27 = arith.constant 1.000000e+00 : f32
    %61 = vector.broadcast %cst_27 : f32 to vector<2x256xf32>
    %62 = arith.addf %61, %60 : vector<2x256xf32>
    %63 = arith.divf %61, %62 : vector<2x256xf32>
    %64 = math.tanh %58 : vector<2x256xf32>
    %65 = vector.extract_strided_slice %63 {offsets = [0, 0], sizes = [2, 64], strides = [1, 1]} : vector<2x256xf32> to vector<2x64xf32>
    %66 = vector.extract_strided_slice %64 {offsets = [0, 128], sizes = [2, 64], strides = [1, 1]} : vector<2x256xf32> to vector<2x64xf32>
    %67 = vector.extract_strided_slice %63 {offsets = [0, 192], sizes = [2, 64], strides = [1, 1]} : vector<2x256xf32> to vector<2x64xf32>
    %68 = arith.mulf %65, %66 : vector<2x64xf32>
    %69 = math.tanh %68 : vector<2x64xf32>
    %70 = arith.mulf %67, %69 : vector<2x64xf32>
    %71 = vector.extract_strided_slice %22 {offsets = [0, 2, 0], sizes = [2, 1, 256], strides = [1, 1, 1]} : vector<2x8x256xf32> to vector<2x1x256xf32>
    %72 = vector.shape_cast %71 : vector<2x1x256xf32> to vector<2x256xf32>
    %cst_28 = arith.constant dense<0.000000e+00> : vector<2x256xf32>
    %73 = tpu.matmul %55, %2, %cst_28 {dimension_numbers = #tpu.dot_dimension_numbers<[1], [0], [0], [1], [0, 0, 1, 1], [], []>} : vector<2x64xf32>, vector<64x256xf32>, vector<2x256xf32> -> vector<2x256xf32>
    %74 = arith.addf %72, %73 : vector<2x256xf32>
    %75 = arith.negf %74 : vector<2x256xf32>
    %76 = math.exp %75 : vector<2x256xf32>
    %cst_29 = arith.constant 1.000000e+00 : f32
    %77 = vector.broadcast %cst_29 : f32 to vector<2x256xf32>
    %78 = arith.addf %77, %76 : vector<2x256xf32>
    %79 = arith.divf %77, %78 : vector<2x256xf32>
    %80 = math.tanh %74 : vector<2x256xf32>
    %81 = vector.extract_strided_slice %79 {offsets = [0, 0], sizes = [2, 64], strides = [1, 1]} : vector<2x256xf32> to vector<2x64xf32>
    %82 = vector.extract_strided_slice %79 {offsets = [0, 64], sizes = [2, 64], strides = [1, 1]} : vector<2x256xf32> to vector<2x64xf32>
    %83 = vector.extract_strided_slice %80 {offsets = [0, 128], sizes = [2, 64], strides = [1, 1]} : vector<2x256xf32> to vector<2x64xf32>
    %84 = vector.extract_strided_slice %79 {offsets = [0, 192], sizes = [2, 64], strides = [1, 1]} : vector<2x256xf32> to vector<2x64xf32>
    %85 = arith.mulf %82, %53 : vector<2x64xf32>
    %86 = arith.mulf %81, %83 : vector<2x64xf32>
    %87 = arith.addf %85, %86 : vector<2x64xf32>
    %88 = math.tanh %87 : vector<2x64xf32>
    %89 = arith.mulf %84, %88 : vector<2x64xf32>
    %cst_30 = arith.constant dense<0.000000e+00> : vector<2x256xf32>
    %90 = tpu.matmul %55, %3, %cst_30 {dimension_numbers = #tpu.dot_dimension_numbers<[1], [0], [0], [1], [0, 0, 1, 1], [], []>} : vector<2x64xf32>, vector<64x256xf32>, vector<2x256xf32> -> vector<2x256xf32>
    %91 = vector.broadcast %6 : vector<1x256xf32> to vector<2x256xf32>
    %92 = arith.addf %90, %91 : vector<2x256xf32>
    %cst_31 = arith.constant dense<0.000000e+00> : vector<2x256xf32>
    %93 = tpu.matmul %70, %4, %cst_31 {dimension_numbers = #tpu.dot_dimension_numbers<[1], [0], [0], [1], [0, 0, 1, 1], [], []>} : vector<2x64xf32>, vector<64x256xf32>, vector<2x256xf32> -> vector<2x256xf32>
    %94 = arith.addf %92, %93 : vector<2x256xf32>
    %95 = arith.negf %94 : vector<2x256xf32>
    %96 = math.exp %95 : vector<2x256xf32>
    %cst_32 = arith.constant 1.000000e+00 : f32
    %97 = vector.broadcast %cst_32 : f32 to vector<2x256xf32>
    %98 = arith.addf %97, %96 : vector<2x256xf32>
    %99 = arith.divf %97, %98 : vector<2x256xf32>
    %100 = math.tanh %94 : vector<2x256xf32>
    %101 = vector.extract_strided_slice %99 {offsets = [0, 0], sizes = [2, 64], strides = [1, 1]} : vector<2x256xf32> to vector<2x64xf32>
    %102 = vector.extract_strided_slice %99 {offsets = [0, 64], sizes = [2, 64], strides = [1, 1]} : vector<2x256xf32> to vector<2x64xf32>
    %103 = vector.extract_strided_slice %100 {offsets = [0, 128], sizes = [2, 64], strides = [1, 1]} : vector<2x256xf32> to vector<2x64xf32>
    %104 = vector.extract_strided_slice %99 {offsets = [0, 192], sizes = [2, 64], strides = [1, 1]} : vector<2x256xf32> to vector<2x64xf32>
    %105 = arith.mulf %102, %68 : vector<2x64xf32>
    %106 = arith.mulf %101, %103 : vector<2x64xf32>
    %107 = arith.addf %105, %106 : vector<2x64xf32>
    %108 = math.tanh %107 : vector<2x64xf32>
    %109 = arith.mulf %104, %108 : vector<2x64xf32>
    %110 = vector.extract_strided_slice %22 {offsets = [0, 3, 0], sizes = [2, 1, 256], strides = [1, 1, 1]} : vector<2x8x256xf32> to vector<2x1x256xf32>
    %111 = vector.shape_cast %110 : vector<2x1x256xf32> to vector<2x256xf32>
    %cst_33 = arith.constant dense<0.000000e+00> : vector<2x256xf32>
    %112 = tpu.matmul %89, %2, %cst_33 {dimension_numbers = #tpu.dot_dimension_numbers<[1], [0], [0], [1], [0, 0, 1, 1], [], []>} : vector<2x64xf32>, vector<64x256xf32>, vector<2x256xf32> -> vector<2x256xf32>
    %113 = arith.addf %111, %112 : vector<2x256xf32>
    %114 = arith.negf %113 : vector<2x256xf32>
    %115 = math.exp %114 : vector<2x256xf32>
    %cst_34 = arith.constant 1.000000e+00 : f32
    %116 = vector.broadcast %cst_34 : f32 to vector<2x256xf32>
    %117 = arith.addf %116, %115 : vector<2x256xf32>
    %118 = arith.divf %116, %117 : vector<2x256xf32>
    %119 = math.tanh %113 : vector<2x256xf32>
    %120 = vector.extract_strided_slice %118 {offsets = [0, 0], sizes = [2, 64], strides = [1, 1]} : vector<2x256xf32> to vector<2x64xf32>
    %121 = vector.extract_strided_slice %118 {offsets = [0, 64], sizes = [2, 64], strides = [1, 1]} : vector<2x256xf32> to vector<2x64xf32>
    %122 = vector.extract_strided_slice %119 {offsets = [0, 128], sizes = [2, 64], strides = [1, 1]} : vector<2x256xf32> to vector<2x64xf32>
    %123 = vector.extract_strided_slice %118 {offsets = [0, 192], sizes = [2, 64], strides = [1, 1]} : vector<2x256xf32> to vector<2x64xf32>
    %124 = arith.mulf %121, %87 : vector<2x64xf32>
    %125 = arith.mulf %120, %122 : vector<2x64xf32>
    %126 = arith.addf %124, %125 : vector<2x64xf32>
    %127 = math.tanh %126 : vector<2x64xf32>
    %128 = arith.mulf %123, %127 : vector<2x64xf32>
    %cst_35 = arith.constant dense<0.000000e+00> : vector<2x256xf32>
    %129 = tpu.matmul %89, %3, %cst_35 {dimension_numbers = #tpu.dot_dimension_numbers<[1], [0], [0], [1], [0, 0, 1, 1], [], []>} : vector<2x64xf32>, vector<64x256xf32>, vector<2x256xf32> -> vector<2x256xf32>
    %130 = vector.broadcast %6 : vector<1x256xf32> to vector<2x256xf32>
    %131 = arith.addf %129, %130 : vector<2x256xf32>
    %cst_36 = arith.constant dense<0.000000e+00> : vector<2x256xf32>
    %132 = tpu.matmul %109, %4, %cst_36 {dimension_numbers = #tpu.dot_dimension_numbers<[1], [0], [0], [1], [0, 0, 1, 1], [], []>} : vector<2x64xf32>, vector<64x256xf32>, vector<2x256xf32> -> vector<2x256xf32>
    %133 = arith.addf %131, %132 : vector<2x256xf32>
    %134 = arith.negf %133 : vector<2x256xf32>
    %135 = math.exp %134 : vector<2x256xf32>
    %cst_37 = arith.constant 1.000000e+00 : f32
    %136 = vector.broadcast %cst_37 : f32 to vector<2x256xf32>
    %137 = arith.addf %136, %135 : vector<2x256xf32>
    %138 = arith.divf %136, %137 : vector<2x256xf32>
    %139 = math.tanh %133 : vector<2x256xf32>
    %140 = vector.extract_strided_slice %138 {offsets = [0, 0], sizes = [2, 64], strides = [1, 1]} : vector<2x256xf32> to vector<2x64xf32>
    %141 = vector.extract_strided_slice %138 {offsets = [0, 64], sizes = [2, 64], strides = [1, 1]} : vector<2x256xf32> to vector<2x64xf32>
    %142 = vector.extract_strided_slice %139 {offsets = [0, 128], sizes = [2, 64], strides = [1, 1]} : vector<2x256xf32> to vector<2x64xf32>
    %143 = vector.extract_strided_slice %138 {offsets = [0, 192], sizes = [2, 64], strides = [1, 1]} : vector<2x256xf32> to vector<2x64xf32>
    %144 = arith.mulf %141, %107 : vector<2x64xf32>
    %145 = arith.mulf %140, %142 : vector<2x64xf32>
    %146 = arith.addf %144, %145 : vector<2x64xf32>
    %147 = math.tanh %146 : vector<2x64xf32>
    %148 = arith.mulf %143, %147 : vector<2x64xf32>
    %149 = vector.extract_strided_slice %22 {offsets = [0, 4, 0], sizes = [2, 1, 256], strides = [1, 1, 1]} : vector<2x8x256xf32> to vector<2x1x256xf32>
    %150 = vector.shape_cast %149 : vector<2x1x256xf32> to vector<2x256xf32>
    %cst_38 = arith.constant dense<0.000000e+00> : vector<2x256xf32>
    %151 = tpu.matmul %128, %2, %cst_38 {dimension_numbers = #tpu.dot_dimension_numbers<[1], [0], [0], [1], [0, 0, 1, 1], [], []>} : vector<2x64xf32>, vector<64x256xf32>, vector<2x256xf32> -> vector<2x256xf32>
    %152 = arith.addf %150, %151 : vector<2x256xf32>
    %153 = arith.negf %152 : vector<2x256xf32>
    %154 = math.exp %153 : vector<2x256xf32>
    %cst_39 = arith.constant 1.000000e+00 : f32
    %155 = vector.broadcast %cst_39 : f32 to vector<2x256xf32>
    %156 = arith.addf %155, %154 : vector<2x256xf32>
    %157 = arith.divf %155, %156 : vector<2x256xf32>
    %158 = math.tanh %152 : vector<2x256xf32>
    %159 = vector.extract_strided_slice %157 {offsets = [0, 0], sizes = [2, 64], strides = [1, 1]} : vector<2x256xf32> to vector<2x64xf32>
    %160 = vector.extract_strided_slice %157 {offsets = [0, 64], sizes = [2, 64], strides = [1, 1]} : vector<2x256xf32> to vector<2x64xf32>
    %161 = vector.extract_strided_slice %158 {offsets = [0, 128], sizes = [2, 64], strides = [1, 1]} : vector<2x256xf32> to vector<2x64xf32>
    %162 = vector.extract_strided_slice %157 {offsets = [0, 192], sizes = [2, 64], strides = [1, 1]} : vector<2x256xf32> to vector<2x64xf32>
    %163 = arith.mulf %160, %126 : vector<2x64xf32>
    %164 = arith.mulf %159, %161 : vector<2x64xf32>
    %165 = arith.addf %163, %164 : vector<2x64xf32>
    %166 = math.tanh %165 : vector<2x64xf32>
    %167 = arith.mulf %162, %166 : vector<2x64xf32>
    %cst_40 = arith.constant dense<0.000000e+00> : vector<2x256xf32>
    %168 = tpu.matmul %128, %3, %cst_40 {dimension_numbers = #tpu.dot_dimension_numbers<[1], [0], [0], [1], [0, 0, 1, 1], [], []>} : vector<2x64xf32>, vector<64x256xf32>, vector<2x256xf32> -> vector<2x256xf32>
    %169 = vector.broadcast %6 : vector<1x256xf32> to vector<2x256xf32>
    %170 = arith.addf %168, %169 : vector<2x256xf32>
    %cst_41 = arith.constant dense<0.000000e+00> : vector<2x256xf32>
    %171 = tpu.matmul %148, %4, %cst_41 {dimension_numbers = #tpu.dot_dimension_numbers<[1], [0], [0], [1], [0, 0, 1, 1], [], []>} : vector<2x64xf32>, vector<64x256xf32>, vector<2x256xf32> -> vector<2x256xf32>
    %172 = arith.addf %170, %171 : vector<2x256xf32>
    %173 = arith.negf %172 : vector<2x256xf32>
    %174 = math.exp %173 : vector<2x256xf32>
    %cst_42 = arith.constant 1.000000e+00 : f32
    %175 = vector.broadcast %cst_42 : f32 to vector<2x256xf32>
    %176 = arith.addf %175, %174 : vector<2x256xf32>
    %177 = arith.divf %175, %176 : vector<2x256xf32>
    %178 = math.tanh %172 : vector<2x256xf32>
    %179 = vector.extract_strided_slice %177 {offsets = [0, 0], sizes = [2, 64], strides = [1, 1]} : vector<2x256xf32> to vector<2x64xf32>
    %180 = vector.extract_strided_slice %177 {offsets = [0, 64], sizes = [2, 64], strides = [1, 1]} : vector<2x256xf32> to vector<2x64xf32>
    %181 = vector.extract_strided_slice %178 {offsets = [0, 128], sizes = [2, 64], strides = [1, 1]} : vector<2x256xf32> to vector<2x64xf32>
    %182 = vector.extract_strided_slice %177 {offsets = [0, 192], sizes = [2, 64], strides = [1, 1]} : vector<2x256xf32> to vector<2x64xf32>
    %183 = arith.mulf %180, %146 : vector<2x64xf32>
    %184 = arith.mulf %179, %181 : vector<2x64xf32>
    %185 = arith.addf %183, %184 : vector<2x64xf32>
    %186 = math.tanh %185 : vector<2x64xf32>
    %187 = arith.mulf %182, %186 : vector<2x64xf32>
    %188 = vector.extract_strided_slice %22 {offsets = [0, 5, 0], sizes = [2, 1, 256], strides = [1, 1, 1]} : vector<2x8x256xf32> to vector<2x1x256xf32>
    %189 = vector.shape_cast %188 : vector<2x1x256xf32> to vector<2x256xf32>
    %cst_43 = arith.constant dense<0.000000e+00> : vector<2x256xf32>
    %190 = tpu.matmul %167, %2, %cst_43 {dimension_numbers = #tpu.dot_dimension_numbers<[1], [0], [0], [1], [0, 0, 1, 1], [], []>} : vector<2x64xf32>, vector<64x256xf32>, vector<2x256xf32> -> vector<2x256xf32>
    %191 = arith.addf %189, %190 : vector<2x256xf32>
    %192 = arith.negf %191 : vector<2x256xf32>
    %193 = math.exp %192 : vector<2x256xf32>
    %cst_44 = arith.constant 1.000000e+00 : f32
    %194 = vector.broadcast %cst_44 : f32 to vector<2x256xf32>
    %195 = arith.addf %194, %193 : vector<2x256xf32>
    %196 = arith.divf %194, %195 : vector<2x256xf32>
    %197 = math.tanh %191 : vector<2x256xf32>
    %198 = vector.extract_strided_slice %196 {offsets = [0, 0], sizes = [2, 64], strides = [1, 1]} : vector<2x256xf32> to vector<2x64xf32>
    %199 = vector.extract_strided_slice %196 {offsets = [0, 64], sizes = [2, 64], strides = [1, 1]} : vector<2x256xf32> to vector<2x64xf32>
    %200 = vector.extract_strided_slice %197 {offsets = [0, 128], sizes = [2, 64], strides = [1, 1]} : vector<2x256xf32> to vector<2x64xf32>
    %201 = vector.extract_strided_slice %196 {offsets = [0, 192], sizes = [2, 64], strides = [1, 1]} : vector<2x256xf32> to vector<2x64xf32>
    %202 = arith.mulf %199, %165 : vector<2x64xf32>
    %203 = arith.mulf %198, %200 : vector<2x64xf32>
    %204 = arith.addf %202, %203 : vector<2x64xf32>
    %205 = math.tanh %204 : vector<2x64xf32>
    %206 = arith.mulf %201, %205 : vector<2x64xf32>
    %cst_45 = arith.constant dense<0.000000e+00> : vector<2x256xf32>
    %207 = tpu.matmul %167, %3, %cst_45 {dimension_numbers = #tpu.dot_dimension_numbers<[1], [0], [0], [1], [0, 0, 1, 1], [], []>} : vector<2x64xf32>, vector<64x256xf32>, vector<2x256xf32> -> vector<2x256xf32>
    %208 = vector.broadcast %6 : vector<1x256xf32> to vector<2x256xf32>
    %209 = arith.addf %207, %208 : vector<2x256xf32>
    %cst_46 = arith.constant dense<0.000000e+00> : vector<2x256xf32>
    %210 = tpu.matmul %187, %4, %cst_46 {dimension_numbers = #tpu.dot_dimension_numbers<[1], [0], [0], [1], [0, 0, 1, 1], [], []>} : vector<2x64xf32>, vector<64x256xf32>, vector<2x256xf32> -> vector<2x256xf32>
    %211 = arith.addf %209, %210 : vector<2x256xf32>
    %212 = arith.negf %211 : vector<2x256xf32>
    %213 = math.exp %212 : vector<2x256xf32>
    %cst_47 = arith.constant 1.000000e+00 : f32
    %214 = vector.broadcast %cst_47 : f32 to vector<2x256xf32>
    %215 = arith.addf %214, %213 : vector<2x256xf32>
    %216 = arith.divf %214, %215 : vector<2x256xf32>
    %217 = math.tanh %211 : vector<2x256xf32>
    %218 = vector.extract_strided_slice %216 {offsets = [0, 0], sizes = [2, 64], strides = [1, 1]} : vector<2x256xf32> to vector<2x64xf32>
    %219 = vector.extract_strided_slice %216 {offsets = [0, 64], sizes = [2, 64], strides = [1, 1]} : vector<2x256xf32> to vector<2x64xf32>
    %220 = vector.extract_strided_slice %217 {offsets = [0, 128], sizes = [2, 64], strides = [1, 1]} : vector<2x256xf32> to vector<2x64xf32>
    %221 = vector.extract_strided_slice %216 {offsets = [0, 192], sizes = [2, 64], strides = [1, 1]} : vector<2x256xf32> to vector<2x64xf32>
    %222 = arith.mulf %219, %185 : vector<2x64xf32>
    %223 = arith.mulf %218, %220 : vector<2x64xf32>
    %224 = arith.addf %222, %223 : vector<2x64xf32>
    %225 = math.tanh %224 : vector<2x64xf32>
    %226 = arith.mulf %221, %225 : vector<2x64xf32>
    %227 = vector.extract_strided_slice %22 {offsets = [0, 6, 0], sizes = [2, 1, 256], strides = [1, 1, 1]} : vector<2x8x256xf32> to vector<2x1x256xf32>
    %228 = vector.shape_cast %227 : vector<2x1x256xf32> to vector<2x256xf32>
    %cst_48 = arith.constant dense<0.000000e+00> : vector<2x256xf32>
    %229 = tpu.matmul %206, %2, %cst_48 {dimension_numbers = #tpu.dot_dimension_numbers<[1], [0], [0], [1], [0, 0, 1, 1], [], []>} : vector<2x64xf32>, vector<64x256xf32>, vector<2x256xf32> -> vector<2x256xf32>
    %230 = arith.addf %228, %229 : vector<2x256xf32>
    %231 = arith.negf %230 : vector<2x256xf32>
    %232 = math.exp %231 : vector<2x256xf32>
    %cst_49 = arith.constant 1.000000e+00 : f32
    %233 = vector.broadcast %cst_49 : f32 to vector<2x256xf32>
    %234 = arith.addf %233, %232 : vector<2x256xf32>
    %235 = arith.divf %233, %234 : vector<2x256xf32>
    %236 = math.tanh %230 : vector<2x256xf32>
    %237 = vector.extract_strided_slice %235 {offsets = [0, 0], sizes = [2, 64], strides = [1, 1]} : vector<2x256xf32> to vector<2x64xf32>
    %238 = vector.extract_strided_slice %235 {offsets = [0, 64], sizes = [2, 64], strides = [1, 1]} : vector<2x256xf32> to vector<2x64xf32>
    %239 = vector.extract_strided_slice %236 {offsets = [0, 128], sizes = [2, 64], strides = [1, 1]} : vector<2x256xf32> to vector<2x64xf32>
    %240 = vector.extract_strided_slice %235 {offsets = [0, 192], sizes = [2, 64], strides = [1, 1]} : vector<2x256xf32> to vector<2x64xf32>
    %241 = arith.mulf %238, %204 : vector<2x64xf32>
    %242 = arith.mulf %237, %239 : vector<2x64xf32>
    %243 = arith.addf %241, %242 : vector<2x64xf32>
    %244 = math.tanh %243 : vector<2x64xf32>
    %245 = arith.mulf %240, %244 : vector<2x64xf32>
    %cst_50 = arith.constant dense<0.000000e+00> : vector<2x256xf32>
    %246 = tpu.matmul %206, %3, %cst_50 {dimension_numbers = #tpu.dot_dimension_numbers<[1], [0], [0], [1], [0, 0, 1, 1], [], []>} : vector<2x64xf32>, vector<64x256xf32>, vector<2x256xf32> -> vector<2x256xf32>
    %247 = vector.broadcast %6 : vector<1x256xf32> to vector<2x256xf32>
    %248 = arith.addf %246, %247 : vector<2x256xf32>
    %cst_51 = arith.constant dense<0.000000e+00> : vector<2x256xf32>
    %249 = tpu.matmul %226, %4, %cst_51 {dimension_numbers = #tpu.dot_dimension_numbers<[1], [0], [0], [1], [0, 0, 1, 1], [], []>} : vector<2x64xf32>, vector<64x256xf32>, vector<2x256xf32> -> vector<2x256xf32>
    %250 = arith.addf %248, %249 : vector<2x256xf32>
    %251 = arith.negf %250 : vector<2x256xf32>
    %252 = math.exp %251 : vector<2x256xf32>
    %cst_52 = arith.constant 1.000000e+00 : f32
    %253 = vector.broadcast %cst_52 : f32 to vector<2x256xf32>
    %254 = arith.addf %253, %252 : vector<2x256xf32>
    %255 = arith.divf %253, %254 : vector<2x256xf32>
    %256 = math.tanh %250 : vector<2x256xf32>
    %257 = vector.extract_strided_slice %255 {offsets = [0, 0], sizes = [2, 64], strides = [1, 1]} : vector<2x256xf32> to vector<2x64xf32>
    %258 = vector.extract_strided_slice %255 {offsets = [0, 64], sizes = [2, 64], strides = [1, 1]} : vector<2x256xf32> to vector<2x64xf32>
    %259 = vector.extract_strided_slice %256 {offsets = [0, 128], sizes = [2, 64], strides = [1, 1]} : vector<2x256xf32> to vector<2x64xf32>
    %260 = vector.extract_strided_slice %255 {offsets = [0, 192], sizes = [2, 64], strides = [1, 1]} : vector<2x256xf32> to vector<2x64xf32>
    %261 = arith.mulf %258, %224 : vector<2x64xf32>
    %262 = arith.mulf %257, %259 : vector<2x64xf32>
    %263 = arith.addf %261, %262 : vector<2x64xf32>
    %264 = math.tanh %263 : vector<2x64xf32>
    %265 = arith.mulf %260, %264 : vector<2x64xf32>
    %266 = vector.extract_strided_slice %22 {offsets = [0, 7, 0], sizes = [2, 1, 256], strides = [1, 1, 1]} : vector<2x8x256xf32> to vector<2x1x256xf32>
    %267 = vector.shape_cast %266 : vector<2x1x256xf32> to vector<2x256xf32>
    %cst_53 = arith.constant dense<0.000000e+00> : vector<2x256xf32>
    %268 = tpu.matmul %245, %2, %cst_53 {dimension_numbers = #tpu.dot_dimension_numbers<[1], [0], [0], [1], [0, 0, 1, 1], [], []>} : vector<2x64xf32>, vector<64x256xf32>, vector<2x256xf32> -> vector<2x256xf32>
    %269 = arith.addf %267, %268 : vector<2x256xf32>
    %270 = arith.negf %269 : vector<2x256xf32>
    %271 = math.exp %270 : vector<2x256xf32>
    %cst_54 = arith.constant 1.000000e+00 : f32
    %272 = vector.broadcast %cst_54 : f32 to vector<2x256xf32>
    %273 = arith.addf %272, %271 : vector<2x256xf32>
    %274 = arith.divf %272, %273 : vector<2x256xf32>
    %275 = math.tanh %269 : vector<2x256xf32>
    %276 = vector.extract_strided_slice %274 {offsets = [0, 0], sizes = [2, 64], strides = [1, 1]} : vector<2x256xf32> to vector<2x64xf32>
    %277 = vector.extract_strided_slice %274 {offsets = [0, 64], sizes = [2, 64], strides = [1, 1]} : vector<2x256xf32> to vector<2x64xf32>
    %278 = vector.extract_strided_slice %275 {offsets = [0, 128], sizes = [2, 64], strides = [1, 1]} : vector<2x256xf32> to vector<2x64xf32>
    %279 = vector.extract_strided_slice %274 {offsets = [0, 192], sizes = [2, 64], strides = [1, 1]} : vector<2x256xf32> to vector<2x64xf32>
    %280 = arith.mulf %277, %243 : vector<2x64xf32>
    %281 = arith.mulf %276, %278 : vector<2x64xf32>
    %282 = arith.addf %280, %281 : vector<2x64xf32>
    %283 = math.tanh %282 : vector<2x64xf32>
    %284 = arith.mulf %279, %283 : vector<2x64xf32>
    %cst_55 = arith.constant dense<0.000000e+00> : vector<2x256xf32>
    %285 = tpu.matmul %245, %3, %cst_55 {dimension_numbers = #tpu.dot_dimension_numbers<[1], [0], [0], [1], [0, 0, 1, 1], [], []>} : vector<2x64xf32>, vector<64x256xf32>, vector<2x256xf32> -> vector<2x256xf32>
    %286 = vector.broadcast %6 : vector<1x256xf32> to vector<2x256xf32>
    %287 = arith.addf %285, %286 : vector<2x256xf32>
    %cst_56 = arith.constant dense<0.000000e+00> : vector<2x256xf32>
    %288 = tpu.matmul %265, %4, %cst_56 {dimension_numbers = #tpu.dot_dimension_numbers<[1], [0], [0], [1], [0, 0, 1, 1], [], []>} : vector<2x64xf32>, vector<64x256xf32>, vector<2x256xf32> -> vector<2x256xf32>
    %289 = arith.addf %287, %288 : vector<2x256xf32>
    %290 = arith.negf %289 : vector<2x256xf32>
    %291 = math.exp %290 : vector<2x256xf32>
    %cst_57 = arith.constant 1.000000e+00 : f32
    %292 = vector.broadcast %cst_57 : f32 to vector<2x256xf32>
    %293 = arith.addf %292, %291 : vector<2x256xf32>
    %294 = arith.divf %292, %293 : vector<2x256xf32>
    %295 = math.tanh %289 : vector<2x256xf32>
    %296 = vector.extract_strided_slice %294 {offsets = [0, 0], sizes = [2, 64], strides = [1, 1]} : vector<2x256xf32> to vector<2x64xf32>
    %297 = vector.extract_strided_slice %294 {offsets = [0, 64], sizes = [2, 64], strides = [1, 1]} : vector<2x256xf32> to vector<2x64xf32>
    %298 = vector.extract_strided_slice %295 {offsets = [0, 128], sizes = [2, 64], strides = [1, 1]} : vector<2x256xf32> to vector<2x64xf32>
    %299 = vector.extract_strided_slice %294 {offsets = [0, 192], sizes = [2, 64], strides = [1, 1]} : vector<2x256xf32> to vector<2x64xf32>
    %300 = arith.mulf %297, %263 : vector<2x64xf32>
    %301 = arith.mulf %296, %298 : vector<2x64xf32>
    %302 = arith.addf %300, %301 : vector<2x64xf32>
    %303 = math.tanh %302 : vector<2x64xf32>
    %304 = arith.mulf %299, %303 : vector<2x64xf32>
    %cst_58 = arith.constant dense<0.000000e+00> : vector<2x256xf32>
    %305 = tpu.matmul %284, %3, %cst_58 {dimension_numbers = #tpu.dot_dimension_numbers<[1], [0], [0], [1], [0, 0, 1, 1], [], []>} : vector<2x64xf32>, vector<64x256xf32>, vector<2x256xf32> -> vector<2x256xf32>
    %306 = vector.broadcast %6 : vector<1x256xf32> to vector<2x256xf32>
    %307 = arith.addf %305, %306 : vector<2x256xf32>
    %cst_59 = arith.constant dense<0.000000e+00> : vector<2x256xf32>
    %308 = tpu.matmul %304, %4, %cst_59 {dimension_numbers = #tpu.dot_dimension_numbers<[1], [0], [0], [1], [0, 0, 1, 1], [], []>} : vector<2x64xf32>, vector<64x256xf32>, vector<2x256xf32> -> vector<2x256xf32>
    %309 = arith.addf %307, %308 : vector<2x256xf32>
    %310 = arith.negf %309 : vector<2x256xf32>
    %311 = math.exp %310 : vector<2x256xf32>
    %cst_60 = arith.constant 1.000000e+00 : f32
    %312 = vector.broadcast %cst_60 : f32 to vector<2x256xf32>
    %313 = arith.addf %312, %311 : vector<2x256xf32>
    %314 = arith.divf %312, %313 : vector<2x256xf32>
    %315 = math.tanh %309 : vector<2x256xf32>
    %316 = vector.extract_strided_slice %314 {offsets = [0, 0], sizes = [2, 64], strides = [1, 1]} : vector<2x256xf32> to vector<2x64xf32>
    %317 = vector.extract_strided_slice %314 {offsets = [0, 64], sizes = [2, 64], strides = [1, 1]} : vector<2x256xf32> to vector<2x64xf32>
    %318 = vector.extract_strided_slice %315 {offsets = [0, 128], sizes = [2, 64], strides = [1, 1]} : vector<2x256xf32> to vector<2x64xf32>
    %319 = vector.extract_strided_slice %314 {offsets = [0, 192], sizes = [2, 64], strides = [1, 1]} : vector<2x256xf32> to vector<2x64xf32>
    %320 = arith.mulf %317, %302 : vector<2x64xf32>
    %321 = arith.mulf %316, %318 : vector<2x64xf32>
    %322 = arith.addf %320, %321 : vector<2x64xf32>
    %323 = math.tanh %322 : vector<2x64xf32>
    %324 = arith.mulf %319, %323 : vector<2x64xf32>
    %cst_61 = arith.constant dense<0.000000e+00> : vector<2x32xf32>
    %325 = tpu.matmul %284, %7, %cst_61 {dimension_numbers = #tpu.dot_dimension_numbers<[1], [0], [0], [1], [0, 0, 1, 1], [], []>} : vector<2x64xf32>, vector<64x32xf32>, vector<2x32xf32> -> vector<2x32xf32>
    %cst_62 = arith.constant dense<0.000000e+00> : vector<2x32xf32>
    %326 = tpu.matmul %324, %8, %cst_62 {dimension_numbers = #tpu.dot_dimension_numbers<[1], [0], [0], [1], [0, 0, 1, 1], [], []>} : vector<2x64xf32>, vector<64x32xf32>, vector<2x32xf32> -> vector<2x32xf32>
    %327 = arith.addf %325, %326 : vector<2x32xf32>
    %c0_63 = arith.constant 0 : index
    %c0_64 = arith.constant 0 : index
    %328 = vector.load %arg2[%c0_63, %c0_64] : memref<2x8xf32, #tpu.memory_space<vmem>>, vector<2x8xf32>
    %cst_65 = arith.constant dense<0.000000e+00> : vector<2x32xf32>
    %329 = tpu.matmul %328, %9, %cst_65 {dimension_numbers = #tpu.dot_dimension_numbers<[1], [0], [0], [1], [0, 0, 1, 1], [], []>} : vector<2x8xf32>, vector<8x32xf32>, vector<2x32xf32> -> vector<2x32xf32>
    %330 = arith.addf %327, %329 : vector<2x32xf32>
    %331 = vector.broadcast %10 : vector<1x32xf32> to vector<2x32xf32>
    %332 = arith.addf %330, %331 : vector<2x32xf32>
    %cst_66 = arith.constant 0.000000e+00 : f32
    %333 = vector.broadcast %cst_66 : f32 to vector<2x32xf32>
    %334 = arith.maximumf %332, %333 : vector<2x32xf32>
    %cst_67 = arith.constant dense<0.000000e+00> : vector<2x4xf32>
    %335 = tpu.matmul %334, %11, %cst_67 {dimension_numbers = #tpu.dot_dimension_numbers<[1], [0], [0], [1], [0, 0, 1, 1], [], []>} : vector<2x32xf32>, vector<32x4xf32>, vector<2x4xf32> -> vector<2x4xf32>
    %336 = vector.broadcast %12 : vector<1x4xf32> to vector<2x4xf32>
    %337 = arith.addf %335, %336 : vector<2x4xf32>
    %cst_68 = arith.constant dense<0xFF800000> : vector<2xf32>
    %338 = vector.multi_reduction <maximumf>, %337, %cst_68 [1] : vector<2x4xf32> to vector<2xf32>
    %339 = vector.shape_cast %338 : vector<2xf32> to vector<2x1xf32>
    %340 = vector.broadcast %339 : vector<2x1xf32> to vector<2x4xf32>
    %341 = arith.subf %337, %340 : vector<2x4xf32>
    %342 = math.exp %341 : vector<2x4xf32>
    %cst_69 = arith.constant dense<0.000000e+00> : vector<2xf32>
    %343 = vector.multi_reduction <add>, %342, %cst_69 [1] : vector<2x4xf32> to vector<2xf32>
    %344 = vector.shape_cast %343 : vector<2xf32> to vector<2x1xf32>
    %345 = vector.broadcast %344 : vector<2x1xf32> to vector<2x4xf32>
    %346 = arith.divf %342, %345 : vector<2x4xf32>
    %c0_70 = arith.constant 0 : index
    %c0_71 = arith.constant 0 : index
    %347 = vector.load %arg6[%c0_70, %c0_71] : memref<2x4xf32, #tpu.memory_space<vmem>>, vector<2x4xf32>
    tpu.vector_store %arg6[%c0_70, %c0_71], %346 {strides = array<i32>} : memref<2x4xf32, #tpu.memory_space<vmem>>, vector<2x4xf32>,
    return
  }
}

</mosaic_0001>

<llo_original>
// kernel: tpu_custom_call.1
$region0: #{tpu_custom_call.1}
  #allocation0 [shape = 'u32[]', space=smem, size = 0x4, offset = 0x4, fixed_abs, tag = 'smem constant byte address 0x4 - core index']
  #allocation1 [shape = 'u32[144,128]{1,0:T(1,128)}', space=vmem, size = 0x12000, scoped, tag = 'internal scratch']
  %s0 = inlined_call_operand.vmem [shape: f32[2,8,32], index: 0, kind: input, shape index: {}]
  %s1 = inlined_call_operand.vmem [shape: f32[2,8,16], index: 1, kind: input, shape index: {}]
  %s2 = inlined_call_operand.vmem [shape: f32[2,8], index: 2, kind: input, shape index: {}]
  %s3 = inlined_call_operand.hbm [shape: f32[256,256], index: 3, kind: input, shape index: {}]
  %s4 = inlined_call_operand.vmem [shape: f32[144,32], index: 4, kind: input, shape index: {}]
  %s5 = inlined_call_operand.vmem [shape: f32[40,4], index: 5, kind: input, shape index: {}]
  %s6 = inlined_call_operand.hbm [shape: f32[2,4], index: 6, kind: output, shape index: {}]
  %s7 = sld [smem:[#allocation0]]
  $region38: #{tpu_custom_call.1} parent=0
    _
  %s9 = ssub.s32 1, %s7
  %s10 = scalar_select 0, %s9, %s7
  $region1: #{tpu_custom_call.1} parent=0
    #allocation2 [shape = 'u8[262144]{0}', space=vmem, size = 0x40000, scoped, tag = 'input window, operand 3, single buffered']
    #allocation3 [shape = 's32[1]{0}', space=sflag, size = 0x4, scoped, tag = 'scoped memory for tpu_custom_call.1']
    #allocation4 [shape = 's32[1]{0}', space=sflag, size = 0x4, scoped, tag = 'scoped memory for tpu_custom_call.1']
    #allocation5 [shape = 'u8[1024]{0}', space=vmem, size = 0x400, scoped, tag = 'output window, operand 0, single buffered']
    %11 = vsyncpa [#allocation3], 0
    %12 = vsyncpa [#allocation4], 0
    // Predicated region
    $region2: #{tpu_custom_call.1} parent=1 // pred_check
      _
    $region3: #{tpu_custom_call.1} parent=1 // pred_check_branch
      %14 = sbr.rel (0) target = $region5
    $region4: #{tpu_custom_call.1} parent=1 // pred_region
      _
    $region5: #{tpu_custom_call.1} parent=1 // pred_fallthru
      _
    // Predicated region
    $region6: #{tpu_custom_call.1} parent=1 // pred_check
      _
    $region7: #{tpu_custom_call.1} parent=1 // pred_check_branch
      %16 = sbr.rel (0) target = $region9
    $region8: #{tpu_custom_call.1} parent=1 // pred_region
      _
    $region9: #{tpu_custom_call.1} parent=1 // pred_fallthru
      _
    // Predicated region
    $region10: #{tpu_custom_call.1} parent=1 // pred_check
      _
    $region11: #{tpu_custom_call.1} parent=1 // pred_check_branch
      %18 = sbr.rel (0) target = $region13
    $region12: #{tpu_custom_call.1} parent=1 // pred_region
      _
    $region13: #{tpu_custom_call.1} parent=1 // pred_fallthru
      _
    // Predicated region
    $region14: #{tpu_custom_call.1} parent=1 // pred_check
      _
    $region15: #{tpu_custom_call.1} parent=1 // pred_check_branch
      %20 = sbr.rel (0) target = $region17
    $region16: #{tpu_custom_call.1} parent=1 // pred_region
      %s22 = ssub.s32 8192, 8192
      %23 = vsyncadd [#allocation3], %s22
      %s24 = sshll.u32 [#allocation2], 4
      %s25 = int_to_ptr.vmem [resolvable:$true] %s24
      %30 = dma.hbm_to_vmem [thread:$0]  %s3, 8192, %s25, [#allocation3], 256, 256, 16
    $region17: #{tpu_custom_call.1} parent=1 // pred_fallthru
      _
    // Predicated region
    $region18: #{tpu_custom_call.1} parent=1 // pred_check
      _
    $region19: #{tpu_custom_call.1} parent=1 // pred_check_branch
      %32 = sbr.rel (0) target = $region21
    $region20: #{tpu_custom_call.1} parent=1 // pred_region
      _
    $region21: #{tpu_custom_call.1} parent=1 // pred_fallthru
      _
    // Predicated region
    $region22: #{tpu_custom_call.1} parent=1 // pred_check
      _
    $region23: #{tpu_custom_call.1} parent=1 // pred_check_branch
      %34 = sbr.rel (0) target = $region25
    $region24: #{tpu_custom_call.1} parent=1 // pred_region
      _
    $region25: #{tpu_custom_call.1} parent=1 // pred_fallthru
      _
    // Predicated region
    $region26: #{tpu_custom_call.1} parent=1 // pred_check
      _
    $region27: #{tpu_custom_call.1} parent=1 // pred_check_branch
      %36 = sbr.rel (0) target = $region29
    $region28: #{tpu_custom_call.1} parent=1 // pred_region
      %37 = dma.done [#allocation3], 8192
    $region29: #{tpu_custom_call.1} parent=1 // pred_fallthru
      _
    %v38 = vld [vmem:[#allocation2] sm:$0xff]
    %v39 = vld [vmem:[#allocation2 + $0x8] sm:$0xff]
    %v40 = vld [vmem:[#allocation2 + $0x10] sm:$0xff]
    %v41 = vld [vmem:[#allocation2 + $0x18] sm:$0xff]
    %v42 = vld [vmem:[#allocation2 + $0x20] sm:$0xff]
    %v43 = vld [vmem:[#allocation2 + $0x28] sm:$0xff]
    %v44 = vld [vmem:[#allocation2 + $0x30] sm:$0xff]
    %v45 = vld [vmem:[#allocation2 + $0x38] sm:$0xff]
    %v46 = vld [vmem:[#allocation2 + $0x40] sm:$0xff]
    %v47 = vld [vmem:[#allocation2 + $0x48] sm:$0xff]
    %v48 = vld [vmem:[#allocation2 + $0x50] sm:$0xff]
    %v49 = vld [vmem:[#allocation2 + $0x58] sm:$0xff]
    %v50 = vld [vmem:[#allocation2 + $0x60] sm:$0xff]
    %v51 = vld [vmem:[#allocation2 + $0x68] sm:$0xff]
    %v52 = vld [vmem:[#allocation2 + $0x70] sm:$0xff]
    %v53 = vld [vmem:[#allocation2 + $0x78] sm:$0xff]
    %v54 = vld [vmem:[#allocation2 + $0x80] sm:$0xff]
    %v55 = vld [vmem:[#allocation2 + $0x88] sm:$0xff]
    %v56 = vld [vmem:[#allocation2 + $0x90] sm:$0xff]
    %v57 = vld [vmem:[#allocation2 + $0x98] sm:$0xff]
    %v58 = vld [vmem:[#allocation2 + $0xa0] sm:$0xff]
    %v59 = vld [vmem:[#allocation2 + $0xa8] sm:$0xff]
    %v60 = vld [vmem:[#allocation2 + $0xb0] sm:$0xff]
    %v61 = vld [vmem:[#allocation2 + $0xb8] sm:$0xff]
    %v62 = vld [vmem:[#allocation2 + $0xc0] sm:$0xff]
    %v63 = vld [vmem:[#allocation2 + $0xc8] sm:$0xff]
    %v64 = vld [vmem:[#allocation2 + $0xd0] sm:$0xff]
    %v65 = vld [vmem:[#allocation2 + $0xd8] sm:$0xff]
    %v66 = vld [vmem:[#allocation2 + $0xe0] sm:$0xff]
    %v67 = vld [vmem:[#allocation2 + $0xe8] sm:$0xff]
    %v68 = vld [vmem:[#allocation2 + $0xf0] sm:$0xff]
    %v69 = vld [vmem:[#allocation2 + $0xf8] sm:$0xff]
    %v70 = vld [vmem:[#allocation2 + $0x100] sm:$0xff]
    %v71 = vld [vmem:[#allocation2 + $0x108] sm:$0xff]
    %v72 = vld [vmem:[#allocation2 + $0x110] sm:$0xff]
    %v73 = vld [vmem:[#allocation2 + $0x118] sm:$0xff]
    %v74 = vld [vmem:[#allocation2 + $0x120] sm:$0xff]
    %v75 = vld [vmem:[#allocation2 + $0x128] sm:$0xff]
    %v76 = vld [vmem:[#allocation2 + $0x130] sm:$0xff]
    %v77 = vld [vmem:[#allocation2 + $0x138] sm:$0xff]
    %v78 = vld [vmem:[#allocation2 + $0x140] sm:$0xff]
    %v79 = vld [vmem:[#allocation2 + $0x148] sm:$0xff]
    %v80 = vld [vmem:[#allocation2 + $0x150] sm:$0xff]
    %v81 = vld [vmem:[#allocation2 + $0x158] sm:$0xff]
    %v82 = vld [vmem:[#allocation2 + $0x160] sm:$0xff]
    %v83 = vld [vmem:[#allocation2 + $0x168] sm:$0xff]
    %v84 = vld [vmem:[#allocation2 + $0x170] sm:$0xff]
    %v85 = vld [vmem:[#allocation2 + $0x178] sm:$0xff]
    %v86 = vld [vmem:[#allocation2 + $0x180] sm:$0xff]
    %v87 = vld [vmem:[#allocation2 + $0x188] sm:$0xff]
    %v88 = vld [vmem:[#allocation2 + $0x190] sm:$0xff]
    %v89 = vld [vmem:[#allocation2 + $0x198] sm:$0xff]
    %v90 = vld [vmem:[#allocation2 + $0x1a0] sm:$0xff]
    %v91 = vld [vmem:[#allocation2 + $0x1a8] sm:$0xff]
    %v92 = vld [vmem:[#allocation2 + $0x1b0] sm:$0xff]
    %v93 = vld [vmem:[#allocation2 + $0x1b8] sm:$0xff]
    %v94 = vld [vmem:[#allocation2 + $0x1c0] sm:$0xff]
    %v95 = vld [vmem:[#allocation2 + $0x1c8] sm:$0xff]
    %v96 = vld [vmem:[#allocation2 + $0x1d0] sm:$0xff]
    %v97 = vld [vmem:[#allocation2 + $0x1d8] sm:$0xff]
    %s98 = scalar_lea.vmem [#allocation2], 480
    %v99 = vld [vmem:[%s98] ss:$8 sm:$0x3]
    %s100 = scalar_lea.vmem [#allocation2], 496
    %v101 = vld [vmem:[%s100] ss:$8 sm:$0x3]
    %v102 = vld [vmem:[%s4] sm:$0xff]
    %v103 = vld [vmem:[%s4 + $0x8] sm:$0xff]
    %v104 = vld [vmem:[%s4 + $0x10] sm:$0xff]
    %v105 = vld [vmem:[%s4 + $0x18] sm:$0xff]
    %v106 = vld [vmem:[%s4 + $0x20] sm:$0xff]
    %v107 = vld [vmem:[%s4 + $0x28] sm:$0xff]
    %v108 = vld [vmem:[%s4 + $0x30] sm:$0xff]
    %v109 = vld [vmem:[%s4 + $0x38] sm:$0xff]
    %v110 = vld [vmem:[%s4 + $0x40] sm:$0xff]
    %v111 = vld [vmem:[%s4 + $0x48] sm:$0xff]
    %v112 = vld [vmem:[%s4 + $0x50] sm:$0xff]
    %v113 = vld [vmem:[%s4 + $0x58] sm:$0xff]
    %v114 = vld [vmem:[%s4 + $0x60] sm:$0xff]
    %v115 = vld [vmem:[%s4 + $0x68] sm:$0xff]
    %v116 = vld [vmem:[%s4 + $0x70] sm:$0xff]
    %v117 = vld [vmem:[%s4 + $0x78] sm:$0xff]
    %v118 = vld [vmem:[%s4 + $0x80] sm:$0xff]
    %v119 = vld [vmem:[%s4 + $0x88] sm:$0x1]
    %v120 = vld [vmem:[%s5] sm:$0xff]
    %v121 = vld [vmem:[%s5 + $0x8] sm:$0xff]
    %v122 = vld [vmem:[%s5 + $0x10] sm:$0xff]
    %v123 = vld [vmem:[%s5 + $0x18] sm:$0xff]
    %v124 = vld [vmem:[%s5 + $0x20] sm:$0x1]
    %v125 = vld [vmem:[%s0] sm:$0xff]
    %v126 = vld [vmem:[%s0 + $0x8] sm:$0xff]
    %v127 = vld [vmem:[%s1] sm:$0xff]
    %v128 = vld [vmem:[%s1 + $0x8] sm:$0xff]
    %vm129 = vcmask 130048
    %v131 = vsel %vm129, %v127, 0
    %v134 = vsel %vm129, %v128, 0
    %136 = vmatprep.subr.mxu0 0.0
    %137 = vmatpush1.msra.mxu0 0.0
    %138 = vmatprep.subr.mxu0 0.0
    %139 = vmatpush1.msra.mxu0 0.0
    %140 = vmatprep.subr.mxu0 0.0
    %141 = vmatpush1.msra.mxu0 0.0
    %142 = vmatprep.subr.mxu0 0.0
    %143 = vmatpush1.msra.mxu0 0.0
    %144 = vmatprep.subr.mxu0 0.0
    %145 = vmatpush1.msra.mxu0 0.0
    %146 = vmatprep.subr.mxu0 0.0
    %147 = vmatpush1.msra.mxu0 0.0
    %148 = vmatprep.subr.mxu0 0.0
    %149 = vmatpush1.msra.mxu0 0.0
    %150 = vmatprep.subr.mxu0 0.0
    %151 = vmatpush1.msra.mxu0 0.0
    %152 = vmatprep.subr.mxu0 0.0
    %153 = vmatpush1.msra.mxu0 0.0
    %154 = vmatprep.subr.mxu0 0.0
    %155 = vmatpush1.msra.mxu0 0.0
    %156 = vmatprep.subr.mxu0 0.0
    %157 = vmatpush1.msra.mxu0 0.0
    %158 = vmatprep.subr.mxu0 0.0
    %159 = vmatpush1.msra.mxu0 0.0
    %160 = vmatprep.subr.mxu0 0.0
    %161 = vmatpush1.msra.mxu0 0.0
    %162 = vmatprep.subr.mxu0 0.0
    %163 = vmatpush1.msra.mxu0 0.0
    %164 = vmatprep.subr.mxu0 %v49
    %165 = vmatpush1.msra.mxu0 %v48
    %166 = vmatprep.subr.mxu0 %v47
    %167 = vmatpush1.msra.mxu0 %v46
    %168 = vmatprep.subr.mxu0 0.0
    %169 = vmatpush2.msra.mxu0 0.0
    %170 = vmatprep.subr.mxu0 0.0
    %171 = vmatpush2.msra.mxu0 0.0
    %172 = vmatprep.subr.mxu0 0.0
    %173 = vmatpush2.msra.mxu0 0.0
    %174 = vmatprep.subr.mxu0 0.0
    %175 = vmatpush2.msra.mxu0 0.0
    %176 = vmatprep.subr.mxu0 0.0
    %177 = vmatpush2.msra.mxu0 0.0
    %178 = vmatprep.subr.mxu0 0.0
    %179 = vmatpush2.msra.mxu0 0.0
    %180 = vmatprep.subr.mxu0 0.0
    %181 = vmatpush2.msra.mxu0 0.0
    %182 = vmatprep.subr.mxu0 0.0
    %183 = vmatpush2.msra.mxu0 0.0
    %184 = vmatprep.subr.mxu0 0.0
    %185 = vmatpush2.msra.mxu0 0.0
    %186 = vmatprep.subr.mxu0 0.0
    %187 = vmatpush2.msra.mxu0 0.0
    %188 = vmatprep.subr.mxu0 0.0
    %189 = vmatpush2.msra.mxu0 0.0
    %190 = vmatprep.subr.mxu0 0.0
    %191 = vmatpush2.msra.mxu0 0.0
    %192 = vmatprep.subr.mxu0 0.0
    %193 = vmatpush2.msra.mxu0 0.0
    %194 = vmatprep.subr.mxu0 0.0
    %195 = vmatpush2.msra.mxu0 0.0
    %196 = vmatprep.subr.mxu0 0.0
    %197 = vmatpush2.msra.mxu0 0.0
    %198 = vmatprep.subr.mxu0 0.0
    %199 = vmatpush2.msra.mxu0 0.0
    %200 = vmatprep.mubr.f32.mxu0 0.0
    %201 = vmatmul.mubr.f32.gmra.mxu0 %v131
    %v202 = vpop.f32.mrf.mxu0
    %v203 = vadd.f32 0.0, %v202
    %v204 = vpop.f32.mrf.mxu0
    %v205 = vadd.f32 0.0, %v204
    %206 = vmatprep.mubr.f32.mxu0 0.0
    %207 = vmatmul.mubr.f32.gmra.mxu0 %v134
    %v208 = vpop.f32.mrf.mxu0
    %v209 = vadd.f32 0.0, %v208
    %v210 = vpop.f32.mrf.mxu0
    %v211 = vadd.f32 0.0, %v210
    %212 = vdwg.mxu0
    %vm213 = vcmask 261120
    %v215 = vsel %vm213, %v125, 0
    %v218 = vsel %vm213, %v126, 0
    %220 = vmatprep.subr.mxu0 0.0
    %221 = vmatpush1.msra.mxu0 0.0
    %222 = vmatprep.subr.mxu0 0.0
    %223 = vmatpush1.msra.mxu0 0.0
    %224 = vmatprep.subr.mxu0 0.0
    %225 = vmatpush1.msra.mxu0 0.0
    %226 = vmatprep.subr.mxu0 0.0
    %227 = vmatpush1.msra.mxu0 0.0
    %228 = vmatprep.subr.mxu0 0.0
    %229 = vmatpush1.msra.mxu0 0.0
    %230 = vmatprep.subr.mxu0 0.0
    %231 = vmatpush1.msra.mxu0 0.0
    %232 = vmatprep.subr.mxu0 0.0
    %233 = vmatpush1.msra.mxu0 0.0
    %234 = vmatprep.subr.mxu0 0.0
    %235 = vmatpush1.msra.mxu0 0.0
    %236 = vmatprep.subr.mxu0 0.0
    %237 = vmatpush1.msra.mxu0 0.0
    %238 = vmatprep.subr.mxu0 0.0
    %239 = vmatpush1.msra.mxu0 0.0
    %240 = vmatprep.subr.mxu0 0.0
    %241 = vmatpush1.msra.mxu0 0.0
    %242 = vmatprep.subr.mxu0 0.0
    %243 = vmatpush1.msra.mxu0 0.0
    %244 = vmatprep.subr.mxu0 %v45
    %245 = vmatpush1.msra.mxu0 %v44
    %246 = vmatprep.subr.mxu0 %v43
    %247 = vmatpush1.msra.mxu0 %v42
    %248 = vmatprep.subr.mxu0 %v41
    %249 = vmatpush1.msra.mxu0 %v40
    %250 = vmatprep.subr.mxu0 %v39
    %251 = vmatpush1.msra.mxu0 %v38
    %252 = vmatprep.subr.mxu0 0.0
    %253 = vmatpush2.msra.mxu0 0.0
    %254 = vmatprep.subr.mxu0 0.0
    %255 = vmatpush2.msra.mxu0 0.0
    %256 = vmatprep.subr.mxu0 0.0
    %257 = vmatpush2.msra.mxu0 0.0
    %258 = vmatprep.subr.mxu0 0.0
    %259 = vmatpush2.msra.mxu0 0.0
    %260 = vmatprep.subr.mxu0 0.0
    %261 = vmatpush2.msra.mxu0 0.0
    %262 = vmatprep.subr.mxu0 0.0
    %263 = vmatpush2.msra.mxu0 0.0
    %264 = vmatprep.subr.mxu0 0.0
    %265 = vmatpush2.msra.mxu0 0.0
    %266 = vmatprep.subr.mxu0 0.0
    %267 = vmatpush2.msra.mxu0 0.0
    %268 = vmatprep.subr.mxu0 0.0
    %269 = vmatpush2.msra.mxu0 0.0
    %270 = vmatprep.subr.mxu0 0.0
    %271 = vmatpush2.msra.mxu0 0.0
    %272 = vmatprep.subr.mxu0 0.0
    %273 = vmatpush2.msra.mxu0 0.0
    %274 = vmatprep.subr.mxu0 0.0
    %275 = vmatpush2.msra.mxu0 0.0
    %276 = vmatprep.subr.mxu0 0.0
    %277 = vmatpush2.msra.mxu0 0.0
    %278 = vmatprep.subr.mxu0 0.0
    %279 = vmatpush2.msra.mxu0 0.0
    %280 = vmatprep.subr.mxu0 0.0
    %281 = vmatpush2.msra.mxu0 0.0
    %282 = vmatprep.subr.mxu0 0.0
    %283 = vmatpush2.msra.mxu0 0.0
    %284 = vmatprep.mubr.f32.mxu0 0.0
    %285 = vmatmul.mubr.f32.gmra.mxu0 %v215
    %v286 = vpop.f32.mrf.mxu0
    %v287 = vadd.f32 %v203, %v286
    %v288 = vpop.f32.mrf.mxu0
    %v289 = vadd.f32 %v205, %v288
    %290 = vmatprep.mubr.f32.mxu0 0.0
    %291 = vmatmul.mubr.f32.gmra.mxu0 %v218
    %v292 = vpop.f32.mrf.mxu0
    %v293 = vadd.f32 %v209, %v292
    %v294 = vpop.f32.mrf.mxu0
    %v295 = vadd.f32 %v211, %v294
    %296 = vdwg.mxu0
    %v298 = vlaneseq
    %v299 = vshrl.u32 %v298, 7
    %v300 = vsub.s32 0, %v299
    %v301 = vrot.slane %v99, %v300
    %v302 = vlaneseq
    %v303 = vshrl.u32 %v302, 7
    %v304 = vsub.s32 1, %v303
    %v305 = vrot.slane %v99, %v304
    %v308 = vadd.f32 %v287, %v301
    %v309 = vadd.f32 %v289, %v305
    %v310 = vadd.f32 %v293, %v301
    %v311 = vadd.f32 %v295, %v305
    %v312 = vxor.u32 %v308, 2147483648
    %v313 = vxor.u32 %v309, 2147483648
    %v314 = vxor.u32 %v310, 2147483648
    %v315 = vxor.u32 %v311, 2147483648
    %v316 = vmul.f32 %v312, 1.442695
    %v317 = vpow.pop %v316
    %v318 = vmul.f32 %v313, 1.442695
    %v319 = vpow.pop %v318
    %v320 = vmul.f32 %v314, 1.442695
    %v321 = vpow.pop %v320
    %v322 = vmul.f32 %v315, 1.442695
    %v323 = vpow.pop %v322
    %v324 = vadd.f32 %v317, 1.0
    %v325 = vadd.f32 %v319, 1.0
    %v326 = vadd.f32 %v321, 1.0
    %v327 = vadd.f32 %v323, 1.0
    %v328 = vrcp.pop %v324
    %v329 = vmul.f32 1.0, %v328
    %v330 = vrcp.pop %v325
    %v331 = vmul.f32 1.0, %v330
    %v332 = vrcp.pop %v326
    %v333 = vmul.f32 1.0, %v332
    %v334 = vrcp.pop %v327
    %v335 = vmul.f32 1.0, %v334
    %v336 = vtanh.pop %v309
    %v337 = vtanh.pop %v311
    %v338 = vmul.f32 %v329, %v336
    %v339 = vmul.f32 %v333, %v337
    %v340 = vtanh.pop %v338
    %v341 = vtanh.pop %v339
    %344 = vrot.lane.b32.xlu0 %v340, 64
    %v345 = vpop.permute.xlu0 %344
    %346 = vrot.lane.b32.xlu0 %v341, 64
    %v347 = vpop.permute.xlu0 %346
    %v350 = vmul.f32 %v331, %v345
    %v351 = vmul.f32 %v335, %v347
    %v354 = vrot.slane %v351, 7
    %vm355 = vcmask 1041409
    %v356 = vsel %vm355, %v354, %v350
    %357 = vrot.lane.b32.xlu0 %v356, 64
    %v358 = vpop.permute.xlu0 %357
    %vm359 = vcmask 523264
    %v360 = vsel %vm359, %v358, 0
    %362 = vmatprep.subr.mxu0 0.0
    %363 = vmatpush1.msra.mxu0 0.0
    %364 = vmatprep.subr.mxu0 0.0
    %365 = vmatpush1.msra.mxu0 0.0
    %366 = vmatprep.subr.mxu0 0.0
    %367 = vmatpush1.msra.mxu0 0.0
    %368 = vmatprep.subr.mxu0 0.0
    %369 = vmatpush1.msra.mxu0 0.0
    %370 = vmatprep.subr.mxu0 0.0
    %371 = vmatpush1.msra.mxu0 0.0
    %372 = vmatprep.subr.mxu0 0.0
    %373 = vmatpush1.msra.mxu0 0.0
    %374 = vmatprep.subr.mxu0 0.0
    %375 = vmatpush1.msra.mxu0 0.0
    %376 = vmatprep.subr.mxu0 0.0
    %377 = vmatpush1.msra.mxu0 0.0
    %378 = vmatprep.subr.mxu0 %v65
    %379 = vmatpush1.msra.mxu0 %v64
    %380 = vmatprep.subr.mxu0 %v63
    %381 = vmatpush1.msra.mxu0 %v62
    %382 = vmatprep.subr.mxu0 %v61
    %383 = vmatpush1.msra.mxu0 %v60
    %384 = vmatprep.subr.mxu0 %v59
    %385 = vmatpush1.msra.mxu0 %v58
    %386 = vmatprep.subr.mxu0 %v57
    %387 = vmatpush1.msra.mxu0 %v56
    %388 = vmatprep.subr.mxu0 %v55
    %389 = vmatpush1.msra.mxu0 %v54
    %390 = vmatprep.subr.mxu0 %v53
    %391 = vmatpush1.msra.mxu0 %v52
    %392 = vmatprep.subr.mxu0 %v51
    %393 = vmatpush1.msra.mxu0 %v50
    %394 = vmatprep.subr.mxu0 0.0
    %395 = vmatpush2.msra.mxu0 0.0
    %396 = vmatprep.subr.mxu0 0.0
    %397 = vmatpush2.msra.mxu0 0.0
    %398 = vmatprep.subr.mxu0 0.0
    %399 = vmatpush2.msra.mxu0 0.0
    %400 = vmatprep.subr.mxu0 0.0
    %401 = vmatpush2.msra.mxu0 0.0
    %402 = vmatprep.subr.mxu0 0.0
    %403 = vmatpush2.msra.mxu0 0.0
    %404 = vmatprep.subr.mxu0 0.0
    %405 = vmatpush2.msra.mxu0 0.0
    %406 = vmatprep.subr.mxu0 0.0
    %407 = vmatpush2.msra.mxu0 0.0
    %408 = vmatprep.subr.mxu0 0.0
    %409 = vmatpush2.msra.mxu0 0.0
    %410 = vmatprep.subr.mxu0 0.0
    %411 = vmatpush2.msra.mxu0 0.0
    %412 = vmatprep.subr.mxu0 0.0
    %413 = vmatpush2.msra.mxu0 0.0
    %414 = vmatprep.subr.mxu0 0.0
    %415 = vmatpush2.msra.mxu0 0.0
    %416 = vmatprep.subr.mxu0 0.0
    %417 = vmatpush2.msra.mxu0 0.0
    %418 = vmatprep.subr.mxu0 0.0
    %419 = vmatpush2.msra.mxu0 0.0
    %420 = vmatprep.subr.mxu0 0.0
    %421 = vmatpush2.msra.mxu0 0.0
    %422 = vmatprep.subr.mxu0 0.0
    %423 = vmatpush2.msra.mxu0 0.0
    %424 = vmatprep.subr.mxu0 0.0
    %425 = vmatpush2.msra.mxu0 0.0
    %426 = vmatprep.mubr.f32.mxu0 0.0
    %427 = vmatmul.mubr.f32.gmra.mxu0 %v360
    %v428 = vpop.f32.mrf.mxu0
    %v429 = vadd.f32 0.0, %v428
    %v430 = vpop.f32.mrf.mxu0
    %v431 = vadd.f32 0.0, %v430
    %432 = vdwg.mxu0
    %v435 = vrot.slane %v429, 7
    %v436 = vrot.slane %v431, 7
    %v441 = vadd.f32 %v308, %v435
    %v442 = vadd.f32 %v309, %v436
    %v443 = vadd.f32 %v310, %v429
    %v444 = vadd.f32 %v311, %v431
    %v445 = vxor.u32 %v441, 2147483648
    %v446 = vxor.u32 %v442, 2147483648
    %v447 = vxor.u32 %v443, 2147483648
    %v448 = vxor.u32 %v444, 2147483648
    %v449 = vmul.f32 %v445, 1.442695
    %v450 = vpow.pop %v449
    %v451 = vmul.f32 %v446, 1.442695
    %v452 = vpow.pop %v451
    %v453 = vmul.f32 %v447, 1.442695
    %v454 = vpow.pop %v453
    %v455 = vmul.f32 %v448, 1.442695
    %v456 = vpow.pop %v455
    %v457 = vadd.f32 %v450, 1.0
    %v458 = vadd.f32 %v452, 1.0
    %v459 = vadd.f32 %v454, 1.0
    %v460 = vadd.f32 %v456, 1.0
    %v461 = vrcp.pop %v457
    %v462 = vmul.f32 1.0, %v461
    %v463 = vrcp.pop %v458
    %v464 = vmul.f32 1.0, %v463
    %v465 = vrcp.pop %v459
    %v466 = vmul.f32 1.0, %v465
    %v467 = vrcp.pop %v460
    %v468 = vmul.f32 1.0, %v467
    %v469 = vtanh.pop %v442
    %v470 = vtanh.pop %v444
    %v473 = vrot.slane %v338, 7
    %v474 = vrot.slane %v339, 7
    %475 = vrot.lane.b32.xlu0 %v473, 64
    %v476 = vpop.permute.xlu0 %475
    %477 = vrot.lane.b32.xlu0 %v474, 64
    %v478 = vpop.permute.xlu0 %477
    %v481 = vmul.f32 %v462, %v476
    %v482 = vmul.f32 %v466, %v478
    %v483 = vmul.f32 %v462, %v469
    %v484 = vmul.f32 %v466, %v470
    %487 = vrot.lane.b32.xlu0 %v483, 64
    %v488 = vpop.permute.xlu0 %487
    %489 = vrot.lane.b32.xlu0 %v484, 64
    %v490 = vpop.permute.xlu0 %489
    %v493 = vadd.f32 %v481, %v488
    %v494 = vadd.f32 %v482, %v490
    %v495 = vtanh.pop %v493
    %v496 = vtanh.pop %v494
    %v497 = vmul.f32 %v464, %v495
    %v498 = vmul.f32 %v468, %v496
    %v500 = vlaneseq
    %v501 = vshrl.u32 %v500, 7
    %v502 = vsub.s32 0, %v501
    %v503 = vrot.slane %v101, %v502
    %v504 = vlaneseq
    %v505 = vshrl.u32 %v504, 7
    %v506 = vsub.s32 1, %v505
    %v507 = vrot.slane %v101, %v506
    %510 = vmatprep.subr.mxu0 0.0
    %511 = vmatpush1.msra.mxu0 0.0
    %512 = vmatprep.subr.mxu0 0.0
    %513 = vmatpush1.msra.mxu0 0.0
    %514 = vmatprep.subr.mxu0 0.0
    %515 = vmatpush1.msra.mxu0 0.0
    %516 = vmatprep.subr.mxu0 0.0
    %517 = vmatpush1.msra.mxu0 0.0
    %518 = vmatprep.subr.mxu0 0.0
    %519 = vmatpush1.msra.mxu0 0.0
    %520 = vmatprep.subr.mxu0 0.0
    %521 = vmatpush1.msra.mxu0 0.0
    %522 = vmatprep.subr.mxu0 0.0
    %523 = vmatpush1.msra.mxu0 0.0
    %524 = vmatprep.subr.mxu0 0.0
    %525 = vmatpush1.msra.mxu0 0.0
    %526 = vmatprep.subr.mxu0 %v81
    %527 = vmatpush1.msra.mxu0 %v80
    %528 = vmatprep.subr.mxu0 %v79
    %529 = vmatpush1.msra.mxu0 %v78
    %530 = vmatprep.subr.mxu0 %v77
    %531 = vmatpush1.msra.mxu0 %v76
    %532 = vmatprep.subr.mxu0 %v75
    %533 = vmatpush1.msra.mxu0 %v74
    %534 = vmatprep.subr.mxu0 %v73
    %535 = vmatpush1.msra.mxu0 %v72
    %536 = vmatprep.subr.mxu0 %v71
    %537 = vmatpush1.msra.mxu0 %v70
    %538 = vmatprep.subr.mxu0 %v69
    %539 = vmatpush1.msra.mxu0 %v68
    %540 = vmatprep.subr.mxu0 %v67
    %541 = vmatpush1.msra.mxu0 %v66
    %542 = vmatprep.subr.mxu0 0.0
    %543 = vmatpush2.msra.mxu0 0.0
    %544 = vmatprep.subr.mxu0 0.0
    %545 = vmatpush2.msra.mxu0 0.0
    %546 = vmatprep.subr.mxu0 0.0
    %547 = vmatpush2.msra.mxu0 0.0
    %548 = vmatprep.subr.mxu0 0.0
    %549 = vmatpush2.msra.mxu0 0.0
    %550 = vmatprep.subr.mxu0 0.0
    %551 = vmatpush2.msra.mxu0 0.0
    %552 = vmatprep.subr.mxu0 0.0
    %553 = vmatpush2.msra.mxu0 0.0
    %554 = vmatprep.subr.mxu0 0.0
    %555 = vmatpush2.msra.mxu0 0.0
    %556 = vmatprep.subr.mxu0 0.0
    %557 = vmatpush2.msra.mxu0 0.0
    %558 = vmatprep.subr.mxu0 0.0
    %559 = vmatpush2.msra.mxu0 0.0
    %560 = vmatprep.subr.mxu0 0.0
    %561 = vmatpush2.msra.mxu0 0.0
    %562 = vmatprep.subr.mxu0 0.0
    %563 = vmatpush2.msra.mxu0 0.0
    %564 = vmatprep.subr.mxu0 0.0
    %565 = vmatpush2.msra.mxu0 0.0
    %566 = vmatprep.subr.mxu0 0.0
    %567 = vmatpush2.msra.mxu0 0.0
    %568 = vmatprep.subr.mxu0 0.0
    %569 = vmatpush2.msra.mxu0 0.0
    %570 = vmatprep.subr.mxu0 0.0
    %571 = vmatpush2.msra.mxu0 0.0
    %572 = vmatprep.subr.mxu0 0.0
    %573 = vmatpush2.msra.mxu0 0.0
    %574 = vmatprep.mubr.f32.mxu0 0.0
    %575 = vmatmul.mubr.f32.gmra.mxu0 %v360
    %v576 = vpop.f32.mrf.mxu0
    %v577 = vadd.f32 %v503, %v576
    %v578 = vpop.f32.mrf.mxu0
    %v579 = vadd.f32 %v507, %v578
    %580 = vdwg.mxu0
    %v581 = vxor.u32 %v577, 2147483648
    %v582 = vxor.u32 %v579, 2147483648
    %v583 = vmul.f32 %v581, 1.442695
    %v584 = vpow.pop %v583
    %v585 = vmul.f32 %v582, 1.442695
    %v586 = vpow.pop %v585
    %v587 = vadd.f32 %v584, 1.0
    %v588 = vadd.f32 %v586, 1.0
    %v589 = vrcp.pop %v587
    %v590 = vmul.f32 1.0, %v589
    %v591 = vrcp.pop %v588
    %v592 = vmul.f32 1.0, %v591
    %v593 = vtanh.pop %v579
    %v594 = vmul.f32 %v590, %v593
    %v595 = vtanh.pop %v594
    %597 = vrot.lane.b32.xlu0 %v595, 64
    %v598 = vpop.permute.xlu0 %597
    %v600 = vmul.f32 %v592, %v598
    %v603 = vrot.slane %v497, 1
    %v604 = vsel %vm355, %v498, %v603
    %605 = vrot.lane.b32.xlu0 %v604, 64
    %v606 = vpop.permute.xlu0 %605
    %v607 = vsel %vm359, %v606, 0
    %609 = vmatprep.subr.mxu0 0.0
    %610 = vmatpush1.msra.mxu0 0.0
    %611 = vmatprep.subr.mxu0 0.0
    %612 = vmatpush1.msra.mxu0 0.0
    %613 = vmatprep.subr.mxu0 0.0
    %614 = vmatpush1.msra.mxu0 0.0
    %615 = vmatprep.subr.mxu0 0.0
    %616 = vmatpush1.msra.mxu0 0.0
    %617 = vmatprep.subr.mxu0 0.0
    %618 = vmatpush1.msra.mxu0 0.0
    %619 = vmatprep.subr.mxu0 0.0
    %620 = vmatpush1.msra.mxu0 0.0
    %621 = vmatprep.subr.mxu0 0.0
    %622 = vmatpush1.msra.mxu0 0.0
    %623 = vmatprep.subr.mxu0 0.0
    %624 = vmatpush1.msra.mxu0 0.0
    %625 = vmatprep.subr.mxu0 %v65
    %626 = vmatpush1.msra.mxu0 %v64
    %627 = vmatprep.subr.mxu0 %v63
    %628 = vmatpush1.msra.mxu0 %v62
    %629 = vmatprep.subr.mxu0 %v61
    %630 = vmatpush1.msra.mxu0 %v60
    %631 = vmatprep.subr.mxu0 %v59
    %632 = vmatpush1.msra.mxu0 %v58
    %633 = vmatprep.subr.mxu0 %v57
    %634 = vmatpush1.msra.mxu0 %v56
    %635 = vmatprep.subr.mxu0 %v55
    %636 = vmatpush1.msra.mxu0 %v54
    %637 = vmatprep.subr.mxu0 %v53
    %638 = vmatpush1.msra.mxu0 %v52
    %639 = vmatprep.subr.mxu0 %v51
    %640 = vmatpush1.msra.mxu0 %v50
    %641 = vmatprep.subr.mxu0 0.0
    %642 = vmatpush2.msra.mxu0 0.0
    %643 = vmatprep.subr.mxu0 0.0
    %644 = vmatpush2.msra.mxu0 0.0
    %645 = vmatprep.subr.mxu0 0.0
    %646 = vmatpush2.msra.mxu0 0.0
    %647 = vmatprep.subr.mxu0 0.0
    %648 = vmatpush2.msra.mxu0 0.0
    %649 = vmatprep.subr.mxu0 0.0
    %650 = vmatpush2.msra.mxu0 0.0
    %651 = vmatprep.subr.mxu0 0.0
    %652 = vmatpush2.msra.mxu0 0.0
    %653 = vmatprep.subr.mxu0 0.0
    %654 = vmatpush2.msra.mxu0 0.0
    %655 = vmatprep.subr.mxu0 0.0
    %656 = vmatpush2.msra.mxu0 0.0
    %657 = vmatprep.subr.mxu0 0.0
    %658 = vmatpush2.msra.mxu0 0.0
    %659 = vmatprep.subr.mxu0 0.0
    %660 = vmatpush2.msra.mxu0 0.0
    %661 = vmatprep.subr.mxu0 0.0
    %662 = vmatpush2.msra.mxu0 0.0
    %663 = vmatprep.subr.mxu0 0.0
    %664 = vmatpush2.msra.mxu0 0.0
    %665 = vmatprep.subr.mxu0 0.0
    %666 = vmatpush2.msra.mxu0 0.0
    %667 = vmatprep.subr.mxu0 0.0
    %668 = vmatpush2.msra.mxu0 0.0
    %669 = vmatprep.subr.mxu0 0.0
    %670 = vmatpush2.msra.mxu0 0.0
    %671 = vmatprep.subr.mxu0 0.0
    %672 = vmatpush2.msra.mxu0 0.0
    %673 = vmatprep.mubr.f32.mxu0 0.0
    %674 = vmatmul.mubr.f32.gmra.mxu0 %v607
    %v675 = vpop.f32.mrf.mxu0
    %v676 = vadd.f32 0.0, %v675
    %v677 = vpop.f32.mrf.mxu0
    %v678 = vadd.f32 0.0, %v677
    %679 = vdwg.mxu0
    %v682 = vrot.slane %v676, 6
    %v683 = vrot.slane %v678, 6
    %v684 = vrot.slane %v676, 7
    %v685 = vrot.slane %v678, 7
    %v690 = vadd.f32 %v308, %v682
    %v691 = vadd.f32 %v309, %v683
    %v692 = vadd.f32 %v310, %v684
    %v693 = vadd.f32 %v311, %v685
    %v694 = vxor.u32 %v690, 2147483648
    %v695 = vxor.u32 %v691, 2147483648
    %v696 = vxor.u32 %v692, 2147483648
    %v697 = vxor.u32 %v693, 2147483648
    %v698 = vmul.f32 %v694, 1.442695
    %v699 = vpow.pop %v698
    %v700 = vmul.f32 %v695, 1.442695
    %v701 = vpow.pop %v700
    %v702 = vmul.f32 %v696, 1.442695
    %v703 = vpow.pop %v702
    %v704 = vmul.f32 %v697, 1.442695
    %v705 = vpow.pop %v704
    %v706 = vadd.f32 %v699, 1.0
    %v707 = vadd.f32 %v701, 1.0
    %v708 = vadd.f32 %v703, 1.0
    %v709 = vadd.f32 %v705, 1.0
    %v710 = vrcp.pop %v706
    %v711 = vmul.f32 1.0, %v710
    %v712 = vrcp.pop %v707
    %v713 = vmul.f32 1.0, %v712
    %v714 = vrcp.pop %v708
    %v715 = vmul.f32 1.0, %v714
    %v716 = vrcp.pop %v709
    %v717 = vmul.f32 1.0, %v716
    %v718 = vtanh.pop %v691
    %v719 = vtanh.pop %v693
    %v722 = vrot.slane %v493, 7
    %v723 = vrot.slane %v494, 7
    %v726 = vmul.f32 %v711, %v722
    %v727 = vmul.f32 %v715, %v723
    %v728 = vmul.f32 %v711, %v718
    %v729 = vmul.f32 %v715, %v719
    %732 = vrot.lane.b32.xlu0 %v728, 64
    %v733 = vpop.permute.xlu0 %732
    %734 = vrot.lane.b32.xlu0 %v729, 64
    %v735 = vpop.permute.xlu0 %734
    %v738 = vadd.f32 %v726, %v733
    %v739 = vadd.f32 %v727, %v735
    %v740 = vtanh.pop %v738
    %v741 = vtanh.pop %v739
    %v742 = vmul.f32 %v713, %v740
    %v743 = vmul.f32 %v717, %v741
    %744 = vmatprep.subr.mxu0 0.0
    %745 = vmatpush1.msra.mxu0 0.0
    %746 = vmatprep.subr.mxu0 0.0
    %747 = vmatpush1.msra.mxu0 0.0
    %748 = vmatprep.subr.mxu0 0.0
    %749 = vmatpush1.msra.mxu0 0.0
    %750 = vmatprep.subr.mxu0 0.0
    %751 = vmatpush1.msra.mxu0 0.0
    %752 = vmatprep.subr.mxu0 0.0
    %753 = vmatpush1.msra.mxu0 0.0
    %754 = vmatprep.subr.mxu0 0.0
    %755 = vmatpush1.msra.mxu0 0.0
    %756 = vmatprep.subr.mxu0 0.0
    %757 = vmatpush1.msra.mxu0 0.0
    %758 = vmatprep.subr.mxu0 0.0
    %759 = vmatpush1.msra.mxu0 0.0
    %760 = vmatprep.subr.mxu0 %v81
    %761 = vmatpush1.msra.mxu0 %v80
    %762 = vmatprep.subr.mxu0 %v79
    %763 = vmatpush1.msra.mxu0 %v78
    %764 = vmatprep.subr.mxu0 %v77
    %765 = vmatpush1.msra.mxu0 %v76
    %766 = vmatprep.subr.mxu0 %v75
    %767 = vmatpush1.msra.mxu0 %v74
    %768 = vmatprep.subr.mxu0 %v73
    %769 = vmatpush1.msra.mxu0 %v72
    %770 = vmatprep.subr.mxu0 %v71
    %771 = vmatpush1.msra.mxu0 %v70
    %772 = vmatprep.subr.mxu0 %v69
    %773 = vmatpush1.msra.mxu0 %v68
    %774 = vmatprep.subr.mxu0 %v67
    %775 = vmatpush1.msra.mxu0 %v66
    %776 = vmatprep.subr.mxu0 0.0
    %777 = vmatpush2.msra.mxu0 0.0
    %778 = vmatprep.subr.mxu0 0.0
    %779 = vmatpush2.msra.mxu0 0.0
    %780 = vmatprep.subr.mxu0 0.0
    %781 = vmatpush2.msra.mxu0 0.0
    %782 = vmatprep.subr.mxu0 0.0
    %783 = vmatpush2.msra.mxu0 0.0
    %784 = vmatprep.subr.mxu0 0.0
    %785 = vmatpush2.msra.mxu0 0.0
    %786 = vmatprep.subr.mxu0 0.0
    %787 = vmatpush2.msra.mxu0 0.0
    %788 = vmatprep.subr.mxu0 0.0
    %789 = vmatpush2.msra.mxu0 0.0
    %790 = vmatprep.subr.mxu0 0.0
    %791 = vmatpush2.msra.mxu0 0.0
    %792 = vmatprep.subr.mxu0 0.0
    %793 = vmatpush2.msra.mxu0 0.0
    %794 = vmatprep.subr.mxu0 0.0
    %795 = vmatpush2.msra.mxu0 0.0
    %796 = vmatprep.subr.mxu0 0.0
    %797 = vmatpush2.msra.mxu0 0.0
    %798 = vmatprep.subr.mxu0 0.0
    %799 = vmatpush2.msra.mxu0 0.0
    %800 = vmatprep.subr.mxu0 0.0
    %801 = vmatpush2.msra.mxu0 0.0
    %802 = vmatprep.subr.mxu0 0.0
    %803 = vmatpush2.msra.mxu0 0.0
    %804 = vmatprep.subr.mxu0 0.0
    %805 = vmatpush2.msra.mxu0 0.0
    %806 = vmatprep.subr.mxu0 0.0
    %807 = vmatpush2.msra.mxu0 0.0
    %808 = vmatprep.mubr.f32.mxu0 0.0
    %809 = vmatmul.mubr.f32.gmra.mxu0 %v607
    %v810 = vpop.f32.mrf.mxu0
    %v811 = vadd.f32 %v503, %v810
    %v812 = vpop.f32.mrf.mxu0
    %v813 = vadd.f32 %v507, %v812
    %814 = vdwg.mxu0
    %816 = vrot.lane.b32.xlu0 %v600, 64
    %v817 = vpop.permute.xlu0 %816
    %v818 = vsel %vm359, %v817, 0
    %820 = vmatprep.subr.mxu0 0.0
    %821 = vmatpush1.msra.mxu0 0.0
    %822 = vmatprep.subr.mxu0 0.0
    %823 = vmatpush1.msra.mxu0 0.0
    %824 = vmatprep.subr.mxu0 0.0
    %825 = vmatpush1.msra.mxu0 0.0
    %826 = vmatprep.subr.mxu0 0.0
    %827 = vmatpush1.msra.mxu0 0.0
    %828 = vmatprep.subr.mxu0 0.0
    %829 = vmatpush1.msra.mxu0 0.0
    %830 = vmatprep.subr.mxu0 0.0
    %831 = vmatpush1.msra.mxu0 0.0
    %832 = vmatprep.subr.mxu0 0.0
    %833 = vmatpush1.msra.mxu0 0.0
    %834 = vmatprep.subr.mxu0 0.0
    %835 = vmatpush1.msra.mxu0 0.0
    %836 = vmatprep.subr.mxu0 %v97
    %837 = vmatpush1.msra.mxu0 %v96
    %838 = vmatprep.subr.mxu0 %v95
    %839 = vmatpush1.msra.mxu0 %v94
    %840 = vmatprep.subr.mxu0 %v93
    %841 = vmatpush1.msra.mxu0 %v92
    %842 = vmatprep.subr.mxu0 %v91
    %843 = vmatpush1.msra.mxu0 %v90
    %844 = vmatprep.subr.mxu0 %v89
    %845 = vmatpush1.msra.mxu0 %v88
    %846 = vmatprep.subr.mxu0 %v87
    %847 = vmatpush1.msra.mxu0 %v86
    %848 = vmatprep.subr.mxu0 %v85
    %849 = vmatpush1.msra.mxu0 %v84
    %850 = vmatprep.subr.mxu0 %v83
    %851 = vmatpush1.msra.mxu0 %v82
    %852 = vmatprep.subr.mxu0 0.0
    %853 = vmatpush2.msra.mxu0 0.0
    %854 = vmatprep.subr.mxu0 0.0
    %855 = vmatpush2.msra.mxu0 0.0
    %856 = vmatprep.subr.mxu0 0.0
    %857 = vmatpush2.msra.mxu0 0.0
    %858 = vmatprep.subr.mxu0 0.0
    %859 = vmatpush2.msra.mxu0 0.0
    %860 = vmatprep.subr.mxu0 0.0
    %861 = vmatpush2.msra.mxu0 0.0
    %862 = vmatprep.subr.mxu0 0.0
    %863 = vmatpush2.msra.mxu0 0.0
    %864 = vmatprep.subr.mxu0 0.0
    %865 = vmatpush2.msra.mxu0 0.0
    %866 = vmatprep.subr.mxu0 0.0
    %867 = vmatpush2.msra.mxu0 0.0
    %868 = vmatprep.subr.mxu0 0.0
    %869 = vmatpush2.msra.mxu0 0.0
    %870 = vmatprep.subr.mxu0 0.0
    %871 = vmatpush2.msra.mxu0 0.0
    %872 = vmatprep.subr.mxu0 0.0
    %873 = vmatpush2.msra.mxu0 0.0
    %874 = vmatprep.subr.mxu0 0.0
    %875 = vmatpush2.msra.mxu0 0.0
    %876 = vmatprep.subr.mxu0 0.0
    %877 = vmatpush2.msra.mxu0 0.0
    %878 = vmatprep.subr.mxu0 0.0
    %879 = vmatpush2.msra.mxu0 0.0
    %880 = vmatprep.subr.mxu0 0.0
    %881 = vmatpush2.msra.mxu0 0.0
    %882 = vmatprep.subr.mxu0 0.0
    %883 = vmatpush2.msra.mxu0 0.0
    %884 = vmatprep.mubr.f32.mxu0 0.0
    %885 = vmatmul.mubr.f32.gmra.mxu0 %v818
    %v886 = vpop.f32.mrf.mxu0
    %v887 = vadd.f32 0.0, %v886
    %v888 = vpop.f32.mrf.mxu0
    %v889 = vadd.f32 0.0, %v888
    %890 = vdwg.mxu0
    %v891 = vadd.f32 %v811, %v887
    %v892 = vadd.f32 %v813, %v889
    %v893 = vxor.u32 %v891, 2147483648
    %v894 = vxor.u32 %v892, 2147483648
    %v895 = vmul.f32 %v893, 1.442695
    %v896 = vpow.pop %v895
    %v897 = vmul.f32 %v894, 1.442695
    %v898 = vpow.pop %v897
    %v899 = vadd.f32 %v896, 1.0
    %v900 = vadd.f32 %v898, 1.0
    %v901 = vrcp.pop %v899
    %v902 = vmul.f32 1.0, %v901
    %v903 = vrcp.pop %v900
    %v904 = vmul.f32 1.0, %v903
    %v905 = vtanh.pop %v892
    %907 = vrot.lane.b32.xlu0 %v594, 64
    %v908 = vpop.permute.xlu0 %907
    %v910 = vmul.f32 %v902, %v908
    %v911 = vmul.f32 %v902, %v905
    %913 = vrot.lane.b32.xlu0 %v911, 64
    %v914 = vpop.permute.xlu0 %913
    %v916 = vadd.f32 %v910, %v914
    %v917 = vtanh.pop %v916
    %v918 = vmul.f32 %v904, %v917
    %v921 = vrot.slane %v742, 2
    %v922 = vrot.slane %v743, 1
    %v923 = vsel %vm355, %v922, %v921
    %924 = vrot.lane.b32.xlu0 %v923, 64
    %v925 = vpop.permute.xlu0 %924
    %v926 = vsel %vm359, %v925, 0
    %928 = vmatprep.subr.mxu0 0.0
    %929 = vmatpush1.msra.mxu0 0.0
    %930 = vmatprep.subr.mxu0 0.0
    %931 = vmatpush1.msra.mxu0 0.0
    %932 = vmatprep.subr.mxu0 0.0
    %933 = vmatpush1.msra.mxu0 0.0
    %934 = vmatprep.subr.mxu0 0.0
    %935 = vmatpush1.msra.mxu0 0.0
    %936 = vmatprep.subr.mxu0 0.0
    %937 = vmatpush1.msra.mxu0 0.0
    %938 = vmatprep.subr.mxu0 0.0
    %939 = vmatpush1.msra.mxu0 0.0
    %940 = vmatprep.subr.mxu0 0.0
    %941 = vmatpush1.msra.mxu0 0.0
    %942 = vmatprep.subr.mxu0 0.0
    %943 = vmatpush1.msra.mxu0 0.0
    %944 = vmatprep.subr.mxu0 %v65
    %945 = vmatpush1.msra.mxu0 %v64
    %946 = vmatprep.subr.mxu0 %v63
    %947 = vmatpush1.msra.mxu0 %v62
    %948 = vmatprep.subr.mxu0 %v61
    %949 = vmatpush1.msra.mxu0 %v60
    %950 = vmatprep.subr.mxu0 %v59
    %951 = vmatpush1.msra.mxu0 %v58
    %952 = vmatprep.subr.mxu0 %v57
    %953 = vmatpush1.msra.mxu0 %v56
    %954 = vmatprep.subr.mxu0 %v55
    %955 = vmatpush1.msra.mxu0 %v54
    %956 = vmatprep.subr.mxu0 %v53
    %957 = vmatpush1.msra.mxu0 %v52
    %958 = vmatprep.subr.mxu0 %v51
    %959 = vmatpush1.msra.mxu0 %v50
    %960 = vmatprep.subr.mxu0 0.0
    %961 = vmatpush2.msra.mxu0 0.0
    %962 = vmatprep.subr.mxu0 0.0
    %963 = vmatpush2.msra.mxu0 0.0
    %964 = vmatprep.subr.mxu0 0.0
    %965 = vmatpush2.msra.mxu0 0.0
    %966 = vmatprep.subr.mxu0 0.0
    %967 = vmatpush2.msra.mxu0 0.0
    %968 = vmatprep.subr.mxu0 0.0
    %969 = vmatpush2.msra.mxu0 0.0
    %970 = vmatprep.subr.mxu0 0.0
    %971 = vmatpush2.msra.mxu0 0.0
    %972 = vmatprep.subr.mxu0 0.0
    %973 = vmatpush2.msra.mxu0 0.0
    %974 = vmatprep.subr.mxu0 0.0
    %975 = vmatpush2.msra.mxu0 0.0
    %976 = vmatprep.subr.mxu0 0.0
    %977 = vmatpush2.msra.mxu0 0.0
    %978 = vmatprep.subr.mxu0 0.0
    %979 = vmatpush2.msra.mxu0 0.0
    %980 = vmatprep.subr.mxu0 0.0
    %981 = vmatpush2.msra.mxu0 0.0
    %982 = vmatprep.subr.mxu0 0.0
    %983 = vmatpush2.msra.mxu0 0.0
    %984 = vmatprep.subr.mxu0 0.0
    %985 = vmatpush2.msra.mxu0 0.0
    %986 = vmatprep.subr.mxu0 0.0
    %987 = vmatpush2.msra.mxu0 0.0
    %988 = vmatprep.subr.mxu0 0.0
    %989 = vmatpush2.msra.mxu0 0.0
    %990 = vmatprep.subr.mxu0 0.0
    %991 = vmatpush2.msra.mxu0 0.0
    %992 = vmatprep.mubr.f32.mxu0 0.0
    %993 = vmatmul.mubr.f32.gmra.mxu0 %v926
    %v994 = vpop.f32.mrf.mxu0
    %v995 = vadd.f32 0.0, %v994
    %v996 = vpop.f32.mrf.mxu0
    %v997 = vadd.f32 0.0, %v996
    %998 = vdwg.mxu0
    %v1001 = vrot.slane %v995, 5
    %v1002 = vrot.slane %v997, 5
    %v1003 = vrot.slane %v995, 6
    %v1004 = vrot.slane %v997, 6
    %v1009 = vadd.f32 %v308, %v1001
    %v1010 = vadd.f32 %v309, %v1002
    %v1011 = vadd.f32 %v310, %v1003
    %v1012 = vadd.f32 %v311, %v1004
    %v1013 = vxor.u32 %v1009, 2147483648
    %v1014 = vxor.u32 %v1010, 2147483648
    %v1015 = vxor.u32 %v1011, 2147483648
    %v1016 = vxor.u32 %v1012, 2147483648
    %v1017 = vmul.f32 %v1013, 1.442695
    %v1018 = vpow.pop %v1017
    %v1019 = vmul.f32 %v1014, 1.442695
    %v1020 = vpow.pop %v1019
    %v1021 = vmul.f32 %v1015, 1.442695
    %v1022 = vpow.pop %v1021
    %v1023 = vmul.f32 %v1016, 1.442695
    %v1024 = vpow.pop %v1023
    %v1025 = vadd.f32 %v1018, 1.0
    %v1026 = vadd.f32 %v1020, 1.0
    %v1027 = vadd.f32 %v1022, 1.0
    %v1028 = vadd.f32 %v1024, 1.0
    %v1029 = vrcp.pop %v1025
    %v1030 = vmul.f32 1.0, %v1029
    %v1031 = vrcp.pop %v1026
    %v1032 = vmul.f32 1.0, %v1031
    %v1033 = vrcp.pop %v1027
    %v1034 = vmul.f32 1.0, %v1033
    %v1035 = vrcp.pop %v1028
    %v1036 = vmul.f32 1.0, %v1035
    %v1037 = vtanh.pop %v1010
    %v1038 = vtanh.pop %v1012
    %v1041 = vrot.slane %v738, 7
    %v1042 = vrot.slane %v739, 7
    %v1045 = vmul.f32 %v1030, %v1041
    %v1046 = vmul.f32 %v1034, %v1042
    %v1047 = vmul.f32 %v1030, %v1037
    %v1048 = vmul.f32 %v1034, %v1038
    %1051 = vrot.lane.b32.xlu0 %v1047, 64
    %v1052 = vpop.permute.xlu0 %1051
    %1053 = vrot.lane.b32.xlu0 %v1048, 64
    %v1054 = vpop.permute.xlu0 %1053
    %v1057 = vadd.f32 %v1045, %v1052
    %v1058 = vadd.f32 %v1046, %v1054
    %v1059 = vtanh.pop %v1057
    %v1060 = vtanh.pop %v1058
    %v1061 = vmul.f32 %v1032, %v1059
    %v1062 = vmul.f32 %v1036, %v1060
    %1063 = vmatprep.subr.mxu0 0.0
    %1064 = vmatpush1.msra.mxu0 0.0
    %1065 = vmatprep.subr.mxu0 0.0
    %1066 = vmatpush1.msra.mxu0 0.0
    %1067 = vmatprep.subr.mxu0 0.0
    %1068 = vmatpush1.msra.mxu0 0.0
    %1069 = vmatprep.subr.mxu0 0.0
    %1070 = vmatpush1.msra.mxu0 0.0
    %1071 = vmatprep.subr.mxu0 0.0
    %1072 = vmatpush1.msra.mxu0 0.0
    %1073 = vmatprep.subr.mxu0 0.0
    %1074 = vmatpush1.msra.mxu0 0.0
    %1075 = vmatprep.subr.mxu0 0.0
    %1076 = vmatpush1.msra.mxu0 0.0
    %1077 = vmatprep.subr.mxu0 0.0
    %1078 = vmatpush1.msra.mxu0 0.0
    %1079 = vmatprep.subr.mxu0 %v81
    %1080 = vmatpush1.msra.mxu0 %v80
    %1081 = vmatprep.subr.mxu0 %v79
    %1082 = vmatpush1.msra.mxu0 %v78
    %1083 = vmatprep.subr.mxu0 %v77
    %1084 = vmatpush1.msra.mxu0 %v76
    %1085 = vmatprep.subr.mxu0 %v75
    %1086 = vmatpush1.msra.mxu0 %v74
    %1087 = vmatprep.subr.mxu0 %v73
    %1088 = vmatpush1.msra.mxu0 %v72
    %1089 = vmatprep.subr.mxu0 %v71
    %1090 = vmatpush1.msra.mxu0 %v70
    %1091 = vmatprep.subr.mxu0 %v69
    %1092 = vmatpush1.msra.mxu0 %v68
    %1093 = vmatprep.subr.mxu0 %v67
    %1094 = vmatpush1.msra.mxu0 %v66
    %1095 = vmatprep.subr.mxu0 0.0
    %1096 = vmatpush2.msra.mxu0 0.0
    %1097 = vmatprep.subr.mxu0 0.0
    %1098 = vmatpush2.msra.mxu0 0.0
    %1099 = vmatprep.subr.mxu0 0.0
    %1100 = vmatpush2.msra.mxu0 0.0
    %1101 = vmatprep.subr.mxu0 0.0
    %1102 = vmatpush2.msra.mxu0 0.0
    %1103 = vmatprep.subr.mxu0 0.0
    %1104 = vmatpush2.msra.mxu0 0.0
    %1105 = vmatprep.subr.mxu0 0.0
    %1106 = vmatpush2.msra.mxu0 0.0
    %1107 = vmatprep.subr.mxu0 0.0
    %1108 = vmatpush2.msra.mxu0 0.0
    %1109 = vmatprep.subr.mxu0 0.0
    %1110 = vmatpush2.msra.mxu0 0.0
    %1111 = vmatprep.subr.mxu0 0.0
    %1112 = vmatpush2.msra.mxu0 0.0
    %1113 = vmatprep.subr.mxu0 0.0
    %1114 = vmatpush2.msra.mxu0 0.0
    %1115 = vmatprep.subr.mxu0 0.0
    %1116 = vmatpush2.msra.mxu0 0.0
    %1117 = vmatprep.subr.mxu0 0.0
    %1118 = vmatpush2.msra.mxu0 0.0
    %1119 = vmatprep.subr.mxu0 0.0
    %1120 = vmatpush2.msra.mxu0 0.0
    %1121 = vmatprep.subr.mxu0 0.0
    %1122 = vmatpush2.msra.mxu0 0.0
    %1123 = vmatprep.subr.mxu0 0.0
    %1124 = vmatpush2.msra.mxu0 0.0
    %1125 = vmatprep.subr.mxu0 0.0
    %1126 = vmatpush2.msra.mxu0 0.0
    %1127 = vmatprep.mubr.f32.mxu0 0.0
    %1128 = vmatmul.mubr.f32.gmra.mxu0 %v926
    %v1129 = vpop.f32.mrf.mxu0
    %v1130 = vadd.f32 %v503, %v1129
    %v1131 = vpop.f32.mrf.mxu0
    %v1132 = vadd.f32 %v507, %v1131
    %1133 = vdwg.mxu0
    %1135 = vrot.lane.b32.xlu0 %v918, 64
    %v1136 = vpop.permute.xlu0 %1135
    %v1137 = vsel %vm359, %v1136, 0
    %1139 = vmatprep.subr.mxu0 0.0
    %1140 = vmatpush1.msra.mxu0 0.0
    %1141 = vmatprep.subr.mxu0 0.0
    %1142 = vmatpush1.msra.mxu0 0.0
    %1143 = vmatprep.subr.mxu0 0.0
    %1144 = vmatpush1.msra.mxu0 0.0
    %1145 = vmatprep.subr.mxu0 0.0
    %1146 = vmatpush1.msra.mxu0 0.0
    %1147 = vmatprep.subr.mxu0 0.0
    %1148 = vmatpush1.msra.mxu0 0.0
    %1149 = vmatprep.subr.mxu0 0.0
    %1150 = vmatpush1.msra.mxu0 0.0
    %1151 = vmatprep.subr.mxu0 0.0
    %1152 = vmatpush1.msra.mxu0 0.0
    %1153 = vmatprep.subr.mxu0 0.0
    %1154 = vmatpush1.msra.mxu0 0.0
    %1155 = vmatprep.subr.mxu0 %v97
    %1156 = vmatpush1.msra.mxu0 %v96
    %1157 = vmatprep.subr.mxu0 %v95
    %1158 = vmatpush1.msra.mxu0 %v94
    %1159 = vmatprep.subr.mxu0 %v93
    %1160 = vmatpush1.msra.mxu0 %v92
    %1161 = vmatprep.subr.mxu0 %v91
    %1162 = vmatpush1.msra.mxu0 %v90
    %1163 = vmatprep.subr.mxu0 %v89
    %1164 = vmatpush1.msra.mxu0 %v88
    %1165 = vmatprep.subr.mxu0 %v87
    %1166 = vmatpush1.msra.mxu0 %v86
    %1167 = vmatprep.subr.mxu0 %v85
    %1168 = vmatpush1.msra.mxu0 %v84
    %1169 = vmatprep.subr.mxu0 %v83
    %1170 = vmatpush1.msra.mxu0 %v82
    %1171 = vmatprep.subr.mxu0 0.0
    %1172 = vmatpush2.msra.mxu0 0.0
    %1173 = vmatprep.subr.mxu0 0.0
    %1174 = vmatpush2.msra.mxu0 0.0
    %1175 = vmatprep.subr.mxu0 0.0
    %1176 = vmatpush2.msra.mxu0 0.0
    %1177 = vmatprep.subr.mxu0 0.0
    %1178 = vmatpush2.msra.mxu0 0.0
    %1179 = vmatprep.subr.mxu0 0.0
    %1180 = vmatpush2.msra.mxu0 0.0
    %1181 = vmatprep.subr.mxu0 0.0
    %1182 = vmatpush2.msra.mxu0 0.0
    %1183 = vmatprep.subr.mxu0 0.0
    %1184 = vmatpush2.msra.mxu0 0.0
    %1185 = vmatprep.subr.mxu0 0.0
    %1186 = vmatpush2.msra.mxu0 0.0
    %1187 = vmatprep.subr.mxu0 0.0
    %1188 = vmatpush2.msra.mxu0 0.0
    %1189 = vmatprep.subr.mxu0 0.0
    %1190 = vmatpush2.msra.mxu0 0.0
    %1191 = vmatprep.subr.mxu0 0.0
    %1192 = vmatpush2.msra.mxu0 0.0
    %1193 = vmatprep.subr.mxu0 0.0
    %1194 = vmatpush2.msra.mxu0 0.0
    %1195 = vmatprep.subr.mxu0 0.0
    %1196 = vmatpush2.msra.mxu0 0.0
    %1197 = vmatprep.subr.mxu0 0.0
    %1198 = vmatpush2.msra.mxu0 0.0
    %1199 = vmatprep.subr.mxu0 0.0
    %1200 = vmatpush2.msra.mxu0 0.0
    %1201 = vmatprep.subr.mxu0 0.0
    %1202 = vmatpush2.msra.mxu0 0.0
    %1203 = vmatprep.mubr.f32.mxu0 0.0
    %1204 = vmatmul.mubr.f32.gmra.mxu0 %v1137
    %v1205 = vpop.f32.mrf.mxu0
    %v1206 = vadd.f32 0.0, %v1205
    %v1207 = vpop.f32.mrf.mxu0
    %v1208 = vadd.f32 0.0, %v1207
    %1209 = vdwg.mxu0
    %v1210 = vadd.f32 %v1130, %v1206
    %v1211 = vadd.f32 %v1132, %v1208
    %v1212 = vxor.u32 %v1210, 2147483648
    %v1213 = vxor.u32 %v1211, 2147483648
    %v1214 = vmul.f32 %v1212, 1.442695
    %v1215 = vpow.pop %v1214
    %v1216 = vmul.f32 %v1213, 1.442695
    %v1217 = vpow.pop %v1216
    %v1218 = vadd.f32 %v1215, 1.0
    %v1219 = vadd.f32 %v1217, 1.0
    %v1220 = vrcp.pop %v1218
    %v1221 = vmul.f32 1.0, %v1220
    %v1222 = vrcp.pop %v1219
    %v1223 = vmul.f32 1.0, %v1222
    %v1224 = vtanh.pop %v1211
    %v1225 = vmul.f32 %v1221, %v916
    %v1226 = vmul.f32 %v1221, %v1224
    %1228 = vrot.lane.b32.xlu0 %v1226, 64
    %v1229 = vpop.permute.xlu0 %1228
    %v1231 = vadd.f32 %v1225, %v1229
    %v1232 = vtanh.pop %v1231
    %v1233 = vmul.f32 %v1223, %v1232
    %v1236 = vrot.slane %v1061, 3
    %v1237 = vrot.slane %v1062, 2
    %v1238 = vsel %vm355, %v1237, %v1236
    %1239 = vrot.lane.b32.xlu0 %v1238, 64
    %v1240 = vpop.permute.xlu0 %1239
    %v1241 = vsel %vm359, %v1240, 0
    %1243 = vmatprep.subr.mxu0 0.0
    %1244 = vmatpush1.msra.mxu0 0.0
    %1245 = vmatprep.subr.mxu0 0.0
    %1246 = vmatpush1.msra.mxu0 0.0
    %1247 = vmatprep.subr.mxu0 0.0
    %1248 = vmatpush1.msra.mxu0 0.0
    %1249 = vmatprep.subr.mxu0 0.0
    %1250 = vmatpush1.msra.mxu0 0.0
    %1251 = vmatprep.subr.mxu0 0.0
    %1252 = vmatpush1.msra.mxu0 0.0
    %1253 = vmatprep.subr.mxu0 0.0
    %1254 = vmatpush1.msra.mxu0 0.0
    %1255 = vmatprep.subr.mxu0 0.0
    %1256 = vmatpush1.msra.mxu0 0.0
    %1257 = vmatprep.subr.mxu0 0.0
    %1258 = vmatpush1.msra.mxu0 0.0
    %1259 = vmatprep.subr.mxu0 %v65
    %1260 = vmatpush1.msra.mxu0 %v64
    %1261 = vmatprep.subr.mxu0 %v63
    %1262 = vmatpush1.msra.mxu0 %v62
    %1263 = vmatprep.subr.mxu0 %v61
    %1264 = vmatpush1.msra.mxu0 %v60
    %1265 = vmatprep.subr.mxu0 %v59
    %1266 = vmatpush1.msra.mxu0 %v58
    %1267 = vmatprep.subr.mxu0 %v57
    %1268 = vmatpush1.msra.mxu0 %v56
    %1269 = vmatprep.subr.mxu0 %v55
    %1270 = vmatpush1.msra.mxu0 %v54
    %1271 = vmatprep.subr.mxu0 %v53
    %1272 = vmatpush1.msra.mxu0 %v52
    %1273 = vmatprep.subr.mxu0 %v51
    %1274 = vmatpush1.msra.mxu0 %v50
    %1275 = vmatprep.subr.mxu0 0.0
    %1276 = vmatpush2.msra.mxu0 0.0
    %1277 = vmatprep.subr.mxu0 0.0
    %1278 = vmatpush2.msra.mxu0 0.0
    %1279 = vmatprep.subr.mxu0 0.0
    %1280 = vmatpush2.msra.mxu0 0.0
    %1281 = vmatprep.subr.mxu0 0.0
    %1282 = vmatpush2.msra.mxu0 0.0
    %1283 = vmatprep.subr.mxu0 0.0
    %1284 = vmatpush2.msra.mxu0 0.0
    %1285 = vmatprep.subr.mxu0 0.0
    %1286 = vmatpush2.msra.mxu0 0.0
    %1287 = vmatprep.subr.mxu0 0.0
    %1288 = vmatpush2.msra.mxu0 0.0
    %1289 = vmatprep.subr.mxu0 0.0
    %1290 = vmatpush2.msra.mxu0 0.0
    %1291 = vmatprep.subr.mxu0 0.0
    %1292 = vmatpush2.msra.mxu0 0.0
    %1293 = vmatprep.subr.mxu0 0.0
    %1294 = vmatpush2.msra.mxu0 0.0
    %1295 = vmatprep.subr.mxu0 0.0
    %1296 = vmatpush2.msra.mxu0 0.0
    %1297 = vmatprep.subr.mxu0 0.0
    %1298 = vmatpush2.msra.mxu0 0.0
    %1299 = vmatprep.subr.mxu0 0.0
    %1300 = vmatpush2.msra.mxu0 0.0
    %1301 = vmatprep.subr.mxu0 0.0
    %1302 = vmatpush2.msra.mxu0 0.0
    %1303 = vmatprep.subr.mxu0 0.0
    %1304 = vmatpush2.msra.mxu0 0.0
    %1305 = vmatprep.subr.mxu0 0.0
    %1306 = vmatpush2.msra.mxu0 0.0
    %1307 = vmatprep.mubr.f32.mxu0 0.0
    %1308 = vmatmul.mubr.f32.gmra.mxu0 %v1241
    %v1309 = vpop.f32.mrf.mxu0
    %v1310 = vadd.f32 0.0, %v1309
    %v1311 = vpop.f32.mrf.mxu0
    %v1312 = vadd.f32 0.0, %v1311
    %1313 = vdwg.mxu0
    %v1316 = vrot.slane %v1310, 4
    %v1317 = vrot.slane %v1312, 4
    %v1318 = vrot.slane %v1310, 5
    %v1319 = vrot.slane %v1312, 5
    %v1324 = vadd.f32 %v308, %v1316
    %v1325 = vadd.f32 %v309, %v1317
    %v1326 = vadd.f32 %v310, %v1318
    %v1327 = vadd.f32 %v311, %v1319
    %v1328 = vxor.u32 %v1324, 2147483648
    %v1329 = vxor.u32 %v1325, 2147483648
    %v1330 = vxor.u32 %v1326, 2147483648
    %v1331 = vxor.u32 %v1327, 2147483648
    %v1332 = vmul.f32 %v1328, 1.442695
    %v1333 = vpow.pop %v1332
    %v1334 = vmul.f32 %v1329, 1.442695
    %v1335 = vpow.pop %v1334
    %v1336 = vmul.f32 %v1330, 1.442695
    %v1337 = vpow.pop %v1336
    %v1338 = vmul.f32 %v1331, 1.442695
    %v1339 = vpow.pop %v1338
    %v1340 = vadd.f32 %v1333, 1.0
    %v1341 = vadd.f32 %v1335, 1.0
    %v1342 = vadd.f32 %v1337, 1.0
    %v1343 = vadd.f32 %v1339, 1.0
    %v1344 = vrcp.pop %v1340
    %v1345 = vmul.f32 1.0, %v1344
    %v1346 = vrcp.pop %v1341
    %v1347 = vmul.f32 1.0, %v1346
    %v1348 = vrcp.pop %v1342
    %v1349 = vmul.f32 1.0, %v1348
    %v1350 = vrcp.pop %v1343
    %v1351 = vmul.f32 1.0, %v1350
    %v1352 = vtanh.pop %v1325
    %v1353 = vtanh.pop %v1327
    %v1356 = vrot.slane %v1057, 7
    %v1357 = vrot.slane %v1058, 7
    %v1360 = vmul.f32 %v1345, %v1356
    %v1361 = vmul.f32 %v1349, %v1357
    %v1362 = vmul.f32 %v1345, %v1352
    %v1363 = vmul.f32 %v1349, %v1353
    %1366 = vrot.lane.b32.xlu0 %v1362, 64
    %v1367 = vpop.permute.xlu0 %1366
    %1368 = vrot.lane.b32.xlu0 %v1363, 64
    %v1369 = vpop.permute.xlu0 %1368
    %v1372 = vadd.f32 %v1360, %v1367
    %v1373 = vadd.f32 %v1361, %v1369
    %v1374 = vtanh.pop %v1372
    %v1375 = vtanh.pop %v1373
    %v1376 = vmul.f32 %v1347, %v1374
    %v1377 = vmul.f32 %v1351, %v1375
    %1378 = vmatprep.subr.mxu0 0.0
    %1379 = vmatpush1.msra.mxu0 0.0
    %1380 = vmatprep.subr.mxu0 0.0
    %1381 = vmatpush1.msra.mxu0 0.0
    %1382 = vmatprep.subr.mxu0 0.0
    %1383 = vmatpush1.msra.mxu0 0.0
    %1384 = vmatprep.subr.mxu0 0.0
    %1385 = vmatpush1.msra.mxu0 0.0
    %1386 = vmatprep.subr.mxu0 0.0
    %1387 = vmatpush1.msra.mxu0 0.0
    %1388 = vmatprep.subr.mxu0 0.0
    %1389 = vmatpush1.msra.mxu0 0.0
    %1390 = vmatprep.subr.mxu0 0.0
    %1391 = vmatpush1.msra.mxu0 0.0
    %1392 = vmatprep.subr.mxu0 0.0
    %1393 = vmatpush1.msra.mxu0 0.0
    %1394 = vmatprep.subr.mxu0 %v81
    %1395 = vmatpush1.msra.mxu0 %v80
    %1396 = vmatprep.subr.mxu0 %v79
    %1397 = vmatpush1.msra.mxu0 %v78
    %1398 = vmatprep.subr.mxu0 %v77
    %1399 = vmatpush1.msra.mxu0 %v76
    %1400 = vmatprep.subr.mxu0 %v75
    %1401 = vmatpush1.msra.mxu0 %v74
    %1402 = vmatprep.subr.mxu0 %v73
    %1403 = vmatpush1.msra.mxu0 %v72
    %1404 = vmatprep.subr.mxu0 %v71
    %1405 = vmatpush1.msra.mxu0 %v70
    %1406 = vmatprep.subr.mxu0 %v69
    %1407 = vmatpush1.msra.mxu0 %v68
    %1408 = vmatprep.subr.mxu0 %v67
    %1409 = vmatpush1.msra.mxu0 %v66
    %1410 = vmatprep.subr.mxu0 0.0
    %1411 = vmatpush2.msra.mxu0 0.0
    %1412 = vmatprep.subr.mxu0 0.0
    %1413 = vmatpush2.msra.mxu0 0.0
    %1414 = vmatprep.subr.mxu0 0.0
    %1415 = vmatpush2.msra.mxu0 0.0
    %1416 = vmatprep.subr.mxu0 0.0
    %1417 = vmatpush2.msra.mxu0 0.0
    %1418 = vmatprep.subr.mxu0 0.0
    %1419 = vmatpush2.msra.mxu0 0.0
    %1420 = vmatprep.subr.mxu0 0.0
    %1421 = vmatpush2.msra.mxu0 0.0
    %1422 = vmatprep.subr.mxu0 0.0
    %1423 = vmatpush2.msra.mxu0 0.0
    %1424 = vmatprep.subr.mxu0 0.0
    %1425 = vmatpush2.msra.mxu0 0.0
    %1426 = vmatprep.subr.mxu0 0.0
    %1427 = vmatpush2.msra.mxu0 0.0
    %1428 = vmatprep.subr.mxu0 0.0
    %1429 = vmatpush2.msra.mxu0 0.0
    %1430 = vmatprep.subr.mxu0 0.0
    %1431 = vmatpush2.msra.mxu0 0.0
    %1432 = vmatprep.subr.mxu0 0.0
    %1433 = vmatpush2.msra.mxu0 0.0
    %1434 = vmatprep.subr.mxu0 0.0
    %1435 = vmatpush2.msra.mxu0 0.0
    %1436 = vmatprep.subr.mxu0 0.0
    %1437 = vmatpush2.msra.mxu0 0.0
    %1438 = vmatprep.subr.mxu0 0.0
    %1439 = vmatpush2.msra.mxu0 0.0
    %1440 = vmatprep.subr.mxu0 0.0
    %1441 = vmatpush2.msra.mxu0 0.0
    %1442 = vmatprep.mubr.f32.mxu0 0.0
    %1443 = vmatmul.mubr.f32.gmra.mxu0 %v1241
    %v1444 = vpop.f32.mrf.mxu0
    %v1445 = vadd.f32 %v503, %v1444
    %v1446 = vpop.f32.mrf.mxu0
    %v1447 = vadd.f32 %v507, %v1446
    %1448 = vdwg.mxu0
    %1450 = vrot.lane.b32.xlu0 %v1233, 64
    %v1451 = vpop.permute.xlu0 %1450
    %v1452 = vsel %vm359, %v1451, 0
    %1454 = vmatprep.subr.mxu0 0.0
    %1455 = vmatpush1.msra.mxu0 0.0
    %1456 = vmatprep.subr.mxu0 0.0
    %1457 = vmatpush1.msra.mxu0 0.0
    %1458 = vmatprep.subr.mxu0 0.0
    %1459 = vmatpush1.msra.mxu0 0.0
    %1460 = vmatprep.subr.mxu0 0.0
    %1461 = vmatpush1.msra.mxu0 0.0
    %1462 = vmatprep.subr.mxu0 0.0
    %1463 = vmatpush1.msra.mxu0 0.0
    %1464 = vmatprep.subr.mxu0 0.0
    %1465 = vmatpush1.msra.mxu0 0.0
    %1466 = vmatprep.subr.mxu0 0.0
    %1467 = vmatpush1.msra.mxu0 0.0
    %1468 = vmatprep.subr.mxu0 0.0
    %1469 = vmatpush1.msra.mxu0 0.0
    %1470 = vmatprep.subr.mxu0 %v97
    %1471 = vmatpush1.msra.mxu0 %v96
    %1472 = vmatprep.subr.mxu0 %v95
    %1473 = vmatpush1.msra.mxu0 %v94
    %1474 = vmatprep.subr.mxu0 %v93
    %1475 = vmatpush1.msra.mxu0 %v92
    %1476 = vmatprep.subr.mxu0 %v91
    %1477 = vmatpush1.msra.mxu0 %v90
    %1478 = vmatprep.subr.mxu0 %v89
    %1479 = vmatpush1.msra.mxu0 %v88
    %1480 = vmatprep.subr.mxu0 %v87
    %1481 = vmatpush1.msra.mxu0 %v86
    %1482 = vmatprep.subr.mxu0 %v85
    %1483 = vmatpush1.msra.mxu0 %v84
    %1484 = vmatprep.subr.mxu0 %v83
    %1485 = vmatpush1.msra.mxu0 %v82
    %1486 = vmatprep.subr.mxu0 0.0
    %1487 = vmatpush2.msra.mxu0 0.0
    %1488 = vmatprep.subr.mxu0 0.0
    %1489 = vmatpush2.msra.mxu0 0.0
    %1490 = vmatprep.subr.mxu0 0.0
    %1491 = vmatpush2.msra.mxu0 0.0
    %1492 = vmatprep.subr.mxu0 0.0
    %1493 = vmatpush2.msra.mxu0 0.0
    %1494 = vmatprep.subr.mxu0 0.0
    %1495 = vmatpush2.msra.mxu0 0.0
    %1496 = vmatprep.subr.mxu0 0.0
    %1497 = vmatpush2.msra.mxu0 0.0
    %1498 = vmatprep.subr.mxu0 0.0
    %1499 = vmatpush2.msra.mxu0 0.0
    %1500 = vmatprep.subr.mxu0 0.0
    %1501 = vmatpush2.msra.mxu0 0.0
    %1502 = vmatprep.subr.mxu0 0.0
    %1503 = vmatpush2.msra.mxu0 0.0
    %1504 = vmatprep.subr.mxu0 0.0
    %1505 = vmatpush2.msra.mxu0 0.0
    %1506 = vmatprep.subr.mxu0 0.0
    %1507 = vmatpush2.msra.mxu0 0.0
    %1508 = vmatprep.subr.mxu0 0.0
    %1509 = vmatpush2.msra.mxu0 0.0
    %1510 = vmatprep.subr.mxu0 0.0
    %1511 = vmatpush2.msra.mxu0 0.0
    %1512 = vmatprep.subr.mxu0 0.0
    %1513 = vmatpush2.msra.mxu0 0.0
    %1514 = vmatprep.subr.mxu0 0.0
    %1515 = vmatpush2.msra.mxu0 0.0
    %1516 = vmatprep.subr.mxu0 0.0
    %1517 = vmatpush2.msra.mxu0 0.0
    %1518 = vmatprep.mubr.f32.mxu0 0.0
    %1519 = vmatmul.mubr.f32.gmra.mxu0 %v1452
    %v1520 = vpop.f32.mrf.mxu0
    %v1521 = vadd.f32 0.0, %v1520
    %v1522 = vpop.f32.mrf.mxu0
    %v1523 = vadd.f32 0.0, %v1522
    %1524 = vdwg.mxu0
    %v1525 = vadd.f32 %v1445, %v1521
    %v1526 = vadd.f32 %v1447, %v1523
    %v1527 = vxor.u32 %v1525, 2147483648
    %v1528 = vxor.u32 %v1526, 2147483648
    %v1529 = vmul.f32 %v1527, 1.442695
    %v1530 = vpow.pop %v1529
    %v1531 = vmul.f32 %v1528, 1.442695
    %v1532 = vpow.pop %v1531
    %v1533 = vadd.f32 %v1530, 1.0
    %v1534 = vadd.f32 %v1532, 1.0
    %v1535 = vrcp.pop %v1533
    %v1536 = vmul.f32 1.0, %v1535
    %v1537 = vrcp.pop %v1534
    %v1538 = vmul.f32 1.0, %v1537
    %v1539 = vtanh.pop %v1526
    %v1540 = vmul.f32 %v1536, %v1231
    %v1541 = vmul.f32 %v1536, %v1539
    %1543 = vrot.lane.b32.xlu0 %v1541, 64
    %v1544 = vpop.permute.xlu0 %1543
    %v1546 = vadd.f32 %v1540, %v1544
    %v1547 = vtanh.pop %v1546
    %v1548 = vmul.f32 %v1538, %v1547
    %v1551 = vrot.slane %v1376, 4
    %v1552 = vrot.slane %v1377, 3
    %v1553 = vsel %vm355, %v1552, %v1551
    %1554 = vrot.lane.b32.xlu0 %v1553, 64
    %v1555 = vpop.permute.xlu0 %1554
    %v1556 = vsel %vm359, %v1555, 0
    %1558 = vmatprep.subr.mxu0 0.0
    %1559 = vmatpush1.msra.mxu0 0.0
    %1560 = vmatprep.subr.mxu0 0.0
    %1561 = vmatpush1.msra.mxu0 0.0
    %1562 = vmatprep.subr.mxu0 0.0
    %1563 = vmatpush1.msra.mxu0 0.0
    %1564 = vmatprep.subr.mxu0 0.0
    %1565 = vmatpush1.msra.mxu0 0.0
    %1566 = vmatprep.subr.mxu0 0.0
    %1567 = vmatpush1.msra.mxu0 0.0
    %1568 = vmatprep.subr.mxu0 0.0
    %1569 = vmatpush1.msra.mxu0 0.0
    %1570 = vmatprep.subr.mxu0 0.0
    %1571 = vmatpush1.msra.mxu0 0.0
    %1572 = vmatprep.subr.mxu0 0.0
    %1573 = vmatpush1.msra.mxu0 0.0
    %1574 = vmatprep.subr.mxu0 %v65
    %1575 = vmatpush1.msra.mxu0 %v64
    %1576 = vmatprep.subr.mxu0 %v63
    %1577 = vmatpush1.msra.mxu0 %v62
    %1578 = vmatprep.subr.mxu0 %v61
    %1579 = vmatpush1.msra.mxu0 %v60
    %1580 = vmatprep.subr.mxu0 %v59
    %1581 = vmatpush1.msra.mxu0 %v58
    %1582 = vmatprep.subr.mxu0 %v57
    %1583 = vmatpush1.msra.mxu0 %v56
    %1584 = vmatprep.subr.mxu0 %v55
    %1585 = vmatpush1.msra.mxu0 %v54
    %1586 = vmatprep.subr.mxu0 %v53
    %1587 = vmatpush1.msra.mxu0 %v52
    %1588 = vmatprep.subr.mxu0 %v51
    %1589 = vmatpush1.msra.mxu0 %v50
    %1590 = vmatprep.subr.mxu0 0.0
    %1591 = vmatpush2.msra.mxu0 0.0
    %1592 = vmatprep.subr.mxu0 0.0
    %1593 = vmatpush2.msra.mxu0 0.0
    %1594 = vmatprep.subr.mxu0 0.0
    %1595 = vmatpush2.msra.mxu0 0.0
    %1596 = vmatprep.subr.mxu0 0.0
    %1597 = vmatpush2.msra.mxu0 0.0
    %1598 = vmatprep.subr.mxu0 0.0
    %1599 = vmatpush2.msra.mxu0 0.0
    %1600 = vmatprep.subr.mxu0 0.0
    %1601 = vmatpush2.msra.mxu0 0.0
    %1602 = vmatprep.subr.mxu0 0.0
    %1603 = vmatpush2.msra.mxu0 0.0
    %1604 = vmatprep.subr.mxu0 0.0
    %1605 = vmatpush2.msra.mxu0 0.0
    %1606 = vmatprep.subr.mxu0 0.0
    %1607 = vmatpush2.msra.mxu0 0.0
    %1608 = vmatprep.subr.mxu0 0.0
    %1609 = vmatpush2.msra.mxu0 0.0
    %1610 = vmatprep.subr.mxu0 0.0
    %1611 = vmatpush2.msra.mxu0 0.0
    %1612 = vmatprep.subr.mxu0 0.0
    %1613 = vmatpush2.msra.mxu0 0.0
    %1614 = vmatprep.subr.mxu0 0.0
    %1615 = vmatpush2.msra.mxu0 0.0
    %1616 = vmatprep.subr.mxu0 0.0
    %1617 = vmatpush2.msra.mxu0 0.0
    %1618 = vmatprep.subr.mxu0 0.0
    %1619 = vmatpush2.msra.mxu0 0.0
    %1620 = vmatprep.subr.mxu0 0.0
    %1621 = vmatpush2.msra.mxu0 0.0
    %1622 = vmatprep.mubr.f32.mxu0 0.0
    %1623 = vmatmul.mubr.f32.gmra.mxu0 %v1556
    %v1624 = vpop.f32.mrf.mxu0
    %v1625 = vadd.f32 0.0, %v1624
    %v1626 = vpop.f32.mrf.mxu0
    %v1627 = vadd.f32 0.0, %v1626
    %1628 = vdwg.mxu0
    %v1631 = vrot.slane %v1625, 3
    %v1632 = vrot.slane %v1627, 3
    %v1633 = vrot.slane %v1625, 4
    %v1634 = vrot.slane %v1627, 4
    %v1639 = vadd.f32 %v308, %v1631
    %v1640 = vadd.f32 %v309, %v1632
    %v1641 = vadd.f32 %v310, %v1633
    %v1642 = vadd.f32 %v311, %v1634
    %v1643 = vxor.u32 %v1639, 2147483648
    %v1644 = vxor.u32 %v1640, 2147483648
    %v1645 = vxor.u32 %v1641, 2147483648
    %v1646 = vxor.u32 %v1642, 2147483648
    %v1647 = vmul.f32 %v1643, 1.442695
    %v1648 = vpow.pop %v1647
    %v1649 = vmul.f32 %v1644, 1.442695
    %v1650 = vpow.pop %v1649
    %v1651 = vmul.f32 %v1645, 1.442695
    %v1652 = vpow.pop %v1651
    %v1653 = vmul.f32 %v1646, 1.442695
    %v1654 = vpow.pop %v1653
    %v1655 = vadd.f32 %v1648, 1.0
    %v1656 = vadd.f32 %v1650, 1.0
    %v1657 = vadd.f32 %v1652, 1.0
    %v1658 = vadd.f32 %v1654, 1.0
    %v1659 = vrcp.pop %v1655
    %v1660 = vmul.f32 1.0, %v1659
    %v1661 = vrcp.pop %v1656
    %v1662 = vmul.f32 1.0, %v1661
    %v1663 = vrcp.pop %v1657
    %v1664 = vmul.f32 1.0, %v1663
    %v1665 = vrcp.pop %v1658
    %v1666 = vmul.f32 1.0, %v1665
    %v1667 = vtanh.pop %v1640
    %v1668 = vtanh.pop %v1642
    %v1671 = vrot.slane %v1372, 7
    %v1672 = vrot.slane %v1373, 7
    %v1675 = vmul.f32 %v1660, %v1671
    %v1676 = vmul.f32 %v1664, %v1672
    %v1677 = vmul.f32 %v1660, %v1667
    %v1678 = vmul.f32 %v1664, %v1668
    %1681 = vrot.lane.b32.xlu0 %v1677, 64
    %v1682 = vpop.permute.xlu0 %1681
    %1683 = vrot.lane.b32.xlu0 %v1678, 64
    %v1684 = vpop.permute.xlu0 %1683
    %v1687 = vadd.f32 %v1675, %v1682
    %v1688 = vadd.f32 %v1676, %v1684
    %v1689 = vtanh.pop %v1687
    %v1690 = vtanh.pop %v1688
    %v1691 = vmul.f32 %v1662, %v1689
    %v1692 = vmul.f32 %v1666, %v1690
    %1693 = vmatprep.subr.mxu0 0.0
    %1694 = vmatpush1.msra.mxu0 0.0
    %1695 = vmatprep.subr.mxu0 0.0
    %1696 = vmatpush1.msra.mxu0 0.0
    %1697 = vmatprep.subr.mxu0 0.0
    %1698 = vmatpush1.msra.mxu0 0.0
    %1699 = vmatprep.subr.mxu0 0.0
    %1700 = vmatpush1.msra.mxu0 0.0
    %1701 = vmatprep.subr.mxu0 0.0
    %1702 = vmatpush1.msra.mxu0 0.0
    %1703 = vmatprep.subr.mxu0 0.0
    %1704 = vmatpush1.msra.mxu0 0.0
    %1705 = vmatprep.subr.mxu0 0.0
    %1706 = vmatpush1.msra.mxu0 0.0
    %1707 = vmatprep.subr.mxu0 0.0
    %1708 = vmatpush1.msra.mxu0 0.0
    %1709 = vmatprep.subr.mxu0 %v81
    %1710 = vmatpush1.msra.mxu0 %v80
    %1711 = vmatprep.subr.mxu0 %v79
    %1712 = vmatpush1.msra.mxu0 %v78
    %1713 = vmatprep.subr.mxu0 %v77
    %1714 = vmatpush1.msra.mxu0 %v76
    %1715 = vmatprep.subr.mxu0 %v75
    %1716 = vmatpush1.msra.mxu0 %v74
    %1717 = vmatprep.subr.mxu0 %v73
    %1718 = vmatpush1.msra.mxu0 %v72
    %1719 = vmatprep.subr.mxu0 %v71
    %1720 = vmatpush1.msra.mxu0 %v70
    %1721 = vmatprep.subr.mxu0 %v69
    %1722 = vmatpush1.msra.mxu0 %v68
    %1723 = vmatprep.subr.mxu0 %v67
    %1724 = vmatpush1.msra.mxu0 %v66
    %1725 = vmatprep.subr.mxu0 0.0
    %1726 = vmatpush2.msra.mxu0 0.0
    %1727 = vmatprep.subr.mxu0 0.0
    %1728 = vmatpush2.msra.mxu0 0.0
    %1729 = vmatprep.subr.mxu0 0.0
    %1730 = vmatpush2.msra.mxu0 0.0
    %1731 = vmatprep.subr.mxu0 0.0
    %1732 = vmatpush2.msra.mxu0 0.0
    %1733 = vmatprep.subr.mxu0 0.0
    %1734 = vmatpush2.msra.mxu0 0.0
    %1735 = vmatprep.subr.mxu0 0.0
    %1736 = vmatpush2.msra.mxu0 0.0
    %1737 = vmatprep.subr.mxu0 0.0
    %1738 = vmatpush2.msra.mxu0 0.0
    %1739 = vmatprep.subr.mxu0 0.0
    %1740 = vmatpush2.msra.mxu0 0.0
    %1741 = vmatprep.subr.mxu0 0.0
    %1742 = vmatpush2.msra.mxu0 0.0
    %1743 = vmatprep.subr.mxu0 0.0
    %1744 = vmatpush2.msra.mxu0 0.0
    %1745 = vmatprep.subr.mxu0 0.0
    %1746 = vmatpush2.msra.mxu0 0.0
    %1747 = vmatprep.subr.mxu0 0.0
    %1748 = vmatpush2.msra.mxu0 0.0
    %1749 = vmatprep.subr.mxu0 0.0
    %1750 = vmatpush2.msra.mxu0 0.0
    %1751 = vmatprep.subr.mxu0 0.0
    %1752 = vmatpush2.msra.mxu0 0.0
    %1753 = vmatprep.subr.mxu0 0.0
    %1754 = vmatpush2.msra.mxu0 0.0
    %1755 = vmatprep.subr.mxu0 0.0
    %1756 = vmatpush2.msra.mxu0 0.0
    %1757 = vmatprep.mubr.f32.mxu0 0.0
    %1758 = vmatmul.mubr.f32.gmra.mxu0 %v1556
    %v1759 = vpop.f32.mrf.mxu0
    %v1760 = vadd.f32 %v503, %v1759
    %v1761 = vpop.f32.mrf.mxu0
    %v1762 = vadd.f32 %v507, %v1761
    %1763 = vdwg.mxu0
    %1765 = vrot.lane.b32.xlu0 %v1548, 64
    %v1766 = vpop.permute.xlu0 %1765
    %v1767 = vsel %vm359, %v1766, 0
    %1769 = vmatprep.subr.mxu0 0.0
    %1770 = vmatpush1.msra.mxu0 0.0
    %1771 = vmatprep.subr.mxu0 0.0
    %1772 = vmatpush1.msra.mxu0 0.0
    %1773 = vmatprep.subr.mxu0 0.0
    %1774 = vmatpush1.msra.mxu0 0.0
    %1775 = vmatprep.subr.mxu0 0.0
    %1776 = vmatpush1.msra.mxu0 0.0
    %1777 = vmatprep.subr.mxu0 0.0
    %1778 = vmatpush1.msra.mxu0 0.0
    %1779 = vmatprep.subr.mxu0 0.0
    %1780 = vmatpush1.msra.mxu0 0.0
    %1781 = vmatprep.subr.mxu0 0.0
    %1782 = vmatpush1.msra.mxu0 0.0
    %1783 = vmatprep.subr.mxu0 0.0
    %1784 = vmatpush1.msra.mxu0 0.0
    %1785 = vmatprep.subr.mxu0 %v97
    %1786 = vmatpush1.msra.mxu0 %v96
    %1787 = vmatprep.subr.mxu0 %v95
    %1788 = vmatpush1.msra.mxu0 %v94
    %1789 = vmatprep.subr.mxu0 %v93
    %1790 = vmatpush1.msra.mxu0 %v92
    %1791 = vmatprep.subr.mxu0 %v91
    %1792 = vmatpush1.msra.mxu0 %v90
    %1793 = vmatprep.subr.mxu0 %v89
    %1794 = vmatpush1.msra.mxu0 %v88
    %1795 = vmatprep.subr.mxu0 %v87
    %1796 = vmatpush1.msra.mxu0 %v86
    %1797 = vmatprep.subr.mxu0 %v85
    %1798 = vmatpush1.msra.mxu0 %v84
    %1799 = vmatprep.subr.mxu0 %v83
    %1800 = vmatpush1.msra.mxu0 %v82
    %1801 = vmatprep.subr.mxu0 0.0
    %1802 = vmatpush2.msra.mxu0 0.0
    %1803 = vmatprep.subr.mxu0 0.0
    %1804 = vmatpush2.msra.mxu0 0.0
    %1805 = vmatprep.subr.mxu0 0.0
    %1806 = vmatpush2.msra.mxu0 0.0
    %1807 = vmatprep.subr.mxu0 0.0
    %1808 = vmatpush2.msra.mxu0 0.0
    %1809 = vmatprep.subr.mxu0 0.0
    %1810 = vmatpush2.msra.mxu0 0.0
    %1811 = vmatprep.subr.mxu0 0.0
    %1812 = vmatpush2.msra.mxu0 0.0
    %1813 = vmatprep.subr.mxu0 0.0
    %1814 = vmatpush2.msra.mxu0 0.0
    %1815 = vmatprep.subr.mxu0 0.0
    %1816 = vmatpush2.msra.mxu0 0.0
    %1817 = vmatprep.subr.mxu0 0.0
    %1818 = vmatpush2.msra.mxu0 0.0
    %1819 = vmatprep.subr.mxu0 0.0
    %1820 = vmatpush2.msra.mxu0 0.0
    %1821 = vmatprep.subr.mxu0 0.0
    %1822 = vmatpush2.msra.mxu0 0.0
    %1823 = vmatprep.subr.mxu0 0.0
    %1824 = vmatpush2.msra.mxu0 0.0
    %1825 = vmatprep.subr.mxu0 0.0
    %1826 = vmatpush2.msra.mxu0 0.0
    %1827 = vmatprep.subr.mxu0 0.0
    %1828 = vmatpush2.msra.mxu0 0.0
    %1829 = vmatprep.subr.mxu0 0.0
    %1830 = vmatpush2.msra.mxu0 0.0
    %1831 = vmatprep.subr.mxu0 0.0
    %1832 = vmatpush2.msra.mxu0 0.0
    %1833 = vmatprep.mubr.f32.mxu0 0.0
    %1834 = vmatmul.mubr.f32.gmra.mxu0 %v1767
    %v1835 = vpop.f32.mrf.mxu0
    %v1836 = vadd.f32 0.0, %v1835
    %v1837 = vpop.f32.mrf.mxu0
    %v1838 = vadd.f32 0.0, %v1837
    %1839 = vdwg.mxu0
    %v1840 = vadd.f32 %v1760, %v1836
    %v1841 = vadd.f32 %v1762, %v1838
    %v1842 = vxor.u32 %v1840, 2147483648
    %v1843 = vxor.u32 %v1841, 2147483648
    %v1844 = vmul.f32 %v1842, 1.442695
    %v1845 = vpow.pop %v1844
    %v1846 = vmul.f32 %v1843, 1.442695
    %v1847 = vpow.pop %v1846
    %v1848 = vadd.f32 %v1845, 1.0
    %v1849 = vadd.f32 %v1847, 1.0
    %v1850 = vrcp.pop %v1848
    %v1851 = vmul.f32 1.0, %v1850
    %v1852 = vrcp.pop %v1849
    %v1853 = vmul.f32 1.0, %v1852
    %v1854 = vtanh.pop %v1841
    %v1855 = vmul.f32 %v1851, %v1546
    %v1856 = vmul.f32 %v1851, %v1854
    %1858 = vrot.lane.b32.xlu0 %v1856, 64
    %v1859 = vpop.permute.xlu0 %1858
    %v1861 = vadd.f32 %v1855, %v1859
    %v1862 = vtanh.pop %v1861
    %v1863 = vmul.f32 %v1853, %v1862
    %v1866 = vrot.slane %v1691, 5
    %v1867 = vrot.slane %v1692, 4
    %v1868 = vsel %vm355, %v1867, %v1866
    %1869 = vrot.lane.b32.xlu0 %v1868, 64
    %v1870 = vpop.permute.xlu0 %1869
    %v1871 = vsel %vm359, %v1870, 0
    %1873 = vmatprep.subr.mxu0 0.0
    %1874 = vmatpush1.msra.mxu0 0.0
    %1875 = vmatprep.subr.mxu0 0.0
    %1876 = vmatpush1.msra.mxu0 0.0
    %1877 = vmatprep.subr.mxu0 0.0
    %1878 = vmatpush1.msra.mxu0 0.0
    %1879 = vmatprep.subr.mxu0 0.0
    %1880 = vmatpush1.msra.mxu0 0.0
    %1881 = vmatprep.subr.mxu0 0.0
    %1882 = vmatpush1.msra.mxu0 0.0
    %1883 = vmatprep.subr.mxu0 0.0
    %1884 = vmatpush1.msra.mxu0 0.0
    %1885 = vmatprep.subr.mxu0 0.0
    %1886 = vmatpush1.msra.mxu0 0.0
    %1887 = vmatprep.subr.mxu0 0.0
    %1888 = vmatpush1.msra.mxu0 0.0
    %1889 = vmatprep.subr.mxu0 %v65
    %1890 = vmatpush1.msra.mxu0 %v64
    %1891 = vmatprep.subr.mxu0 %v63
    %1892 = vmatpush1.msra.mxu0 %v62
    %1893 = vmatprep.subr.mxu0 %v61
    %1894 = vmatpush1.msra.mxu0 %v60
    %1895 = vmatprep.subr.mxu0 %v59
    %1896 = vmatpush1.msra.mxu0 %v58
    %1897 = vmatprep.subr.mxu0 %v57
    %1898 = vmatpush1.msra.mxu0 %v56
    %1899 = vmatprep.subr.mxu0 %v55
    %1900 = vmatpush1.msra.mxu0 %v54
    %1901 = vmatprep.subr.mxu0 %v53
    %1902 = vmatpush1.msra.mxu0 %v52
    %1903 = vmatprep.subr.mxu0 %v51
    %1904 = vmatpush1.msra.mxu0 %v50
    %1905 = vmatprep.subr.mxu0 0.0
    %1906 = vmatpush2.msra.mxu0 0.0
    %1907 = vmatprep.subr.mxu0 0.0
    %1908 = vmatpush2.msra.mxu0 0.0
    %1909 = vmatprep.subr.mxu0 0.0
    %1910 = vmatpush2.msra.mxu0 0.0
    %1911 = vmatprep.subr.mxu0 0.0
    %1912 = vmatpush2.msra.mxu0 0.0
    %1913 = vmatprep.subr.mxu0 0.0
    %1914 = vmatpush2.msra.mxu0 0.0
    %1915 = vmatprep.subr.mxu0 0.0
    %1916 = vmatpush2.msra.mxu0 0.0
    %1917 = vmatprep.subr.mxu0 0.0
    %1918 = vmatpush2.msra.mxu0 0.0
    %1919 = vmatprep.subr.mxu0 0.0
    %1920 = vmatpush2.msra.mxu0 0.0
    %1921 = vmatprep.subr.mxu0 0.0
    %1922 = vmatpush2.msra.mxu0 0.0
    %1923 = vmatprep.subr.mxu0 0.0
    %1924 = vmatpush2.msra.mxu0 0.0
    %1925 = vmatprep.subr.mxu0 0.0
    %1926 = vmatpush2.msra.mxu0 0.0
    %1927 = vmatprep.subr.mxu0 0.0
    %1928 = vmatpush2.msra.mxu0 0.0
    %1929 = vmatprep.subr.mxu0 0.0
    %1930 = vmatpush2.msra.mxu0 0.0
    %1931 = vmatprep.subr.mxu0 0.0
    %1932 = vmatpush2.msra.mxu0 0.0
    %1933 = vmatprep.subr.mxu0 0.0
    %1934 = vmatpush2.msra.mxu0 0.0
    %1935 = vmatprep.subr.mxu0 0.0
    %1936 = vmatpush2.msra.mxu0 0.0
    %1937 = vmatprep.mubr.f32.mxu0 0.0
    %1938 = vmatmul.mubr.f32.gmra.mxu0 %v1871
    %v1939 = vpop.f32.mrf.mxu0
    %v1940 = vadd.f32 0.0, %v1939
    %v1941 = vpop.f32.mrf.mxu0
    %v1942 = vadd.f32 0.0, %v1941
    %1943 = vdwg.mxu0
    %v1946 = vrot.slane %v1940, 2
    %v1947 = vrot.slane %v1942, 2
    %v1948 = vrot.slane %v1940, 3
    %v1949 = vrot.slane %v1942, 3
    %v1954 = vadd.f32 %v308, %v1946
    %v1955 = vadd.f32 %v309, %v1947
    %v1956 = vadd.f32 %v310, %v1948
    %v1957 = vadd.f32 %v311, %v1949
    %v1958 = vxor.u32 %v1954, 2147483648
    %v1959 = vxor.u32 %v1955, 2147483648
    %v1960 = vxor.u32 %v1956, 2147483648
    %v1961 = vxor.u32 %v1957, 2147483648
    %v1962 = vmul.f32 %v1958, 1.442695
    %v1963 = vpow.pop %v1962
    %v1964 = vmul.f32 %v1959, 1.442695
    %v1965 = vpow.pop %v1964
    %v1966 = vmul.f32 %v1960, 1.442695
    %v1967 = vpow.pop %v1966
    %v1968 = vmul.f32 %v1961, 1.442695
    %v1969 = vpow.pop %v1968
    %v1970 = vadd.f32 %v1963, 1.0
    %v1971 = vadd.f32 %v1965, 1.0
    %v1972 = vadd.f32 %v1967, 1.0
    %v1973 = vadd.f32 %v1969, 1.0
    %v1974 = vrcp.pop %v1970
    %v1975 = vmul.f32 1.0, %v1974
    %v1976 = vrcp.pop %v1971
    %v1977 = vmul.f32 1.0, %v1976
    %v1978 = vrcp.pop %v1972
    %v1979 = vmul.f32 1.0, %v1978
    %v1980 = vrcp.pop %v1973
    %v1981 = vmul.f32 1.0, %v1980
    %v1982 = vtanh.pop %v1955
    %v1983 = vtanh.pop %v1957
    %v1986 = vrot.slane %v1687, 7
    %v1987 = vrot.slane %v1688, 7
    %v1990 = vmul.f32 %v1975, %v1986
    %v1991 = vmul.f32 %v1979, %v1987
    %v1992 = vmul.f32 %v1975, %v1982
    %v1993 = vmul.f32 %v1979, %v1983
    %1996 = vrot.lane.b32.xlu0 %v1992, 64
    %v1997 = vpop.permute.xlu0 %1996
    %1998 = vrot.lane.b32.xlu0 %v1993, 64
    %v1999 = vpop.permute.xlu0 %1998
    %v2002 = vadd.f32 %v1990, %v1997
    %v2003 = vadd.f32 %v1991, %v1999
    %v2004 = vtanh.pop %v2002
    %v2005 = vtanh.pop %v2003
    %v2006 = vmul.f32 %v1977, %v2004
    %v2007 = vmul.f32 %v1981, %v2005
    %2008 = vmatprep.subr.mxu0 0.0
    %2009 = vmatpush1.msra.mxu0 0.0
    %2010 = vmatprep.subr.mxu0 0.0
    %2011 = vmatpush1.msra.mxu0 0.0
    %2012 = vmatprep.subr.mxu0 0.0
    %2013 = vmatpush1.msra.mxu0 0.0
    %2014 = vmatprep.subr.mxu0 0.0
    %2015 = vmatpush1.msra.mxu0 0.0
    %2016 = vmatprep.subr.mxu0 0.0
    %2017 = vmatpush1.msra.mxu0 0.0
    %2018 = vmatprep.subr.mxu0 0.0
    %2019 = vmatpush1.msra.mxu0 0.0
    %2020 = vmatprep.subr.mxu0 0.0
    %2021 = vmatpush1.msra.mxu0 0.0
    %2022 = vmatprep.subr.mxu0 0.0
    %2023 = vmatpush1.msra.mxu0 0.0
    %2024 = vmatprep.subr.mxu0 %v81
    %2025 = vmatpush1.msra.mxu0 %v80
    %2026 = vmatprep.subr.mxu0 %v79
    %2027 = vmatpush1.msra.mxu0 %v78
    %2028 = vmatprep.subr.mxu0 %v77
    %2029 = vmatpush1.msra.mxu0 %v76
    %2030 = vmatprep.subr.mxu0 %v75
    %2031 = vmatpush1.msra.mxu0 %v74
    %2032 = vmatprep.subr.mxu0 %v73
    %2033 = vmatpush1.msra.mxu0 %v72
    %2034 = vmatprep.subr.mxu0 %v71
    %2035 = vmatpush1.msra.mxu0 %v70
    %2036 = vmatprep.subr.mxu0 %v69
    %2037 = vmatpush1.msra.mxu0 %v68
    %2038 = vmatprep.subr.mxu0 %v67
    %2039 = vmatpush1.msra.mxu0 %v66
    %2040 = vmatprep.subr.mxu0 0.0
    %2041 = vmatpush2.msra.mxu0 0.0
    %2042 = vmatprep.subr.mxu0 0.0
    %2043 = vmatpush2.msra.mxu0 0.0
    %2044 = vmatprep.subr.mxu0 0.0
    %2045 = vmatpush2.msra.mxu0 0.0
    %2046 = vmatprep.subr.mxu0 0.0
    %2047 = vmatpush2.msra.mxu0 0.0
    %2048 = vmatprep.subr.mxu0 0.0
    %2049 = vmatpush2.msra.mxu0 0.0
    %2050 = vmatprep.subr.mxu0 0.0
    %2051 = vmatpush2.msra.mxu0 0.0
    %2052 = vmatprep.subr.mxu0 0.0
    %2053 = vmatpush2.msra.mxu0 0.0
    %2054 = vmatprep.subr.mxu0 0.0
    %2055 = vmatpush2.msra.mxu0 0.0
    %2056 = vmatprep.subr.mxu0 0.0
    %2057 = vmatpush2.msra.mxu0 0.0
    %2058 = vmatprep.subr.mxu0 0.0
    %2059 = vmatpush2.msra.mxu0 0.0
    %2060 = vmatprep.subr.mxu0 0.0
    %2061 = vmatpush2.msra.mxu0 0.0
    %2062 = vmatprep.subr.mxu0 0.0
    %2063 = vmatpush2.msra.mxu0 0.0
    %2064 = vmatprep.subr.mxu0 0.0
    %2065 = vmatpush2.msra.mxu0 0.0
    %2066 = vmatprep.subr.mxu0 0.0
    %2067 = vmatpush2.msra.mxu0 0.0
    %2068 = vmatprep.subr.mxu0 0.0
    %2069 = vmatpush2.msra.mxu0 0.0
    %2070 = vmatprep.subr.mxu0 0.0
    %2071 = vmatpush2.msra.mxu0 0.0
    %2072 = vmatprep.mubr.f32.mxu0 0.0
    %2073 = vmatmul.mubr.f32.gmra.mxu0 %v1871
    %v2074 = vpop.f32.mrf.mxu0
    %v2075 = vadd.f32 %v503, %v2074
    %v2076 = vpop.f32.mrf.mxu0
    %v2077 = vadd.f32 %v507, %v2076
    %2078 = vdwg.mxu0
    %2080 = vrot.lane.b32.xlu0 %v1863, 64
    %v2081 = vpop.permute.xlu0 %2080
    %v2082 = vsel %vm359, %v2081, 0
    %2084 = vmatprep.subr.mxu0 0.0
    %2085 = vmatpush1.msra.mxu0 0.0
    %2086 = vmatprep.subr.mxu0 0.0
    %2087 = vmatpush1.msra.mxu0 0.0
    %2088 = vmatprep.subr.mxu0 0.0
    %2089 = vmatpush1.msra.mxu0 0.0
    %2090 = vmatprep.subr.mxu0 0.0
    %2091 = vmatpush1.msra.mxu0 0.0
    %2092 = vmatprep.subr.mxu0 0.0
    %2093 = vmatpush1.msra.mxu0 0.0
    %2094 = vmatprep.subr.mxu0 0.0
    %2095 = vmatpush1.msra.mxu0 0.0
    %2096 = vmatprep.subr.mxu0 0.0
    %2097 = vmatpush1.msra.mxu0 0.0
    %2098 = vmatprep.subr.mxu0 0.0
    %2099 = vmatpush1.msra.mxu0 0.0
    %2100 = vmatprep.subr.mxu0 %v97
    %2101 = vmatpush1.msra.mxu0 %v96
    %2102 = vmatprep.subr.mxu0 %v95
    %2103 = vmatpush1.msra.mxu0 %v94
    %2104 = vmatprep.subr.mxu0 %v93
    %2105 = vmatpush1.msra.mxu0 %v92
    %2106 = vmatprep.subr.mxu0 %v91
    %2107 = vmatpush1.msra.mxu0 %v90
    %2108 = vmatprep.subr.mxu0 %v89
    %2109 = vmatpush1.msra.mxu0 %v88
    %2110 = vmatprep.subr.mxu0 %v87
    %2111 = vmatpush1.msra.mxu0 %v86
    %2112 = vmatprep.subr.mxu0 %v85
    %2113 = vmatpush1.msra.mxu0 %v84
    %2114 = vmatprep.subr.mxu0 %v83
    %2115 = vmatpush1.msra.mxu0 %v82
    %2116 = vmatprep.subr.mxu0 0.0
    %2117 = vmatpush2.msra.mxu0 0.0
    %2118 = vmatprep.subr.mxu0 0.0
    %2119 = vmatpush2.msra.mxu0 0.0
    %2120 = vmatprep.subr.mxu0 0.0
    %2121 = vmatpush2.msra.mxu0 0.0
    %2122 = vmatprep.subr.mxu0 0.0
    %2123 = vmatpush2.msra.mxu0 0.0
    %2124 = vmatprep.subr.mxu0 0.0
    %2125 = vmatpush2.msra.mxu0 0.0
    %2126 = vmatprep.subr.mxu0 0.0
    %2127 = vmatpush2.msra.mxu0 0.0
    %2128 = vmatprep.subr.mxu0 0.0
    %2129 = vmatpush2.msra.mxu0 0.0
    %2130 = vmatprep.subr.mxu0 0.0
    %2131 = vmatpush2.msra.mxu0 0.0
    %2132 = vmatprep.subr.mxu0 0.0
    %2133 = vmatpush2.msra.mxu0 0.0
    %2134 = vmatprep.subr.mxu0 0.0
    %2135 = vmatpush2.msra.mxu0 0.0
    %2136 = vmatprep.subr.mxu0 0.0
    %2137 = vmatpush2.msra.mxu0 0.0
    %2138 = vmatprep.subr.mxu0 0.0
    %2139 = vmatpush2.msra.mxu0 0.0
    %2140 = vmatprep.subr.mxu0 0.0
    %2141 = vmatpush2.msra.mxu0 0.0
    %2142 = vmatprep.subr.mxu0 0.0
    %2143 = vmatpush2.msra.mxu0 0.0
    %2144 = vmatprep.subr.mxu0 0.0
    %2145 = vmatpush2.msra.mxu0 0.0
    %2146 = vmatprep.subr.mxu0 0.0
    %2147 = vmatpush2.msra.mxu0 0.0
    %2148 = vmatprep.mubr.f32.mxu0 0.0
    %2149 = vmatmul.mubr.f32.gmra.mxu0 %v2082
    %v2150 = vpop.f32.mrf.mxu0
    %v2151 = vadd.f32 0.0, %v2150
    %v2152 = vpop.f32.mrf.mxu0
    %v2153 = vadd.f32 0.0, %v2152
    %2154 = vdwg.mxu0
    %v2155 = vadd.f32 %v2075, %v2151
    %v2156 = vadd.f32 %v2077, %v2153
    %v2157 = vxor.u32 %v2155, 2147483648
    %v2158 = vxor.u32 %v2156, 2147483648
    %v2159 = vmul.f32 %v2157, 1.442695
    %v2160 = vpow.pop %v2159
    %v2161 = vmul.f32 %v2158, 1.442695
    %v2162 = vpow.pop %v2161
    %v2163 = vadd.f32 %v2160, 1.0
    %v2164 = vadd.f32 %v2162, 1.0
    %v2165 = vrcp.pop %v2163
    %v2166 = vmul.f32 1.0, %v2165
    %v2167 = vrcp.pop %v2164
    %v2168 = vmul.f32 1.0, %v2167
    %v2169 = vtanh.pop %v2156
    %v2170 = vmul.f32 %v2166, %v1861
    %v2171 = vmul.f32 %v2166, %v2169
    %2173 = vrot.lane.b32.xlu0 %v2171, 64
    %v2174 = vpop.permute.xlu0 %2173
    %v2176 = vadd.f32 %v2170, %v2174
    %v2177 = vtanh.pop %v2176
    %v2178 = vmul.f32 %v2168, %v2177
    %v2181 = vrot.slane %v2006, 6
    %v2182 = vrot.slane %v2007, 5
    %v2183 = vsel %vm355, %v2182, %v2181
    %2184 = vrot.lane.b32.xlu0 %v2183, 64
    %v2185 = vpop.permute.xlu0 %2184
    %v2186 = vsel %vm359, %v2185, 0
    %2188 = vmatprep.subr.mxu0 0.0
    %2189 = vmatpush1.msra.mxu0 0.0
    %2190 = vmatprep.subr.mxu0 0.0
    %2191 = vmatpush1.msra.mxu0 0.0
    %2192 = vmatprep.subr.mxu0 0.0
    %2193 = vmatpush1.msra.mxu0 0.0
    %2194 = vmatprep.subr.mxu0 0.0
    %2195 = vmatpush1.msra.mxu0 0.0
    %2196 = vmatprep.subr.mxu0 0.0
    %2197 = vmatpush1.msra.mxu0 0.0
    %2198 = vmatprep.subr.mxu0 0.0
    %2199 = vmatpush1.msra.mxu0 0.0
    %2200 = vmatprep.subr.mxu0 0.0
    %2201 = vmatpush1.msra.mxu0 0.0
    %2202 = vmatprep.subr.mxu0 0.0
    %2203 = vmatpush1.msra.mxu0 0.0
    %2204 = vmatprep.subr.mxu0 %v65
    %2205 = vmatpush1.msra.mxu0 %v64
    %2206 = vmatprep.subr.mxu0 %v63
    %2207 = vmatpush1.msra.mxu0 %v62
    %2208 = vmatprep.subr.mxu0 %v61
    %2209 = vmatpush1.msra.mxu0 %v60
    %2210 = vmatprep.subr.mxu0 %v59
    %2211 = vmatpush1.msra.mxu0 %v58
    %2212 = vmatprep.subr.mxu0 %v57
    %2213 = vmatpush1.msra.mxu0 %v56
    %2214 = vmatprep.subr.mxu0 %v55
    %2215 = vmatpush1.msra.mxu0 %v54
    %2216 = vmatprep.subr.mxu0 %v53
    %2217 = vmatpush1.msra.mxu0 %v52
    %2218 = vmatprep.subr.mxu0 %v51
    %2219 = vmatpush1.msra.mxu0 %v50
    %2220 = vmatprep.subr.mxu0 0.0
    %2221 = vmatpush2.msra.mxu0 0.0
    %2222 = vmatprep.subr.mxu0 0.0
    %2223 = vmatpush2.msra.mxu0 0.0
    %2224 = vmatprep.subr.mxu0 0.0
    %2225 = vmatpush2.msra.mxu0 0.0
    %2226 = vmatprep.subr.mxu0 0.0
    %2227 = vmatpush2.msra.mxu0 0.0
    %2228 = vmatprep.subr.mxu0 0.0
    %2229 = vmatpush2.msra.mxu0 0.0
    %2230 = vmatprep.subr.mxu0 0.0
    %2231 = vmatpush2.msra.mxu0 0.0
    %2232 = vmatprep.subr.mxu0 0.0
    %2233 = vmatpush2.msra.mxu0 0.0
    %2234 = vmatprep.subr.mxu0 0.0
    %2235 = vmatpush2.msra.mxu0 0.0
    %2236 = vmatprep.subr.mxu0 0.0
    %2237 = vmatpush2.msra.mxu0 0.0
    %2238 = vmatprep.subr.mxu0 0.0
    %2239 = vmatpush2.msra.mxu0 0.0
    %2240 = vmatprep.subr.mxu0 0.0
    %2241 = vmatpush2.msra.mxu0 0.0
    %2242 = vmatprep.subr.mxu0 0.0
    %2243 = vmatpush2.msra.mxu0 0.0
    %2244 = vmatprep.subr.mxu0 0.0
    %2245 = vmatpush2.msra.mxu0 0.0
    %2246 = vmatprep.subr.mxu0 0.0
    %2247 = vmatpush2.msra.mxu0 0.0
    %2248 = vmatprep.subr.mxu0 0.0
    %2249 = vmatpush2.msra.mxu0 0.0
    %2250 = vmatprep.subr.mxu0 0.0
    %2251 = vmatpush2.msra.mxu0 0.0
    %2252 = vmatprep.mubr.f32.mxu0 0.0
    %2253 = vmatmul.mubr.f32.gmra.mxu0 %v2186
    %v2254 = vpop.f32.mrf.mxu0
    %v2255 = vadd.f32 0.0, %v2254
    %v2256 = vpop.f32.mrf.mxu0
    %v2257 = vadd.f32 0.0, %v2256
    %2258 = vdwg.mxu0
    %v2261 = vrot.slane %v2255, 1
    %v2262 = vrot.slane %v2257, 1
    %v2263 = vrot.slane %v2255, 2
    %v2264 = vrot.slane %v2257, 2
    %v2269 = vadd.f32 %v308, %v2261
    %v2270 = vadd.f32 %v309, %v2262
    %v2271 = vadd.f32 %v310, %v2263
    %v2272 = vadd.f32 %v311, %v2264
    %v2273 = vxor.u32 %v2269, 2147483648
    %v2274 = vxor.u32 %v2270, 2147483648
    %v2275 = vxor.u32 %v2271, 2147483648
    %v2276 = vxor.u32 %v2272, 2147483648
    %v2277 = vmul.f32 %v2273, 1.442695
    %v2278 = vpow.pop %v2277
    %v2279 = vmul.f32 %v2274, 1.442695
    %v2280 = vpow.pop %v2279
    %v2281 = vmul.f32 %v2275, 1.442695
    %v2282 = vpow.pop %v2281
    %v2283 = vmul.f32 %v2276, 1.442695
    %v2284 = vpow.pop %v2283
    %v2285 = vadd.f32 %v2278, 1.0
    %v2286 = vadd.f32 %v2280, 1.0
    %v2287 = vadd.f32 %v2282, 1.0
    %v2288 = vadd.f32 %v2284, 1.0
    %v2289 = vrcp.pop %v2285
    %v2290 = vmul.f32 1.0, %v2289
    %v2291 = vrcp.pop %v2286
    %v2292 = vmul.f32 1.0, %v2291
    %v2293 = vrcp.pop %v2287
    %v2294 = vmul.f32 1.0, %v2293
    %v2295 = vrcp.pop %v2288
    %v2296 = vmul.f32 1.0, %v2295
    %v2297 = vtanh.pop %v2270
    %v2298 = vtanh.pop %v2272
    %v2301 = vrot.slane %v2002, 7
    %v2302 = vrot.slane %v2003, 7
    %v2305 = vmul.f32 %v2290, %v2301
    %v2306 = vmul.f32 %v2294, %v2302
    %v2307 = vmul.f32 %v2290, %v2297
    %v2308 = vmul.f32 %v2294, %v2298
    %2311 = vrot.lane.b32.xlu0 %v2307, 64
    %v2312 = vpop.permute.xlu0 %2311
    %2313 = vrot.lane.b32.xlu0 %v2308, 64
    %v2314 = vpop.permute.xlu0 %2313
    %v2317 = vadd.f32 %v2305, %v2312
    %v2318 = vadd.f32 %v2306, %v2314
    %v2319 = vtanh.pop %v2317
    %v2320 = vtanh.pop %v2318
    %v2321 = vmul.f32 %v2292, %v2319
    %v2322 = vmul.f32 %v2296, %v2320
    %2323 = vmatprep.subr.mxu0 0.0
    %2324 = vmatpush1.msra.mxu0 0.0
    %2325 = vmatprep.subr.mxu0 0.0
    %2326 = vmatpush1.msra.mxu0 0.0
    %2327 = vmatprep.subr.mxu0 0.0
    %2328 = vmatpush1.msra.mxu0 0.0
    %2329 = vmatprep.subr.mxu0 0.0
    %2330 = vmatpush1.msra.mxu0 0.0
    %2331 = vmatprep.subr.mxu0 0.0
    %2332 = vmatpush1.msra.mxu0 0.0
    %2333 = vmatprep.subr.mxu0 0.0
    %2334 = vmatpush1.msra.mxu0 0.0
    %2335 = vmatprep.subr.mxu0 0.0
    %2336 = vmatpush1.msra.mxu0 0.0
    %2337 = vmatprep.subr.mxu0 0.0
    %2338 = vmatpush1.msra.mxu0 0.0
    %2339 = vmatprep.subr.mxu0 %v81
    %2340 = vmatpush1.msra.mxu0 %v80
    %2341 = vmatprep.subr.mxu0 %v79
    %2342 = vmatpush1.msra.mxu0 %v78
    %2343 = vmatprep.subr.mxu0 %v77
    %2344 = vmatpush1.msra.mxu0 %v76
    %2345 = vmatprep.subr.mxu0 %v75
    %2346 = vmatpush1.msra.mxu0 %v74
    %2347 = vmatprep.subr.mxu0 %v73
    %2348 = vmatpush1.msra.mxu0 %v72
    %2349 = vmatprep.subr.mxu0 %v71
    %2350 = vmatpush1.msra.mxu0 %v70
    %2351 = vmatprep.subr.mxu0 %v69
    %2352 = vmatpush1.msra.mxu0 %v68
    %2353 = vmatprep.subr.mxu0 %v67
    %2354 = vmatpush1.msra.mxu0 %v66
    %2355 = vmatprep.subr.mxu0 0.0
    %2356 = vmatpush2.msra.mxu0 0.0
    %2357 = vmatprep.subr.mxu0 0.0
    %2358 = vmatpush2.msra.mxu0 0.0
    %2359 = vmatprep.subr.mxu0 0.0
    %2360 = vmatpush2.msra.mxu0 0.0
    %2361 = vmatprep.subr.mxu0 0.0
    %2362 = vmatpush2.msra.mxu0 0.0
    %2363 = vmatprep.subr.mxu0 0.0
    %2364 = vmatpush2.msra.mxu0 0.0
    %2365 = vmatprep.subr.mxu0 0.0
    %2366 = vmatpush2.msra.mxu0 0.0
    %2367 = vmatprep.subr.mxu0 0.0
    %2368 = vmatpush2.msra.mxu0 0.0
    %2369 = vmatprep.subr.mxu0 0.0
    %2370 = vmatpush2.msra.mxu0 0.0
    %2371 = vmatprep.subr.mxu0 0.0
    %2372 = vmatpush2.msra.mxu0 0.0
    %2373 = vmatprep.subr.mxu0 0.0
    %2374 = vmatpush2.msra.mxu0 0.0
    %2375 = vmatprep.subr.mxu0 0.0
    %2376 = vmatpush2.msra.mxu0 0.0
    %2377 = vmatprep.subr.mxu0 0.0
    %2378 = vmatpush2.msra.mxu0 0.0
    %2379 = vmatprep.subr.mxu0 0.0
    %2380 = vmatpush2.msra.mxu0 0.0
    %2381 = vmatprep.subr.mxu0 0.0
    %2382 = vmatpush2.msra.mxu0 0.0
    %2383 = vmatprep.subr.mxu0 0.0
    %2384 = vmatpush2.msra.mxu0 0.0
    %2385 = vmatprep.subr.mxu0 0.0
    %2386 = vmatpush2.msra.mxu0 0.0
    %2387 = vmatprep.mubr.f32.mxu0 0.0
    %2388 = vmatmul.mubr.f32.gmra.mxu0 %v2186
    %v2389 = vpop.f32.mrf.mxu0
    %v2390 = vadd.f32 %v503, %v2389
    %v2391 = vpop.f32.mrf.mxu0
    %v2392 = vadd.f32 %v507, %v2391
    %2393 = vdwg.mxu0
    %2395 = vrot.lane.b32.xlu0 %v2178, 64
    %v2396 = vpop.permute.xlu0 %2395
    %v2397 = vsel %vm359, %v2396, 0
    %2399 = vmatprep.subr.mxu0 0.0
    %2400 = vmatpush1.msra.mxu0 0.0
    %2401 = vmatprep.subr.mxu0 0.0
    %2402 = vmatpush1.msra.mxu0 0.0
    %2403 = vmatprep.subr.mxu0 0.0
    %2404 = vmatpush1.msra.mxu0 0.0
    %2405 = vmatprep.subr.mxu0 0.0
    %2406 = vmatpush1.msra.mxu0 0.0
    %2407 = vmatprep.subr.mxu0 0.0
    %2408 = vmatpush1.msra.mxu0 0.0
    %2409 = vmatprep.subr.mxu0 0.0
    %2410 = vmatpush1.msra.mxu0 0.0
    %2411 = vmatprep.subr.mxu0 0.0
    %2412 = vmatpush1.msra.mxu0 0.0
    %2413 = vmatprep.subr.mxu0 0.0
    %2414 = vmatpush1.msra.mxu0 0.0
    %2415 = vmatprep.subr.mxu0 %v97
    %2416 = vmatpush1.msra.mxu0 %v96
    %2417 = vmatprep.subr.mxu0 %v95
    %2418 = vmatpush1.msra.mxu0 %v94
    %2419 = vmatprep.subr.mxu0 %v93
    %2420 = vmatpush1.msra.mxu0 %v92
    %2421 = vmatprep.subr.mxu0 %v91
    %2422 = vmatpush1.msra.mxu0 %v90
    %2423 = vmatprep.subr.mxu0 %v89
    %2424 = vmatpush1.msra.mxu0 %v88
    %2425 = vmatprep.subr.mxu0 %v87
    %2426 = vmatpush1.msra.mxu0 %v86
    %2427 = vmatprep.subr.mxu0 %v85
    %2428 = vmatpush1.msra.mxu0 %v84
    %2429 = vmatprep.subr.mxu0 %v83
    %2430 = vmatpush1.msra.mxu0 %v82
    %2431 = vmatprep.subr.mxu0 0.0
    %2432 = vmatpush2.msra.mxu0 0.0
    %2433 = vmatprep.subr.mxu0 0.0
    %2434 = vmatpush2.msra.mxu0 0.0
    %2435 = vmatprep.subr.mxu0 0.0
    %2436 = vmatpush2.msra.mxu0 0.0
    %2437 = vmatprep.subr.mxu0 0.0
    %2438 = vmatpush2.msra.mxu0 0.0
    %2439 = vmatprep.subr.mxu0 0.0
    %2440 = vmatpush2.msra.mxu0 0.0
    %2441 = vmatprep.subr.mxu0 0.0
    %2442 = vmatpush2.msra.mxu0 0.0
    %2443 = vmatprep.subr.mxu0 0.0
    %2444 = vmatpush2.msra.mxu0 0.0
    %2445 = vmatprep.subr.mxu0 0.0
    %2446 = vmatpush2.msra.mxu0 0.0
    %2447 = vmatprep.subr.mxu0 0.0
    %2448 = vmatpush2.msra.mxu0 0.0
    %2449 = vmatprep.subr.mxu0 0.0
    %2450 = vmatpush2.msra.mxu0 0.0
    %2451 = vmatprep.subr.mxu0 0.0
    %2452 = vmatpush2.msra.mxu0 0.0
    %2453 = vmatprep.subr.mxu0 0.0
    %2454 = vmatpush2.msra.mxu0 0.0
    %2455 = vmatprep.subr.mxu0 0.0
    %2456 = vmatpush2.msra.mxu0 0.0
    %2457 = vmatprep.subr.mxu0 0.0
    %2458 = vmatpush2.msra.mxu0 0.0
    %2459 = vmatprep.subr.mxu0 0.0
    %2460 = vmatpush2.msra.mxu0 0.0
    %2461 = vmatprep.subr.mxu0 0.0
    %2462 = vmatpush2.msra.mxu0 0.0
    %2463 = vmatprep.mubr.f32.mxu0 0.0
    %2464 = vmatmul.mubr.f32.gmra.mxu0 %v2397
    %v2465 = vpop.f32.mrf.mxu0
    %v2466 = vadd.f32 0.0, %v2465
    %v2467 = vpop.f32.mrf.mxu0
    %v2468 = vadd.f32 0.0, %v2467
    %2469 = vdwg.mxu0
    %v2470 = vadd.f32 %v2390, %v2466
    %v2471 = vadd.f32 %v2392, %v2468
    %v2472 = vxor.u32 %v2470, 2147483648
    %v2473 = vxor.u32 %v2471, 2147483648
    %v2474 = vmul.f32 %v2472, 1.442695
    %v2475 = vpow.pop %v2474
    %v2476 = vmul.f32 %v2473, 1.442695
    %v2477 = vpow.pop %v2476
    %v2478 = vadd.f32 %v2475, 1.0
    %v2479 = vadd.f32 %v2477, 1.0
    %v2480 = vrcp.pop %v2478
    %v2481 = vmul.f32 1.0, %v2480
    %v2482 = vrcp.pop %v2479
    %v2483 = vmul.f32 1.0, %v2482
    %v2484 = vtanh.pop %v2471
    %v2485 = vmul.f32 %v2481, %v2176
    %v2486 = vmul.f32 %v2481, %v2484
    %2488 = vrot.lane.b32.xlu0 %v2486, 64
    %v2489 = vpop.permute.xlu0 %2488
    %v2491 = vadd.f32 %v2485, %v2489
    %v2492 = vtanh.pop %v2491
    %v2493 = vmul.f32 %v2483, %v2492
    %v2496 = vrot.slane %v2321, 7
    %v2497 = vrot.slane %v2322, 6
    %v2498 = vsel %vm355, %v2497, %v2496
    %2499 = vrot.lane.b32.xlu0 %v2498, 64
    %v2500 = vpop.permute.xlu0 %2499
    %v2501 = vsel %vm359, %v2500, 0
    %2503 = vmatprep.subr.mxu0 0.0
    %2504 = vmatpush1.msra.mxu0 0.0
    %2505 = vmatprep.subr.mxu0 0.0
    %2506 = vmatpush1.msra.mxu0 0.0
    %2507 = vmatprep.subr.mxu0 0.0
    %2508 = vmatpush1.msra.mxu0 0.0
    %2509 = vmatprep.subr.mxu0 0.0
    %2510 = vmatpush1.msra.mxu0 0.0
    %2511 = vmatprep.subr.mxu0 0.0
    %2512 = vmatpush1.msra.mxu0 0.0
    %2513 = vmatprep.subr.mxu0 0.0
    %2514 = vmatpush1.msra.mxu0 0.0
    %2515 = vmatprep.subr.mxu0 0.0
    %2516 = vmatpush1.msra.mxu0 0.0
    %2517 = vmatprep.subr.mxu0 0.0
    %2518 = vmatpush1.msra.mxu0 0.0
    %2519 = vmatprep.subr.mxu0 %v81
    %2520 = vmatpush1.msra.mxu0 %v80
    %2521 = vmatprep.subr.mxu0 %v79
    %2522 = vmatpush1.msra.mxu0 %v78
    %2523 = vmatprep.subr.mxu0 %v77
    %2524 = vmatpush1.msra.mxu0 %v76
    %2525 = vmatprep.subr.mxu0 %v75
    %2526 = vmatpush1.msra.mxu0 %v74
    %2527 = vmatprep.subr.mxu0 %v73
    %2528 = vmatpush1.msra.mxu0 %v72
    %2529 = vmatprep.subr.mxu0 %v71
    %2530 = vmatpush1.msra.mxu0 %v70
    %2531 = vmatprep.subr.mxu0 %v69
    %2532 = vmatpush1.msra.mxu0 %v68
    %2533 = vmatprep.subr.mxu0 %v67
    %2534 = vmatpush1.msra.mxu0 %v66
    %2535 = vmatprep.subr.mxu0 0.0
    %2536 = vmatpush2.msra.mxu0 0.0
    %2537 = vmatprep.subr.mxu0 0.0
    %2538 = vmatpush2.msra.mxu0 0.0
    %2539 = vmatprep.subr.mxu0 0.0
    %2540 = vmatpush2.msra.mxu0 0.0
    %2541 = vmatprep.subr.mxu0 0.0
    %2542 = vmatpush2.msra.mxu0 0.0
    %2543 = vmatprep.subr.mxu0 0.0
    %2544 = vmatpush2.msra.mxu0 0.0
    %2545 = vmatprep.subr.mxu0 0.0
    %2546 = vmatpush2.msra.mxu0 0.0
    %2547 = vmatprep.subr.mxu0 0.0
    %2548 = vmatpush2.msra.mxu0 0.0
    %2549 = vmatprep.subr.mxu0 0.0
    %2550 = vmatpush2.msra.mxu0 0.0
    %2551 = vmatprep.subr.mxu0 0.0
    %2552 = vmatpush2.msra.mxu0 0.0
    %2553 = vmatprep.subr.mxu0 0.0
    %2554 = vmatpush2.msra.mxu0 0.0
    %2555 = vmatprep.subr.mxu0 0.0
    %2556 = vmatpush2.msra.mxu0 0.0
    %2557 = vmatprep.subr.mxu0 0.0
    %2558 = vmatpush2.msra.mxu0 0.0
    %2559 = vmatprep.subr.mxu0 0.0
    %2560 = vmatpush2.msra.mxu0 0.0
    %2561 = vmatprep.subr.mxu0 0.0
    %2562 = vmatpush2.msra.mxu0 0.0
    %2563 = vmatprep.subr.mxu0 0.0
    %2564 = vmatpush2.msra.mxu0 0.0
    %2565 = vmatprep.subr.mxu0 0.0
    %2566 = vmatpush2.msra.mxu0 0.0
    %2567 = vmatprep.mubr.f32.mxu0 0.0
    %2568 = vmatmul.mubr.f32.gmra.mxu0 %v2501
    %v2569 = vpop.f32.mrf.mxu0
    %v2570 = vadd.f32 %v503, %v2569
    %v2571 = vpop.f32.mrf.mxu0
    %v2572 = vadd.f32 %v507, %v2571
    %2573 = vdwg.mxu0
    %2575 = vrot.lane.b32.xlu0 %v2493, 64
    %v2576 = vpop.permute.xlu0 %2575
    %v2577 = vsel %vm359, %v2576, 0
    %2579 = vmatprep.subr.mxu0 0.0
    %2580 = vmatpush1.msra.mxu0 0.0
    %2581 = vmatprep.subr.mxu0 0.0
    %2582 = vmatpush1.msra.mxu0 0.0
    %2583 = vmatprep.subr.mxu0 0.0
    %2584 = vmatpush1.msra.mxu0 0.0
    %2585 = vmatprep.subr.mxu0 0.0
    %2586 = vmatpush1.msra.mxu0 0.0
    %2587 = vmatprep.subr.mxu0 0.0
    %2588 = vmatpush1.msra.mxu0 0.0
    %2589 = vmatprep.subr.mxu0 0.0
    %2590 = vmatpush1.msra.mxu0 0.0
    %2591 = vmatprep.subr.mxu0 0.0
    %2592 = vmatpush1.msra.mxu0 0.0
    %2593 = vmatprep.subr.mxu0 0.0
    %2594 = vmatpush1.msra.mxu0 0.0
    %2595 = vmatprep.subr.mxu0 %v97
    %2596 = vmatpush1.msra.mxu0 %v96
    %2597 = vmatprep.subr.mxu0 %v95
    %2598 = vmatpush1.msra.mxu0 %v94
    %2599 = vmatprep.subr.mxu0 %v93
    %2600 = vmatpush1.msra.mxu0 %v92
    %2601 = vmatprep.subr.mxu0 %v91
    %2602 = vmatpush1.msra.mxu0 %v90
    %2603 = vmatprep.subr.mxu0 %v89
    %2604 = vmatpush1.msra.mxu0 %v88
    %2605 = vmatprep.subr.mxu0 %v87
    %2606 = vmatpush1.msra.mxu0 %v86
    %2607 = vmatprep.subr.mxu0 %v85
    %2608 = vmatpush1.msra.mxu0 %v84
    %2609 = vmatprep.subr.mxu0 %v83
    %2610 = vmatpush1.msra.mxu0 %v82
    %2611 = vmatprep.subr.mxu0 0.0
    %2612 = vmatpush2.msra.mxu0 0.0
    %2613 = vmatprep.subr.mxu0 0.0
    %2614 = vmatpush2.msra.mxu0 0.0
    %2615 = vmatprep.subr.mxu0 0.0
    %2616 = vmatpush2.msra.mxu0 0.0
    %2617 = vmatprep.subr.mxu0 0.0
    %2618 = vmatpush2.msra.mxu0 0.0
    %2619 = vmatprep.subr.mxu0 0.0
    %2620 = vmatpush2.msra.mxu0 0.0
    %2621 = vmatprep.subr.mxu0 0.0
    %2622 = vmatpush2.msra.mxu0 0.0
    %2623 = vmatprep.subr.mxu0 0.0
    %2624 = vmatpush2.msra.mxu0 0.0
    %2625 = vmatprep.subr.mxu0 0.0
    %2626 = vmatpush2.msra.mxu0 0.0
    %2627 = vmatprep.subr.mxu0 0.0
    %2628 = vmatpush2.msra.mxu0 0.0
    %2629 = vmatprep.subr.mxu0 0.0
    %2630 = vmatpush2.msra.mxu0 0.0
    %2631 = vmatprep.subr.mxu0 0.0
    %2632 = vmatpush2.msra.mxu0 0.0
    %2633 = vmatprep.subr.mxu0 0.0
    %2634 = vmatpush2.msra.mxu0 0.0
    %2635 = vmatprep.subr.mxu0 0.0
    %2636 = vmatpush2.msra.mxu0 0.0
    %2637 = vmatprep.subr.mxu0 0.0
    %2638 = vmatpush2.msra.mxu0 0.0
    %2639 = vmatprep.subr.mxu0 0.0
    %2640 = vmatpush2.msra.mxu0 0.0
    %2641 = vmatprep.subr.mxu0 0.0
    %2642 = vmatpush2.msra.mxu0 0.0
    %2643 = vmatprep.mubr.f32.mxu0 0.0
    %2644 = vmatmul.mubr.f32.gmra.mxu0 %v2577
    %v2645 = vpop.f32.mrf.mxu0
    %v2646 = vadd.f32 0.0, %v2645
    %v2647 = vpop.f32.mrf.mxu0
    %v2648 = vadd.f32 0.0, %v2647
    %2649 = vdwg.mxu0
    %v2650 = vadd.f32 %v2570, %v2646
    %v2651 = vadd.f32 %v2572, %v2648
    %v2652 = vxor.u32 %v2650, 2147483648
    %v2653 = vxor.u32 %v2651, 2147483648
    %v2654 = vmul.f32 %v2652, 1.442695
    %v2655 = vpow.pop %v2654
    %v2656 = vmul.f32 %v2653, 1.442695
    %v2657 = vpow.pop %v2656
    %v2658 = vadd.f32 %v2655, 1.0
    %v2659 = vadd.f32 %v2657, 1.0
    %v2660 = vrcp.pop %v2658
    %v2661 = vmul.f32 1.0, %v2660
    %v2662 = vrcp.pop %v2659
    %v2663 = vmul.f32 1.0, %v2662
    %v2664 = vtanh.pop %v2651
    %v2665 = vmul.f32 %v2661, %v2491
    %v2666 = vmul.f32 %v2661, %v2664
    %2668 = vrot.lane.b32.xlu0 %v2666, 64
    %v2669 = vpop.permute.xlu0 %2668
    %v2671 = vadd.f32 %v2665, %v2669
    %v2672 = vtanh.pop %v2671
    %v2673 = vmul.f32 %v2663, %v2672
    %2675 = vrot.lane.b32.xlu0 %v2673, 64
    %v2676 = vpop.permute.xlu0 %2675
    %v2677 = vsel %vm359, %v2676, 0
    %2679 = vmatprep.subr.mxu0 0.0
    %2680 = vmatpush1.msra.mxu0 0.0
    %2681 = vmatprep.subr.mxu0 0.0
    %2682 = vmatpush1.msra.mxu0 0.0
    %2683 = vmatprep.subr.mxu0 0.0
    %2684 = vmatpush1.msra.mxu0 0.0
    %2685 = vmatprep.subr.mxu0 0.0
    %2686 = vmatpush1.msra.mxu0 0.0
    %2687 = vmatprep.subr.mxu0 0.0
    %2688 = vmatpush1.msra.mxu0 0.0
    %2689 = vmatprep.subr.mxu0 0.0
    %2690 = vmatpush1.msra.mxu0 0.0
    %2691 = vmatprep.subr.mxu0 0.0
    %2692 = vmatpush1.msra.mxu0 0.0
    %2693 = vmatprep.subr.mxu0 0.0
    %2694 = vmatpush1.msra.mxu0 0.0
    %2695 = vmatprep.subr.mxu0 0.0
    %2696 = vmatpush1.msra.mxu0 %v117
    %2697 = vmatprep.subr.mxu0 0.0
    %2698 = vmatpush1.msra.mxu0 %v116
    %2699 = vmatprep.subr.mxu0 0.0
    %2700 = vmatpush1.msra.mxu0 %v115
    %2701 = vmatprep.subr.mxu0 0.0
    %2702 = vmatpush1.msra.mxu0 %v114
    %2703 = vmatprep.subr.mxu0 0.0
    %2704 = vmatpush1.msra.mxu0 %v113
    %2705 = vmatprep.subr.mxu0 0.0
    %2706 = vmatpush1.msra.mxu0 %v112
    %2707 = vmatprep.subr.mxu0 0.0
    %2708 = vmatpush1.msra.mxu0 %v111
    %2709 = vmatprep.subr.mxu0 0.0
    %2710 = vmatpush1.msra.mxu0 %v110
    %2711 = vmatprep.subr.mxu0 0.0
    %2712 = vmatpush2.msra.mxu0 0.0
    %2713 = vmatprep.subr.mxu0 0.0
    %2714 = vmatpush2.msra.mxu0 0.0
    %2715 = vmatprep.subr.mxu0 0.0
    %2716 = vmatpush2.msra.mxu0 0.0
    %2717 = vmatprep.subr.mxu0 0.0
    %2718 = vmatpush2.msra.mxu0 0.0
    %2719 = vmatprep.subr.mxu0 0.0
    %2720 = vmatpush2.msra.mxu0 0.0
    %2721 = vmatprep.subr.mxu0 0.0
    %2722 = vmatpush2.msra.mxu0 0.0
    %2723 = vmatprep.subr.mxu0 0.0
    %2724 = vmatpush2.msra.mxu0 0.0
    %2725 = vmatprep.subr.mxu0 0.0
    %2726 = vmatpush2.msra.mxu0 0.0
    %2727 = vmatprep.subr.mxu0 0.0
    %2728 = vmatpush2.msra.mxu0 0.0
    %2729 = vmatprep.subr.mxu0 0.0
    %2730 = vmatpush2.msra.mxu0 0.0
    %2731 = vmatprep.subr.mxu0 0.0
    %2732 = vmatpush2.msra.mxu0 0.0
    %2733 = vmatprep.subr.mxu0 0.0
    %2734 = vmatpush2.msra.mxu0 0.0
    %2735 = vmatprep.subr.mxu0 0.0
    %2736 = vmatpush2.msra.mxu0 0.0
    %2737 = vmatprep.subr.mxu0 0.0
    %2738 = vmatpush2.msra.mxu0 0.0
    %2739 = vmatprep.subr.mxu0 0.0
    %2740 = vmatpush2.msra.mxu0 0.0
    %2741 = vmatprep.subr.mxu0 0.0
    %2742 = vmatpush2.msra.mxu0 0.0
    %2743 = vmatprep.mubr.f32.mxu0 0.0
    %2744 = vmatmul.mubr.f32.gmra.mxu0 %v2677
    %v2745 = vpop.f32.mrf.mxu0
    %v2746 = vadd.f32 0.0, %v2745
    %v2747 = vpop.f32.mrf.mxu0
    %2748 = vdwg.mxu0
    %2749 = vmatprep.subr.mxu0 0.0
    %2750 = vmatpush1.msra.mxu0 0.0
    %2751 = vmatprep.subr.mxu0 0.0
    %2752 = vmatpush1.msra.mxu0 0.0
    %2753 = vmatprep.subr.mxu0 0.0
    %2754 = vmatpush1.msra.mxu0 0.0
    %2755 = vmatprep.subr.mxu0 0.0
    %2756 = vmatpush1.msra.mxu0 0.0
    %2757 = vmatprep.subr.mxu0 0.0
    %2758 = vmatpush1.msra.mxu0 0.0
    %2759 = vmatprep.subr.mxu0 0.0
    %2760 = vmatpush1.msra.mxu0 0.0
    %2761 = vmatprep.subr.mxu0 0.0
    %2762 = vmatpush1.msra.mxu0 0.0
    %2763 = vmatprep.subr.mxu0 0.0
    %2764 = vmatpush1.msra.mxu0 0.0
    %2765 = vmatprep.subr.mxu0 0.0
    %2766 = vmatpush1.msra.mxu0 %v109
    %2767 = vmatprep.subr.mxu0 0.0
    %2768 = vmatpush1.msra.mxu0 %v108
    %2769 = vmatprep.subr.mxu0 0.0
    %2770 = vmatpush1.msra.mxu0 %v107
    %2771 = vmatprep.subr.mxu0 0.0
    %2772 = vmatpush1.msra.mxu0 %v106
    %2773 = vmatprep.subr.mxu0 0.0
    %2774 = vmatpush1.msra.mxu0 %v105
    %2775 = vmatprep.subr.mxu0 0.0
    %2776 = vmatpush1.msra.mxu0 %v104
    %2777 = vmatprep.subr.mxu0 0.0
    %2778 = vmatpush1.msra.mxu0 %v103
    %2779 = vmatprep.subr.mxu0 0.0
    %2780 = vmatpush1.msra.mxu0 %v102
    %2781 = vmatprep.subr.mxu0 0.0
    %2782 = vmatpush2.msra.mxu0 0.0
    %2783 = vmatprep.subr.mxu0 0.0
    %2784 = vmatpush2.msra.mxu0 0.0
    %2785 = vmatprep.subr.mxu0 0.0
    %2786 = vmatpush2.msra.mxu0 0.0
    %2787 = vmatprep.subr.mxu0 0.0
    %2788 = vmatpush2.msra.mxu0 0.0
    %2789 = vmatprep.subr.mxu0 0.0
    %2790 = vmatpush2.msra.mxu0 0.0
    %2791 = vmatprep.subr.mxu0 0.0
    %2792 = vmatpush2.msra.mxu0 0.0
    %2793 = vmatprep.subr.mxu0 0.0
    %2794 = vmatpush2.msra.mxu0 0.0
    %2795 = vmatprep.subr.mxu0 0.0
    %2796 = vmatpush2.msra.mxu0 0.0
    %2797 = vmatprep.subr.mxu0 0.0
    %2798 = vmatpush2.msra.mxu0 0.0
    %2799 = vmatprep.subr.mxu0 0.0
    %2800 = vmatpush2.msra.mxu0 0.0
    %2801 = vmatprep.subr.mxu0 0.0
    %2802 = vmatpush2.msra.mxu0 0.0
    %2803 = vmatprep.subr.mxu0 0.0
    %2804 = vmatpush2.msra.mxu0 0.0
    %2805 = vmatprep.subr.mxu0 0.0
    %2806 = vmatpush2.msra.mxu0 0.0
    %2807 = vmatprep.subr.mxu0 0.0
    %2808 = vmatpush2.msra.mxu0 0.0
    %2809 = vmatprep.subr.mxu0 0.0
    %2810 = vmatpush2.msra.mxu0 0.0
    %2811 = vmatprep.subr.mxu0 0.0
    %2812 = vmatpush2.msra.mxu0 0.0
    %2813 = vmatprep.mubr.f32.mxu0 0.0
    %2814 = vmatmul.mubr.f32.gmra.mxu0 %v2501
    %v2815 = vpop.f32.mrf.mxu0
    %v2816 = vadd.f32 %v2746, %v2815
    %v2817 = vpop.f32.mrf.mxu0
    %2818 = vdwg.mxu0
    %v2819 = vld [vmem:[%s2] sm:$0x3]
    %vm2820 = vcmask 64512
    %v2822 = vsel %vm2820, %v2819, 0
    %2824 = vmatprep.subr.mxu0 0.0
    %2825 = vmatpush1.msra.mxu0 0.0
    %2826 = vmatprep.subr.mxu0 0.0
    %2827 = vmatpush1.msra.mxu0 0.0
    %2828 = vmatprep.subr.mxu0 0.0
    %2829 = vmatpush1.msra.mxu0 0.0
    %2830 = vmatprep.subr.mxu0 0.0
    %2831 = vmatpush1.msra.mxu0 0.0
    %2832 = vmatprep.subr.mxu0 0.0
    %2833 = vmatpush1.msra.mxu0 0.0
    %2834 = vmatprep.subr.mxu0 0.0
    %2835 = vmatpush1.msra.mxu0 0.0
    %2836 = vmatprep.subr.mxu0 0.0
    %2837 = vmatpush1.msra.mxu0 0.0
    %2838 = vmatprep.subr.mxu0 0.0
    %2839 = vmatpush1.msra.mxu0 0.0
    %2840 = vmatprep.subr.mxu0 0.0
    %2841 = vmatpush1.msra.mxu0 0.0
    %2842 = vmatprep.subr.mxu0 0.0
    %2843 = vmatpush1.msra.mxu0 0.0
    %2844 = vmatprep.subr.mxu0 0.0
    %2845 = vmatpush1.msra.mxu0 0.0
    %2846 = vmatprep.subr.mxu0 0.0
    %2847 = vmatpush1.msra.mxu0 0.0
    %2848 = vmatprep.subr.mxu0 0.0
    %2849 = vmatpush1.msra.mxu0 0.0
    %2850 = vmatprep.subr.mxu0 0.0
    %2851 = vmatpush1.msra.mxu0 0.0
    %2852 = vmatprep.subr.mxu0 0.0
    %2853 = vmatpush1.msra.mxu0 0.0
    %2854 = vmatprep.subr.mxu0 0.0
    %2855 = vmatpush1.msra.mxu0 %v118
    %2856 = vmatprep.subr.mxu0 0.0
    %2857 = vmatpush2.msra.mxu0 0.0
    %2858 = vmatprep.subr.mxu0 0.0
    %2859 = vmatpush2.msra.mxu0 0.0
    %2860 = vmatprep.subr.mxu0 0.0
    %2861 = vmatpush2.msra.mxu0 0.0
    %2862 = vmatprep.subr.mxu0 0.0
    %2863 = vmatpush2.msra.mxu0 0.0
    %2864 = vmatprep.subr.mxu0 0.0
    %2865 = vmatpush2.msra.mxu0 0.0
    %2866 = vmatprep.subr.mxu0 0.0
    %2867 = vmatpush2.msra.mxu0 0.0
    %2868 = vmatprep.subr.mxu0 0.0
    %2869 = vmatpush2.msra.mxu0 0.0
    %2870 = vmatprep.subr.mxu0 0.0
    %2871 = vmatpush2.msra.mxu0 0.0
    %2872 = vmatprep.subr.mxu0 0.0
    %2873 = vmatpush2.msra.mxu0 0.0
    %2874 = vmatprep.subr.mxu0 0.0
    %2875 = vmatpush2.msra.mxu0 0.0
    %2876 = vmatprep.subr.mxu0 0.0
    %2877 = vmatpush2.msra.mxu0 0.0
    %2878 = vmatprep.subr.mxu0 0.0
    %2879 = vmatpush2.msra.mxu0 0.0
    %2880 = vmatprep.subr.mxu0 0.0
    %2881 = vmatpush2.msra.mxu0 0.0
    %2882 = vmatprep.subr.mxu0 0.0
    %2883 = vmatpush2.msra.mxu0 0.0
    %2884 = vmatprep.subr.mxu0 0.0
    %2885 = vmatpush2.msra.mxu0 0.0
    %2886 = vmatprep.subr.mxu0 0.0
    %2887 = vmatpush2.msra.mxu0 0.0
    %2888 = vmatprep.mubr.f32.mxu0 0.0
    %2889 = vmatmul.mubr.f32.gmra.mxu0 %v2822
    %v2890 = vpop.f32.mrf.mxu0
    %v2891 = vadd.f32 0.0, %v2890
    %v2892 = vpop.f32.mrf.mxu0
    %2893 = vdwg.mxu0
    %v2894 = vadd.f32 %v2816, %v2891
    %v2895 = vlaneseq
    %v2896 = vshrl.u32 %v2895, 7
    %v2897 = vsub.s32 0, %v2896
    %v2898 = vrot.slane %v119, %v2897
    %v2899 = vadd.f32 %v2894, %v2898
    %v2900 = vmax.f32 %v2899, 0.0
    %v2901 = vlaneseq
    %v2902 = vshrl.u32 %v2901, 7
    %v2903 = vsub.s32 0, %v2902
    %v2904 = vrot.slane %v124, %v2903
    %v2906 = vsel %vm213, %v2900, 0
    %2908 = vmatprep.subr.mxu0 0.0
    %2909 = vmatpush1.msra.mxu0 0.0
    %2910 = vmatprep.subr.mxu0 0.0
    %2911 = vmatpush1.msra.mxu0 0.0
    %2912 = vmatprep.subr.mxu0 0.0
    %2913 = vmatpush1.msra.mxu0 0.0
    %2914 = vmatprep.subr.mxu0 0.0
    %2915 = vmatpush1.msra.mxu0 0.0
    %2916 = vmatprep.subr.mxu0 0.0
    %2917 = vmatpush1.msra.mxu0 0.0
    %2918 = vmatprep.subr.mxu0 0.0
    %2919 = vmatpush1.msra.mxu0 0.0
    %2920 = vmatprep.subr.mxu0 0.0
    %2921 = vmatpush1.msra.mxu0 0.0
    %2922 = vmatprep.subr.mxu0 0.0
    %2923 = vmatpush1.msra.mxu0 0.0
    %2924 = vmatprep.subr.mxu0 0.0
    %2925 = vmatpush1.msra.mxu0 0.0
    %2926 = vmatprep.subr.mxu0 0.0
    %2927 = vmatpush1.msra.mxu0 0.0
    %2928 = vmatprep.subr.mxu0 0.0
    %2929 = vmatpush1.msra.mxu0 0.0
    %2930 = vmatprep.subr.mxu0 0.0
    %2931 = vmatpush1.msra.mxu0 0.0
    %2932 = vmatprep.subr.mxu0 0.0
    %2933 = vmatpush1.msra.mxu0 %v123
    %2934 = vmatprep.subr.mxu0 0.0
    %2935 = vmatpush1.msra.mxu0 %v122
    %2936 = vmatprep.subr.mxu0 0.0
    %2937 = vmatpush1.msra.mxu0 %v121
    %2938 = vmatprep.subr.mxu0 0.0
    %2939 = vmatpush1.msra.mxu0 %v120
    %2940 = vmatprep.subr.mxu0 0.0
    %2941 = vmatpush2.msra.mxu0 0.0
    %2942 = vmatprep.subr.mxu0 0.0
    %2943 = vmatpush2.msra.mxu0 0.0
    %2944 = vmatprep.subr.mxu0 0.0
    %2945 = vmatpush2.msra.mxu0 0.0
    %2946 = vmatprep.subr.mxu0 0.0
    %2947 = vmatpush2.msra.mxu0 0.0
    %2948 = vmatprep.subr.mxu0 0.0
    %2949 = vmatpush2.msra.mxu0 0.0
    %2950 = vmatprep.subr.mxu0 0.0
    %2951 = vmatpush2.msra.mxu0 0.0
    %2952 = vmatprep.subr.mxu0 0.0
    %2953 = vmatpush2.msra.mxu0 0.0
    %2954 = vmatprep.subr.mxu0 0.0
    %2955 = vmatpush2.msra.mxu0 0.0
    %2956 = vmatprep.subr.mxu0 0.0
    %2957 = vmatpush2.msra.mxu0 0.0
    %2958 = vmatprep.subr.mxu0 0.0
    %2959 = vmatpush2.msra.mxu0 0.0
    %2960 = vmatprep.subr.mxu0 0.0
    %2961 = vmatpush2.msra.mxu0 0.0
    %2962 = vmatprep.subr.mxu0 0.0
    %2963 = vmatpush2.msra.mxu0 0.0
    %2964 = vmatprep.subr.mxu0 0.0
    %2965 = vmatpush2.msra.mxu0 0.0
    %2966 = vmatprep.subr.mxu0 0.0
    %2967 = vmatpush2.msra.mxu0 0.0
    %2968 = vmatprep.subr.mxu0 0.0
    %2969 = vmatpush2.msra.mxu0 0.0
    %2970 = vmatprep.subr.mxu0 0.0
    %2971 = vmatpush2.msra.mxu0 0.0
    %2972 = vmatprep.mubr.f32.mxu0 0.0
    %2973 = vmatmul.mubr.f32.gmra.mxu0 %v2906
    %v2974 = vpop.f32.mrf.mxu0
    %v2975 = vadd.f32 %v2904, %v2974
    %v2976 = vpop.f32.mrf.mxu0
    %2977 = vdwg.mxu0
    %vm2978 = vcmask 25600
    %v2979 = vsel %vm2978, %v2975, -inf
    %2980 = vmax.xlane.f32.xlu0 %v2979
    %v2981 = vpop.xlane.xlu0 %2980
    %v2982 = vsub.f32 %v2975, %v2981
    %v2983 = vmul.f32 %v2982, 1.442695
    %v2984 = vpow.pop %v2983
    %v2985 = vsel %vm2978, %v2984, 0.0
    %2986 = vadd.xlane.f32.xlu0 %v2985
    %v2987 = vpop.xlane.xlu0 %2986
    %v2988 = vrcp.pop %v2987
    %v2989 = vmul.f32 %v2984, %v2988
    %2990 = vst.msk [vmem:[#allocation5] sm:$0x3] %vm2978, %v2989
    // Predicated region
    $region30: #{tpu_custom_call.1} parent=1 // pred_check
      _
    $region31: #{tpu_custom_call.1} parent=1 // pred_check_branch
      %2992 = sbr.rel (0) target = $region33
    $region32: #{tpu_custom_call.1} parent=1 // pred_region
      %s2994 = ssub.s32 32, 32
      %2995 = vsyncadd [#allocation4], %s2994
      %s2997 = sshll.u32 [#allocation5], 4
      %s2998 = int_to_ptr.vmem [resolvable:$true] %s2997
      %3000 = dma.vmem_to_hbm [thread:$0]  %s2998, 32, %s6, [#allocation4]
    $region33: #{tpu_custom_call.1} parent=1 // pred_fallthru
      _
    // Predicated region
    $region34: #{tpu_custom_call.1} parent=1 // pred_check
      _
    $region35: #{tpu_custom_call.1} parent=1 // pred_check_branch
      %3002 = sbr.rel (0) target = $region37
    $region36: #{tpu_custom_call.1} parent=1 // pred_region
      %3003 = dma.done [#allocation4], 32
    $region37: #{tpu_custom_call.1} parent=1 // pred_fallthru
      _
    %3004 = vsyncpa [#allocation3], 1
    %3005 = vsyncpa [#allocation4], 1

</llo_original>
